<compile_context>
chip_gen: v7x
topology: tpu7x:2x2x1
jax: 0.10.0
libtpu: 0.0.40
codegen_flags: <defaults>
</compile_context>

<pallas_src>
import functools

import jax
import jax.numpy as jnp
from jax.experimental import pallas as pl
from jax.experimental.pallas import tpu as pltpu

MID = 1024     # intermediate channels hard-coded in the PyTorch module
LANES = 128    # one full lane register


@functools.lru_cache(maxsize=None)
def _use_bf16_epilogue():
    """bf16 elementwise epilogue only where the VPU has bf16 ALUs (v6e / v7x)."""
    try:
        kind = jax.devices()[0].device_kind.lower()
    except Exception:
        return False
    return ("v6" in kind) or ("v7" in kind)


def _pylon_kernel(patches_ref, w3_ref, b3_ref, w1_ref, b1_ref, out_ref):
    """One (batch, HW-tile) grid step.

    patches_ref : (1, TILE_HW, 9*Cin)     bf16 im2col patches
    w3_ref      : (3, 9*Cin, MID)         bf16 3x3 weights, one slab per branch
    b3_ref      : (3, 1, MID)             3x3 biases (bf16 on v6e/v7x, f32 on v5e)
    w1_ref      : (3, MID, COUT_PAD)      bf16 1x1 weights, zero-padded to 128 lanes
    b1_ref      : (3, 1, COUT_PAD)        f32 1x1 biases, zero-padded
    out_ref     : (1, TILE_HW, COUT_PAD)  bf16 (padded lanes are exactly 0)
    """
    p = patches_ref[0]                                           # (TILE_HW, K)
    acc = None
    for br in range(3):                                          # static unroll
        # relu(conv3x3): one (TILE_HW,K)x(K,MID) MXU call; epilogue in b3's dtype.
        h = jnp.dot(p, w3_ref[br], preferred_element_type=jnp.float32)
        h = jnp.maximum(h.astype(b3_ref.dtype) + b3_ref[br], 0.0)
        # relu(conv1x1) immediately so only one (TILE_HW, MID) intermediate stays
        # live per iteration (instead of a fused (TILE_HW, 3*MID) slab).
        y = jnp.dot(h.astype(jnp.bfloat16), w1_ref[br],
                    preferred_element_type=jnp.float32)
        y = jnp.maximum(y + b1_ref[br], 0.0)
        acc = y if acc is None else jnp.maximum(acc, y)          # torch.max
    out_ref[0] = acc.astype(out_ref.dtype)                       # lane-dense 128-wide store


def _pick_tile_hw(hw_pad, n):
    """Largest 128-multiple tile dividing hw_pad that still yields >= 16 total grid
    steps (>= 8 per TensorCore on v7x megacore) with an even step count; falls back
    to 128 (maximum step count) for small problems.  hw_pad is a multiple of 128."""
    for t in (1024, 512, 256, 128):
        if hw_pad % t == 0:
            steps = (hw_pad // t) * n
            if steps >= 16 and steps % 2 == 0:
                return t
    return 128


@functools.partial(jax.jit, static_argnames=("bf16_epilogue",))
def _pylon_forward(x_nchw, w3s, b3s, w1s, b1s, *, bf16_epilogue):
    N, Cin, H, W = x_nchw.shape
    Cout = w1s.shape[-1]
    K = 9 * Cin
    HW = H * W
    HW_pad = ((HW + LANES - 1) // LANES) * LANES
    cout_pad = ((Cout + LANES - 1) // LANES) * LANES
    tile = _pick_tile_hw(HW_pad, N)
    epi_dtype = jnp.bfloat16 if bf16_epilogue else jnp.float32

    # --- parameter prep (cheap XLA glue, once per call) ---
    w3_bf = w3s.astype(jnp.bfloat16)                                     # (3, K, MID)
    b3_ep = b3s.reshape(3, 1, MID).astype(epi_dtype)                     # (3, 1, MID)
    w1_pad = jnp.pad(w1s, ((0, 0), (0, 0), (0, cout_pad - Cout))).astype(jnp.bfloat16)
    b1_pad = jnp.pad(b1s.reshape(3, 1, Cout),
                     ((0, 0), (0, 0), (0, cout_pad - Cout))).astype(jnp.float32)

    # --- glue: NCHW -> NHWC (bf16), im2col (3x3, pad=1, stride=1) ---
    # TODO(synk): for large Cin, build the patches in-kernel from a haloed DMA slab
    # instead of materializing the 9x-expanded patches tensor in HBM.
    x = jnp.transpose(x_nchw, (0, 2, 3, 1)).astype(jnp.bfloat16)          # (N,H,W,Cin)
    xp = jnp.pad(x, ((0, 0), (1, 1), (1, 1), (0, 0)))
    patches = jnp.concatenate(
        [xp[:, dh:dh + H, dw:dw + W, :] for dh in range(3) for dw in range(3)],
        axis=-1,
    ).reshape(N, HW, K)                                                   # (N, HW, 9*Cin)
    if HW_pad != HW:
        patches = jnp.pad(patches, ((0, 0), (0, HW_pad - HW), (0, 0)))

    flops = 2 * N * HW_pad * (K * 3 * MID + 3 * MID * cout_pad)
    bytes_accessed = (
        patches.size * patches.dtype.itemsize
        + w3_bf.size * 2 + b3_ep.size * b3_ep.dtype.itemsize
        + w1_pad.size * 2 + b1_pad.size * 4
        + N * HW_pad * cout_pad * 2)                                      # bf16 output

    # TODO(synk): for large Cin, single-buffer the constant weight/bias specs
    # (pipeline_mode=pl.Buffered(1)); negligible here (~1 MiB of weights total).
    out = pl.pallas_call(
        _pylon_kernel,
        out_shape=jax.ShapeDtypeStruct((N, HW_pad, cout_pad), jnp.bfloat16),
        grid_spec=pltpu.PrefetchScalarGridSpec(
            num_scalar_prefetch=0,
            grid=(N, HW_pad // tile),
            in_specs=[
                pl.BlockSpec((1, tile, K), lambda n, t: (n, t, 0)),
                pl.BlockSpec((3, K, MID), lambda n, t: (0, 0, 0)),
                pl.BlockSpec((3, 1, MID), lambda n, t: (0, 0, 0)),
                pl.BlockSpec((3, MID, cout_pad), lambda n, t: (0, 0, 0)),
                pl.BlockSpec((3, 1, cout_pad), lambda n, t: (0, 0, 0)),
            ],
            out_specs=pl.BlockSpec((1, tile, cout_pad), lambda n, t: (n, t, 0)),
        ),
        compiler_params=pltpu.CompilerParams(
            dimension_semantics=("parallel", "parallel"),
            vmem_limit_bytes=32 * 1024 * 1024,
        ),
        cost_estimate=pl.CostEstimate(
            flops=flops, transcendentals=0, bytes_accessed=bytes_accessed),
    )(patches, w3_bf, b3_ep, w1_pad, b1_pad)

    # TODO(synk): pack 128//Cout pixels per 128-lane output row in-kernel to cut the
    # padded writeback a further ~16x for small Cout.
    out = out[:, :HW, :Cout].astype(jnp.float32).reshape(N, H, W, Cout)
    return jnp.transpose(out, (0, 3, 1, 2))                               # (N,Cout,H,W)


def pylon_decoder_forward(x_nchw, w3s, b3s, w1s, b1s):
    """x_nchw: (N, Cin, H, W) float32.  Returns (N, Cout, H, W) float32."""
    return _pylon_forward(x_nchw, w3s, b3s, w1s, b1s,
                          bf16_epilogue=_use_bf16_epilogue())


def make_params(key, cin, cout):
    """Deterministic synthetic params, matching PyTorch shapes.

    conv3x3 torch weight: (MID, cin, 3, 3)  -> (9*cin, MID) with (kh, kw, ci) row
    ordering to match the im2col patch layout.
    conv1x1 torch weight: (cout, MID, 1, 1) -> (MID, cout).
    """
    keys = jax.random.split(key, 12)
    w3s, b3s, w1s, b1s = [], [], [], []
    for br in range(3):
        w3_t = jax.random.normal(keys[4 * br + 0], (MID, cin, 3, 3), jnp.float32) * 0.05
        b3_t = jax.random.normal(keys[4 * br + 1], (MID,), jnp.float32) * 0.05
        w1_t = jax.random.normal(keys[4 * br + 2], (cout, MID, 1, 1), jnp.float32) * 0.05
        b1_t = jax.random.normal(keys[4 * br + 3], (cout,), jnp.float32) * 0.05
        # (MID, cin, kh, kw) -> (kh, kw, cin, MID) -> (9*cin, MID)
        w3s.append(jnp.transpose(w3_t, (2, 3, 1, 0)).reshape(9 * cin, MID))
        b3s.append(b3_t.reshape(1, MID))
        # (cout, MID, 1, 1) -> (MID, cout)
        w1s.append(jnp.transpose(w1_t[:, :, 0, 0], (1, 0)))
        b1s.append(b1_t.reshape(1, cout))
    return (jnp.stack(w3s), jnp.stack(b3s), jnp.stack(w1s), jnp.stack(b1s))


def _reference(x_nchw, w3s, b3s, w1s, b1s):
    """Pure-JAX f32 reference (lax conv) for the correctness check."""
    N, Cin, H, W = x_nchw.shape
    x = jnp.transpose(x_nchw, (0, 2, 3, 1))  # NHWC
    dn = jax.lax.conv_dimension_numbers(x.shape, (3, 3, Cin, MID),
                                        ("NHWC", "HWIO", "NHWC"))
    outs = []
    for br in range(3):
        w3_hwio = w3s[br].reshape(3, 3, Cin, MID)
        h = jax.lax.conv_general_dilated(x, w3_hwio, (1, 1), "SAME",
                                         dimension_numbers=dn)
        h = jnp.maximum(h + b3s[br][0], 0.0)
        y = jnp.maximum(jnp.einsum("nhwc,cd->nhwd", h, w1s[br]) + b1s[br][0], 0.0)
        outs.append(y)
    out = jnp.maximum(jnp.maximum(outs[0], outs[1]), outs[2])
    return jnp.transpose(out, (0, 3, 1, 2))


if __name__ == "__main__":
    key = jax.random.PRNGKey(0)
    kx, kp = jax.random.split(key)

    N, Cin, H, W = 2, 4, 16, 16          # encoder_channels[-1] = 4
    Cout = 8                             # decoder_channels = 8
    x = jax.random.normal(kx, (N, Cin, H, W), jnp.float32)
    w3s, b3s, w1s, b1s = make_params(kp, Cin, Cout)

    out = jax.block_until_ready(pylon_decoder_forward(x, w3s, b3s, w1s, b1s))
    ref = jax.block_until_ready(_reference(x, w3s, b3s, w1s, b1s))

    assert out.shape == (N, Cout, H, W)
    # bf16 MXU inputs / bf16 output storage with f32 accumulation -> loosened tolerance.
    assert jnp.allclose(out, ref, atol=2e-2, rtol=2e-2), "mismatch vs reference"

    print("KERNEL_OK")
</pallas_src>

<mosaic_0001>
module attributes {stable_mosaic.version = 11 : i64} {
  func.func @_pylon_kernel(%arg0: i32, %arg1: i32, %arg2: memref<1x128x36xbf16, #tpu.memory_space<vmem>>, %arg3: memref<3x36x1024xbf16, #tpu.memory_space<vmem>>, %arg4: memref<3x1x1024xf32, #tpu.memory_space<vmem>>, %arg5: memref<3x1024x128xbf16, #tpu.memory_space<vmem>>, %arg6: memref<3x1x128xf32, #tpu.memory_space<vmem>>, %arg7: memref<1x128x128xbf16, #tpu.memory_space<vmem>>) attributes {dimension_semantics = [#tpu.dimension_semantics<parallel>, #tpu.dimension_semantics<parallel>], iteration_bounds = array<i64: 2, 2>, scalar_prefetch = 0 : i64, scratch_operands = 0 : i64, tpu.core_type = #tpu.core_type<tc>, window_params = [{transform_indices = @transform_0, window_bounds = array<i64: 1, 128, 36>}, {pipeline_mode = #tpu.pipeline_mode<synchronous>, transform_indices = @transform_1, window_bounds = array<i64: 3, 36, 1024>}, {pipeline_mode = #tpu.pipeline_mode<synchronous>, transform_indices = @transform_2, window_bounds = array<i64: 3, 1, 1024>}, {pipeline_mode = #tpu.pipeline_mode<synchronous>, transform_indices = @transform_3, window_bounds = array<i64: 3, 1024, 128>}, {pipeline_mode = #tpu.pipeline_mode<synchronous>, transform_indices = @transform_4, window_bounds = array<i64: 3, 1, 128>}, {transform_indices = @transform_5, window_bounds = array<i64: 1, 128, 128>}]} {
    %c0 = arith.constant 0 : index
    %c0_0 = arith.constant 0 : index
    %c0_1 = arith.constant 0 : index
    %0 = vector.load %arg2[%c0, %c0_0, %c0_1] : memref<1x128x36xbf16, #tpu.memory_space<vmem>>, vector<1x128x36xbf16>
    %1 = vector.shape_cast %0 : vector<1x128x36xbf16> to vector<128x36xbf16>
    %c0_2 = arith.constant 0 : index
    %c0_3 = arith.constant 0 : index
    %c0_4 = arith.constant 0 : index
    %2 = vector.load %arg3[%c0_2, %c0_3, %c0_4] : memref<3x36x1024xbf16, #tpu.memory_space<vmem>>, vector<1x36x1024xbf16>
    %3 = vector.shape_cast %2 : vector<1x36x1024xbf16> to vector<36x1024xbf16>
    %cst = arith.constant dense<0.000000e+00> : vector<128x1024xf32>
    %4 = tpu.matmul %1, %3, %cst {dimension_numbers = #tpu.dot_dimension_numbers<[1], [0], [0], [1], [0, 0, 1, 1], [], []>} : vector<128x36xbf16>, vector<36x1024xbf16>, vector<128x1024xf32> -> vector<128x1024xf32>
    %c0_5 = arith.constant 0 : index
    %c0_6 = arith.constant 0 : index
    %c0_7 = arith.constant 0 : index
    %5 = vector.load %arg4[%c0_5, %c0_6, %c0_7] : memref<3x1x1024xf32, #tpu.memory_space<vmem>>, vector<1x1x1024xf32>
    %6 = vector.shape_cast %5 : vector<1x1x1024xf32> to vector<1x1024xf32>
    %7 = vector.broadcast %6 : vector<1x1024xf32> to vector<128x1024xf32>
    %8 = arith.addf %4, %7 : vector<128x1024xf32>
    %cst_8 = arith.constant 0.000000e+00 : f32
    %9 = vector.broadcast %cst_8 : f32 to vector<128x1024xf32>
    %10 = arith.maximumf %8, %9 : vector<128x1024xf32>
    %11 = arith.truncf %10 : vector<128x1024xf32> to vector<128x1024xbf16>
    %c0_9 = arith.constant 0 : index
    %c0_10 = arith.constant 0 : index
    %c0_11 = arith.constant 0 : index
    %12 = vector.load %arg5[%c0_9, %c0_10, %c0_11] : memref<3x1024x128xbf16, #tpu.memory_space<vmem>>, vector<1x1024x128xbf16>
    %13 = vector.shape_cast %12 : vector<1x1024x128xbf16> to vector<1024x128xbf16>
    %cst_12 = arith.constant dense<0.000000e+00> : vector<128x128xf32>
    %14 = tpu.matmul %11, %13, %cst_12 {dimension_numbers = #tpu.dot_dimension_numbers<[1], [0], [0], [1], [0, 0, 1, 1], [], []>} : vector<128x1024xbf16>, vector<1024x128xbf16>, vector<128x128xf32> -> vector<128x128xf32>
    %c0_13 = arith.constant 0 : index
    %c0_14 = arith.constant 0 : index
    %c0_15 = arith.constant 0 : index
    %15 = vector.load %arg6[%c0_13, %c0_14, %c0_15] : memref<3x1x128xf32, #tpu.memory_space<vmem>>, vector<1x1x128xf32>
    %16 = vector.shape_cast %15 : vector<1x1x128xf32> to vector<1x128xf32>
    %17 = vector.broadcast %16 : vector<1x128xf32> to vector<128x128xf32>
    %18 = arith.addf %14, %17 : vector<128x128xf32>
    %cst_16 = arith.constant 0.000000e+00 : f32
    %19 = vector.broadcast %cst_16 : f32 to vector<128x128xf32>
    %20 = arith.maximumf %18, %19 : vector<128x128xf32>
    %c1 = arith.constant 1 : index
    %c0_17 = arith.constant 0 : index
    %c0_18 = arith.constant 0 : index
    %21 = vector.load %arg3[%c1, %c0_17, %c0_18] : memref<3x36x1024xbf16, #tpu.memory_space<vmem>>, vector<1x36x1024xbf16>
    %22 = vector.shape_cast %21 : vector<1x36x1024xbf16> to vector<36x1024xbf16>
    %cst_19 = arith.constant dense<0.000000e+00> : vector<128x1024xf32>
    %23 = tpu.matmul %1, %22, %cst_19 {dimension_numbers = #tpu.dot_dimension_numbers<[1], [0], [0], [1], [0, 0, 1, 1], [], []>} : vector<128x36xbf16>, vector<36x1024xbf16>, vector<128x1024xf32> -> vector<128x1024xf32>
    %c1_20 = arith.constant 1 : index
    %c0_21 = arith.constant 0 : index
    %c0_22 = arith.constant 0 : index
    %24 = vector.load %arg4[%c1_20, %c0_21, %c0_22] : memref<3x1x1024xf32, #tpu.memory_space<vmem>>, vector<1x1x1024xf32>
    %25 = vector.shape_cast %24 : vector<1x1x1024xf32> to vector<1x1024xf32>
    %26 = vector.broadcast %25 : vector<1x1024xf32> to vector<128x1024xf32>
    %27 = arith.addf %23, %26 : vector<128x1024xf32>
    %cst_23 = arith.constant 0.000000e+00 : f32
    %28 = vector.broadcast %cst_23 : f32 to vector<128x1024xf32>
    %29 = arith.maximumf %27, %28 : vector<128x1024xf32>
    %30 = arith.truncf %29 : vector<128x1024xf32> to vector<128x1024xbf16>
    %c1_24 = arith.constant 1 : index
    %c0_25 = arith.constant 0 : index
    %c0_26 = arith.constant 0 : index
    %31 = vector.load %arg5[%c1_24, %c0_25, %c0_26] : memref<3x1024x128xbf16, #tpu.memory_space<vmem>>, vector<1x1024x128xbf16>
    %32 = vector.shape_cast %31 : vector<1x1024x128xbf16> to vector<1024x128xbf16>
    %cst_27 = arith.constant dense<0.000000e+00> : vector<128x128xf32>
    %33 = tpu.matmul %30, %32, %cst_27 {dimension_numbers = #tpu.dot_dimension_numbers<[1], [0], [0], [1], [0, 0, 1, 1], [], []>} : vector<128x1024xbf16>, vector<1024x128xbf16>, vector<128x128xf32> -> vector<128x128xf32>
    %c1_28 = arith.constant 1 : index
    %c0_29 = arith.constant 0 : index
    %c0_30 = arith.constant 0 : index
    %34 = vector.load %arg6[%c1_28, %c0_29, %c0_30] : memref<3x1x128xf32, #tpu.memory_space<vmem>>, vector<1x1x128xf32>
    %35 = vector.shape_cast %34 : vector<1x1x128xf32> to vector<1x128xf32>
    %36 = vector.broadcast %35 : vector<1x128xf32> to vector<128x128xf32>
    %37 = arith.addf %33, %36 : vector<128x128xf32>
    %cst_31 = arith.constant 0.000000e+00 : f32
    %38 = vector.broadcast %cst_31 : f32 to vector<128x128xf32>
    %39 = arith.maximumf %37, %38 : vector<128x128xf32>
    %40 = arith.maximumf %20, %39 : vector<128x128xf32>
    %c2 = arith.constant 2 : index
    %c0_32 = arith.constant 0 : index
    %c0_33 = arith.constant 0 : index
    %41 = vector.load %arg3[%c2, %c0_32, %c0_33] : memref<3x36x1024xbf16, #tpu.memory_space<vmem>>, vector<1x36x1024xbf16>
    %42 = vector.shape_cast %41 : vector<1x36x1024xbf16> to vector<36x1024xbf16>
    %cst_34 = arith.constant dense<0.000000e+00> : vector<128x1024xf32>
    %43 = tpu.matmul %1, %42, %cst_34 {dimension_numbers = #tpu.dot_dimension_numbers<[1], [0], [0], [1], [0, 0, 1, 1], [], []>} : vector<128x36xbf16>, vector<36x1024xbf16>, vector<128x1024xf32> -> vector<128x1024xf32>
    %c2_35 = arith.constant 2 : index
    %c0_36 = arith.constant 0 : index
    %c0_37 = arith.constant 0 : index
    %44 = vector.load %arg4[%c2_35, %c0_36, %c0_37] : memref<3x1x1024xf32, #tpu.memory_space<vmem>>, vector<1x1x1024xf32>
    %45 = vector.shape_cast %44 : vector<1x1x1024xf32> to vector<1x1024xf32>
    %46 = vector.broadcast %45 : vector<1x1024xf32> to vector<128x1024xf32>
    %47 = arith.addf %43, %46 : vector<128x1024xf32>
    %cst_38 = arith.constant 0.000000e+00 : f32
    %48 = vector.broadcast %cst_38 : f32 to vector<128x1024xf32>
    %49 = arith.maximumf %47, %48 : vector<128x1024xf32>
    %50 = arith.truncf %49 : vector<128x1024xf32> to vector<128x1024xbf16>
    %c2_39 = arith.constant 2 : index
    %c0_40 = arith.constant 0 : index
    %c0_41 = arith.constant 0 : index
    %51 = vector.load %arg5[%c2_39, %c0_40, %c0_41] : memref<3x1024x128xbf16, #tpu.memory_space<vmem>>, vector<1x1024x128xbf16>
    %52 = vector.shape_cast %51 : vector<1x1024x128xbf16> to vector<1024x128xbf16>
    %cst_42 = arith.constant dense<0.000000e+00> : vector<128x128xf32>
    %53 = tpu.matmul %50, %52, %cst_42 {dimension_numbers = #tpu.dot_dimension_numbers<[1], [0], [0], [1], [0, 0, 1, 1], [], []>} : vector<128x1024xbf16>, vector<1024x128xbf16>, vector<128x128xf32> -> vector<128x128xf32>
    %c2_43 = arith.constant 2 : index
    %c0_44 = arith.constant 0 : index
    %c0_45 = arith.constant 0 : index
    %54 = vector.load %arg6[%c2_43, %c0_44, %c0_45] : memref<3x1x128xf32, #tpu.memory_space<vmem>>, vector<1x1x128xf32>
    %55 = vector.shape_cast %54 : vector<1x1x128xf32> to vector<1x128xf32>
    %56 = vector.broadcast %55 : vector<1x128xf32> to vector<128x128xf32>
    %57 = arith.addf %53, %56 : vector<128x128xf32>
    %cst_46 = arith.constant 0.000000e+00 : f32
    %58 = vector.broadcast %cst_46 : f32 to vector<128x128xf32>
    %59 = arith.maximumf %57, %58 : vector<128x128xf32>
    %60 = arith.maximumf %40, %59 : vector<128x128xf32>
    %61 = arith.truncf %60 : vector<128x128xf32> to vector<128x128xbf16>
    %c0_47 = arith.constant 0 : index
    %c0_48 = arith.constant 0 : index
    %c0_49 = arith.constant 0 : index
    %62 = vector.load %arg7[%c0_47, %c0_48, %c0_49] : memref<1x128x128xbf16, #tpu.memory_space<vmem>>, vector<1x128x128xbf16>
    %63 = vector.shape_cast %62 : vector<1x128x128xbf16> to vector<128x128xbf16>
    %64 = vector.shape_cast %61 : vector<128x128xbf16> to vector<1x128x128xbf16>
    tpu.vector_store %arg7[%c0_47, %c0_48, %c0_49], %64 {strides = array<i32>} : memref<1x128x128xbf16, #tpu.memory_space<vmem>>, vector<1x128x128xbf16>,
    return
  }
  func.func @transform_0(%arg0: i32, %arg1: i32) -> (i32, i32, i32) {
    %c0_i32 = arith.constant 0 : i32
    %c0_i32_0 = arith.constant 0 : i32
    return %arg0, %arg1, %c0_i32 : i32, i32, i32
  }
  func.func @transform_1(%arg0: i32, %arg1: i32) -> (i32, i32, i32) {
    %c0_i32 = arith.constant 0 : i32
    %c0_i32_0 = arith.constant 0 : i32
    %c0_i32_1 = arith.constant 0 : i32
    %c0_i32_2 = arith.constant 0 : i32
    return %c0_i32, %c0_i32_0, %c0_i32_1 : i32, i32, i32
  }
  func.func @transform_2(%arg0: i32, %arg1: i32) -> (i32, i32, i32) {
    %c0_i32 = arith.constant 0 : i32
    %c0_i32_0 = arith.constant 0 : i32
    %c0_i32_1 = arith.constant 0 : i32
    %c0_i32_2 = arith.constant 0 : i32
    return %c0_i32, %c0_i32_0, %c0_i32_1 : i32, i32, i32
  }
  func.func @transform_3(%arg0: i32, %arg1: i32) -> (i32, i32, i32) {
    %c0_i32 = arith.constant 0 : i32
    %c0_i32_0 = arith.constant 0 : i32
    %c0_i32_1 = arith.constant 0 : i32
    %c0_i32_2 = arith.constant 0 : i32
    return %c0_i32, %c0_i32_0, %c0_i32_1 : i32, i32, i32
  }
  func.func @transform_4(%arg0: i32, %arg1: i32) -> (i32, i32, i32) {
    %c0_i32 = arith.constant 0 : i32
    %c0_i32_0 = arith.constant 0 : i32
    %c0_i32_1 = arith.constant 0 : i32
    %c0_i32_2 = arith.constant 0 : i32
    return %c0_i32, %c0_i32_0, %c0_i32_1 : i32, i32, i32
  }
  func.func @transform_5(%arg0: i32, %arg1: i32) -> (i32, i32, i32) {
    %c0_i32 = arith.constant 0 : i32
    %c0_i32_0 = arith.constant 0 : i32
    return %arg0, %arg1, %c0_i32 : i32, i32, i32
  }
}

</mosaic_0001>

<llo_original>
// kernel: _pylon_forward.1
$region0: #{_pylon_forward.1}
  #allocation0 [shape = 'u32[]', space=smem, size = 0x4, offset = 0x4, fixed_abs, tag = 'smem constant byte address 0x4 - core index']
  #allocation1 [shape = 'u32[144,128]{1,0:T(1,128)}', space=vmem, size = 0x12000, scoped, tag = 'internal scratch']
  %s0 = inlined_call_operand.vmem [shape: bf16[2,256,36], index: 0, kind: input, shape index: {}]
  %s1 = inlined_call_operand.vmem [shape: bf16[3,36,1024], index: 1, kind: input, shape index: {}]
  %s2 = inlined_call_operand.vmem [shape: f32[3,1,1024], index: 2, kind: input, shape index: {}]
  %s3 = inlined_call_operand.vmem [shape: bf16[3,1024,128], index: 3, kind: input, shape index: {}]
  %s4 = inlined_call_operand.vmem [shape: f32[3,1,128], index: 4, kind: input, shape index: {}]
  %s5 = inlined_call_operand.vmem [shape: bf16[2,256,128], index: 5, kind: output, shape index: {}]
  %s6 = sld [smem:[#allocation0]]
  $region53: #{_pylon_forward.1} parent=0
    _
  %s8 = ssub.s32 1, %s6
  %s9 = scalar_select 0, %s8, %s6
  loop: start=0, step=1, limit=6
  $region2: #{_pylon_forward.1} parent=0 // loop_pre_header
    _
  $region3: #{_pylon_forward.1} parent=0 // loop_header
    %s11 = sphi 0, %s15
    %p12 = scmp.ge.s32.totalorder %s11, 6
    %s18 = sphi 0, %s30
    %s19 = sphi 0, %s26
    %s20 = sphi 0, %s18
    %s21 = sphi 0, %s19
    %s22 = sphi 0, %s20
    %s23 = sphi 0, %s21
    %s35 = sphi 0, %s37
    %s38 = sphi 0, %s35
    %s39 = sphi 0, %s38
    %s55 = sphi 0, %s39
    %s59 = sphi 0, %s59
    %s61 = sphi 0, %s59
    %s62 = sphi 0, %s61
    %s76 = sphi 0, %s62
    %s80 = sphi 0, %s80
    %s82 = sphi 0, %s80
    %s83 = sphi 0, %s82
    %s97 = sphi 0, %s83
    %s101 = sphi 0, %s101
    %s103 = sphi 0, %s101
    %s104 = sphi 0, %s103
    %s118 = sphi 0, %s104
    %s122 = sphi 0, %s122
    %s124 = sphi 0, %s122
    %s125 = sphi 0, %s124
    %s139 = sphi 0, %s125
    %s147 = sphi 0, %s149
    %s150 = sphi 0, %s147
    %s151 = sphi 0, %s150
    %s167 = sphi 0, %s151
  $region4: #{_pylon_forward.1} parent=0 // loop_header_branch
    %14 = sbr.rel (%p12) target = $region8
  $region5: #{_pylon_forward.1} parent=0 // loop_body
    %s16 = ssub.s32 %s11, 1
    %s17 = ssub.s32 %s11, 2
    %s24 = sadd.s32 1, %s19
    %p25 = scmp.ge.s32.totalorder %s24, 2
    %s26 = scalar_select %p25, 0, %s24
    %s27 = sadd.s32 1, %s18
    %s28 = scalar_select %p25, %s27, %s18
    %p29 = scmp.ge.s32.totalorder %s28, 2
    %s30 = scalar_select %p29, 0, %s28
    %s31 = ssub.s32 %s18, %s30
    %s32 = ssub.s32 %s19, %s26
    %s33 = sor.u32 %s31, %s32
    %p34 = scmp.eq.s32.totalorder %s33, 0
    %s36 = sadd.s32 %s35, 1
    %s37 = scalar_select %p34, %s35, %s36
    %p40 = pneg %p34
    %p41 = scmp.eq.s32.totalorder %s11, 3
    %p42 = por %p40, %p41
    %p43 = scmp.ne.s32.totalorder %s35, %s38
    %p44 = scmp.eq.s32.totalorder %s11, 0
    %p45 = por %p43, %p44
    %p46 = scmp.ne.s32.totalorder %s35, %s38
    %p47 = scmp.eq.s32.totalorder %s16, 3
    %p48 = por %p46, %p47
    %p49 = scmp.ne.s32.totalorder %s38, %s39
    %p50 = scmp.eq.s32.totalorder %s16, 0
    %p51 = por %p49, %p50
    %p52 = scmp.ne.s32.totalorder %s38, %s39
    %p53 = scmp.eq.s32.totalorder %s17, 3
    %p54 = por %p52, %p53
    %p56 = scmp.ne.s32.totalorder %s39, %s55
    %p57 = scmp.eq.s32.totalorder %s17, 0
    %p58 = por %p56, %p57
    %s60 = sadd.s32 %s59, 1
    %p63 = scmp.eq.s32.totalorder %s11, 3
    %p64 = scmp.ne.s32.totalorder %s59, %s61
    %p65 = scmp.eq.s32.totalorder %s11, 0
    %p66 = por %p64, %p65
    %p67 = scmp.ne.s32.totalorder %s59, %s61
    %p68 = scmp.eq.s32.totalorder %s16, 3
    %p69 = por %p67, %p68
    %p70 = scmp.ne.s32.totalorder %s61, %s62
    %p71 = scmp.eq.s32.totalorder %s16, 0
    %p72 = por %p70, %p71
    %p73 = scmp.ne.s32.totalorder %s61, %s62
    %p74 = scmp.eq.s32.totalorder %s17, 3
    %p75 = por %p73, %p74
    %p77 = scmp.ne.s32.totalorder %s62, %s76
    %p78 = scmp.eq.s32.totalorder %s17, 0
    %p79 = por %p77, %p78
    %s81 = sadd.s32 %s80, 1
    %p84 = scmp.eq.s32.totalorder %s11, 3
    %p85 = scmp.ne.s32.totalorder %s80, %s82
    %p86 = scmp.eq.s32.totalorder %s11, 0
    %p87 = por %p85, %p86
    %p88 = scmp.ne.s32.totalorder %s80, %s82
    %p89 = scmp.eq.s32.totalorder %s16, 3
    %p90 = por %p88, %p89
    %p91 = scmp.ne.s32.totalorder %s82, %s83
    %p92 = scmp.eq.s32.totalorder %s16, 0
    %p93 = por %p91, %p92
    %p94 = scmp.ne.s32.totalorder %s82, %s83
    %p95 = scmp.eq.s32.totalorder %s17, 3
    %p96 = por %p94, %p95
    %p98 = scmp.ne.s32.totalorder %s83, %s97
    %p99 = scmp.eq.s32.totalorder %s17, 0
    %p100 = por %p98, %p99
    %s102 = sadd.s32 %s101, 1
    %p105 = scmp.eq.s32.totalorder %s11, 3
    %p106 = scmp.ne.s32.totalorder %s101, %s103
    %p107 = scmp.eq.s32.totalorder %s11, 0
    %p108 = por %p106, %p107
    %p109 = scmp.ne.s32.totalorder %s101, %s103
    %p110 = scmp.eq.s32.totalorder %s16, 3
    %p111 = por %p109, %p110
    %p112 = scmp.ne.s32.totalorder %s103, %s104
    %p113 = scmp.eq.s32.totalorder %s16, 0
    %p114 = por %p112, %p113
    %p115 = scmp.ne.s32.totalorder %s103, %s104
    %p116 = scmp.eq.s32.totalorder %s17, 3
    %p117 = por %p115, %p116
    %p119 = scmp.ne.s32.totalorder %s104, %s118
    %p120 = scmp.eq.s32.totalorder %s17, 0
    %p121 = por %p119, %p120
    %s123 = sadd.s32 %s122, 1
    %p126 = scmp.eq.s32.totalorder %s11, 3
    %p127 = scmp.ne.s32.totalorder %s122, %s124
    %p128 = scmp.eq.s32.totalorder %s11, 0
    %p129 = por %p127, %p128
    %p130 = scmp.ne.s32.totalorder %s122, %s124
    %p131 = scmp.eq.s32.totalorder %s16, 3
    %p132 = por %p130, %p131
    %p133 = scmp.ne.s32.totalorder %s124, %s125
    %p134 = scmp.eq.s32.totalorder %s16, 0
    %p135 = por %p133, %p134
    %p136 = scmp.ne.s32.totalorder %s124, %s125
    %p137 = scmp.eq.s32.totalorder %s17, 3
    %p138 = por %p136, %p137
    %p140 = scmp.ne.s32.totalorder %s125, %s139
    %p141 = scmp.eq.s32.totalorder %s17, 0
    %p142 = por %p140, %p141
    %s143 = ssub.s32 %s18, %s30
    %s144 = ssub.s32 %s19, %s26
    %s145 = sor.u32 %s143, %s144
    %p146 = scmp.eq.s32.totalorder %s145, 0
    %s148 = sadd.s32 %s147, 1
    %s149 = scalar_select %p146, %s147, %s148
    %p152 = pneg %p146
    %p153 = scmp.eq.s32.totalorder %s11, 3
    %p154 = por %p152, %p153
    %p155 = scmp.ne.s32.totalorder %s147, %s150
    %p156 = scmp.eq.s32.totalorder %s11, 0
    %p157 = por %p155, %p156
    %p158 = scmp.ne.s32.totalorder %s147, %s150
    %p159 = scmp.eq.s32.totalorder %s16, 3
    %p160 = por %p158, %p159
    %p161 = scmp.ne.s32.totalorder %s150, %s151
    %p162 = scmp.eq.s32.totalorder %s16, 0
    %p163 = por %p161, %p162
    %p164 = scmp.ne.s32.totalorder %s150, %s151
    %p165 = scmp.eq.s32.totalorder %s17, 3
    %p166 = por %p164, %p165
    %p168 = scmp.ne.s32.totalorder %s151, %s167
    %p169 = scmp.eq.s32.totalorder %s17, 0
    %p170 = por %p168, %p169
    %p171 = scmp.le.s32.totalorder 1, %s11
    %p172 = scmp.lt.s32.totalorder %s11, 5
    %p173 = pnand %p171, %p172
    %p174 = pneg %p173
    // Predicated region
    $region9: #{_pylon_forward.1} parent=5 // pred_check
      _
    $region10: #{_pylon_forward.1} parent=5 // pred_check_branch
      %176 = sbr.rel (%p173) target = $region12
    $region11: #{_pylon_forward.1} parent=5 // pred_region
      %s177 = ssub.s32 %s11, 1
      // Predicated region
      $region13: #{_pylon_forward.1} parent=11 // pred_check
        %p178 = pneg %p72
      $region14: #{_pylon_forward.1} parent=11 // pred_check_branch
        %180 = sbr.rel (%p178) target = $region16
      $region15: #{_pylon_forward.1} parent=11 // pred_region
        _
      $region16: #{_pylon_forward.1} parent=11 // pred_fallthru
        _
      // Predicated region
      $region17: #{_pylon_forward.1} parent=11 // pred_check
        %p181 = pneg %p93
      $region18: #{_pylon_forward.1} parent=11 // pred_check_branch
        %183 = sbr.rel (%p181) target = $region20
      $region19: #{_pylon_forward.1} parent=11 // pred_region
        _
      $region20: #{_pylon_forward.1} parent=11 // pred_fallthru
        _
      // Predicated region
      $region21: #{_pylon_forward.1} parent=11 // pred_check
        %p184 = pneg %p114
      $region22: #{_pylon_forward.1} parent=11 // pred_check_branch
        %186 = sbr.rel (%p184) target = $region24
      $region23: #{_pylon_forward.1} parent=11 // pred_region
        _
      $region24: #{_pylon_forward.1} parent=11 // pred_fallthru
        _
      // Predicated region
      $region25: #{_pylon_forward.1} parent=11 // pred_check
        %p187 = pneg %p135
      $region26: #{_pylon_forward.1} parent=11 // pred_check_branch
        %189 = sbr.rel (%p187) target = $region28
      $region27: #{_pylon_forward.1} parent=11 // pred_region
        _
      $region28: #{_pylon_forward.1} parent=11 // pred_fallthru
        _
    $region12: #{_pylon_forward.1} parent=5 // pred_fallthru
      _
    %p190 = scmp.lt.s32.totalorder %s11, 4
    // Predicated region
    $region29: #{_pylon_forward.1} parent=5 // pred_check
      %p191 = pneg %p190
    $region30: #{_pylon_forward.1} parent=5 // pred_check_branch
      %193 = sbr.rel (%p191) target = $region32
    $region31: #{_pylon_forward.1} parent=5 // pred_region
      // Predicated region
      $region33: #{_pylon_forward.1} parent=31 // pred_check
        %p194 = pneg %p45
      $region34: #{_pylon_forward.1} parent=31 // pred_check_branch
        %196 = sbr.rel (%p194) target = $region36
      $region35: #{_pylon_forward.1} parent=31 // pred_region
        %s197 = smul.u32 16, %s19
        %p198 = scmp.lt.s32.totalorder %s18, 1
        %s199 = scalar_select %p198, %s18, 1
        %p200 = scmp.lt.s32.totalorder %s197, 31
        %s201 = scalar_select %p200, %s197, 31
        %s202 = smul.addr %s199, 32
        %s203 = sadd.s32 %s201, %s202
        %s204 = smul.addr %s203, 4
        %s205 = scalar_lea.vmem %s0, %s204
        %s206 = smul.u32 16, %s19
      $region36: #{_pylon_forward.1} parent=31 // pred_fallthru
        _
    $region32: #{_pylon_forward.1} parent=5 // pred_fallthru
      _
    %p207 = scmp.le.s32.totalorder 1, %s11
    %p208 = scmp.lt.s32.totalorder %s11, 5
    %p209 = pnand %p207, %p208
    %p210 = pneg %p209
    // Predicated region
    $region37: #{_pylon_forward.1} parent=5 // pred_check
      _
    $region38: #{_pylon_forward.1} parent=5 // pred_check_branch
      %212 = sbr.rel (%p209) target = $region40
    $region39: #{_pylon_forward.1} parent=5 // pred_region
      %s213 = ssub.s32 %s11, 1
      %s214 = smul.u32 16, %s21
      %p215 = scmp.lt.s32.totalorder %s20, 1
      %s216 = scalar_select %p215, %s20, 1
      %p217 = scmp.lt.s32.totalorder %s214, 31
      %s218 = scalar_select %p217, %s214, 31
      %s219 = smul.addr %s216, 32
      %s220 = sadd.s32 %s218, %s219
      %s221 = smul.addr %s220, 4
      %s222 = scalar_lea.vmem %s0, %s221
      %p223 = pneg %p51
      %p224 = pneg %p48
      %p225 = pneg %p72
      %p226 = pneg %p69
      %p227 = pneg %p93
      %p228 = pneg %p90
      %p229 = pneg %p114
      %p230 = pneg %p111
      %p231 = pneg %p135
      %p232 = pneg %p132
      %p233 = pneg %p163
      %p234 = pneg %p160
      %s235 = smul.u32 16, %s21
      %p236 = scmp.lt.s32.totalorder %s20, 1
      %s237 = scalar_select %p236, %s20, 1
      %p238 = scmp.lt.s32.totalorder %s235, 31
      %s239 = scalar_select %p238, %s235, 31
      %s240 = smul.addr %s237, 32
      %s241 = sadd.s32 %s239, %s240
      %s242 = smul.addr %s241, 4
      %s243 = scalar_lea.vmem %s5, %s242
      %s244 = smul.u32 16, %s21
      %p245 = scmp.lt.s32.totalorder %s20, 1
      %s246 = scalar_select %p245, %s20, 1
      %p247 = scmp.lt.s32.totalorder %s244, 31
      %s248 = scalar_select %p247, %s244, 31
      %s249 = smul.addr %s246, 32
      %s250 = sadd.s32 %s248, %s249
      %s251 = smul.addr %s250, 4
      %s252 = scalar_lea.vmem %s0, %s251
      %s253 = smul.u32 16, %s21
      %s254 = smul.u32 16, %s21
      %p255 = scmp.lt.s32.totalorder %s20, 1
      %s256 = scalar_select %p255, %s20, 1
      %p257 = scmp.lt.s32.totalorder %s254, 31
      %s258 = scalar_select %p257, %s254, 31
      %s259 = smul.addr %s256, 32
      %s260 = sadd.s32 %s258, %s259
      %s261 = smul.addr %s260, 4
      %s262 = scalar_lea.vmem %s5, %s261
      %s263 = smul.u32 16, %s21
      %v265 = vld [vmem:[%s252] sm:$0xf]
      %v266 = vld [vmem:[%s252 + $0x4] sm:$0xf]
      %v267 = vld [vmem:[%s252 + $0x8] sm:$0xf]
      %v268 = vld [vmem:[%s252 + $0xc] sm:$0xf]
      %v269 = vld [vmem:[%s252 + $0x10] sm:$0xf]
      %v270 = vld [vmem:[%s252 + $0x14] sm:$0xf]
      %v271 = vld [vmem:[%s252 + $0x18] sm:$0xf]
      %v272 = vld [vmem:[%s252 + $0x1c] sm:$0xf]
      %v273 = vld [vmem:[%s252 + $0x20] sm:$0xf]
      %v274 = vld [vmem:[%s252 + $0x24] sm:$0xf]
      %v275 = vld [vmem:[%s252 + $0x28] sm:$0xf]
      %v276 = vld [vmem:[%s252 + $0x2c] sm:$0xf]
      %v277 = vld [vmem:[%s252 + $0x30] sm:$0xf]
      %v278 = vld [vmem:[%s252 + $0x34] sm:$0xf]
      %v279 = vld [vmem:[%s252 + $0x38] sm:$0xf]
      %v280 = vld [vmem:[%s252 + $0x3c] sm:$0xf]
      %v281 = vld [vmem:[%s1] sm:$0xff]
      %v282 = vld [vmem:[%s1 + $0x8] sm:$0xff]
      %v283 = vld [vmem:[%s1 + $0x10] sm:$0xff]
      %v284 = vld [vmem:[%s1 + $0x18] sm:$0xff]
      %v285 = vld [vmem:[%s1 + $0x20] sm:$0xff]
      %v286 = vld [vmem:[%s1 + $0x28] sm:$0xff]
      %v287 = vld [vmem:[%s1 + $0x30] sm:$0xff]
      %v288 = vld [vmem:[%s1 + $0x38] sm:$0xff]
      %v289 = vld [vmem:[%s1 + $0x40] sm:$0xff]
      %v290 = vld [vmem:[%s1 + $0x48] sm:$0xff]
      %v291 = vld [vmem:[%s1 + $0x50] sm:$0xff]
      %v292 = vld [vmem:[%s1 + $0x58] sm:$0xff]
      %v293 = vld [vmem:[%s1 + $0x60] sm:$0xff]
      %v294 = vld [vmem:[%s1 + $0x68] sm:$0xff]
      %v295 = vld [vmem:[%s1 + $0x70] sm:$0xff]
      %v296 = vld [vmem:[%s1 + $0x78] sm:$0xff]
      %v297 = vld [vmem:[%s1 + $0x80] sm:$0x33]
      %v298 = vld [vmem:[%s1 + $0x88] sm:$0x33]
      %v299 = vld [vmem:[%s1 + $0x90] sm:$0x33]
      %v300 = vld [vmem:[%s1 + $0x98] sm:$0x33]
      %v301 = vld [vmem:[%s2] sm:$0xff]
      %v303 = vlaneseq
      %v304 = vshrl.u32 %v303, 7
      %v305 = vsub.s32 0, %v304
      %v306 = vrot.slane %v301, %v305
      %v307 = vlaneseq
      %v308 = vshrl.u32 %v307, 7
      %v309 = vsub.s32 1, %v308
      %v310 = vrot.slane %v301, %v309
      %v311 = vlaneseq
      %v312 = vshrl.u32 %v311, 7
      %v313 = vsub.s32 2, %v312
      %v314 = vrot.slane %v301, %v313
      %v315 = vlaneseq
      %v316 = vshrl.u32 %v315, 7
      %v317 = vsub.s32 3, %v316
      %v318 = vrot.slane %v301, %v317
      %v319 = vlaneseq
      %v320 = vshrl.u32 %v319, 7
      %v321 = vsub.s32 4, %v320
      %v322 = vrot.slane %v301, %v321
      %v323 = vlaneseq
      %v324 = vshrl.u32 %v323, 7
      %v325 = vsub.s32 5, %v324
      %v326 = vrot.slane %v301, %v325
      %v327 = vlaneseq
      %v328 = vshrl.u32 %v327, 7
      %v329 = vsub.s32 6, %v328
      %v330 = vrot.slane %v301, %v329
      %v331 = vlaneseq
      %v332 = vshrl.u32 %v331, 7
      %v333 = vsub.s32 7, %v332
      %v334 = vrot.slane %v301, %v333
      %v359 = vunpack.c.l.b16 %v265
      %v360 = vunpack.c.l.b16 %v266
      %v361 = vunpack.c.l.b16 %v267
      %v362 = vunpack.c.l.b16 %v268
      %v363 = vunpack.c.l.b16 %v269
      %v364 = vunpack.c.l.b16 %v270
      %v365 = vunpack.c.l.b16 %v271
      %v366 = vunpack.c.l.b16 %v272
      %v367 = vunpack.c.l.b16 %v273
      %v368 = vunpack.c.l.b16 %v274
      %v369 = vunpack.c.l.b16 %v275
      %v370 = vunpack.c.l.b16 %v276
      %v371 = vunpack.c.l.b16 %v277
      %v372 = vunpack.c.l.b16 %v278
      %v373 = vunpack.c.l.b16 %v279
      %v374 = vunpack.c.l.b16 %v280
      %v375 = vpack.c.b16 %v360, %v359
      %v376 = vpack.c.b16 %v362, %v361
      %v377 = vpack.c.b16 %v364, %v363
      %v378 = vpack.c.b16 %v366, %v365
      %v379 = vpack.c.b16 %v368, %v367
      %v380 = vpack.c.b16 %v370, %v369
      %v381 = vpack.c.b16 %v372, %v371
      %v382 = vpack.c.b16 %v374, %v373
      %v403 = vunpack.c.l.b16 %v281
      %v404 = vunpack.c.h.b16 %v281
      %v405 = vunpack.c.l.b16 %v282
      %v406 = vunpack.c.h.b16 %v282
      %v407 = vunpack.c.l.b16 %v283
      %v408 = vunpack.c.h.b16 %v283
      %v409 = vunpack.c.l.b16 %v284
      %v410 = vunpack.c.h.b16 %v284
      %v411 = vunpack.c.l.b16 %v285
      %v412 = vunpack.c.h.b16 %v285
      %v413 = vunpack.c.l.b16 %v286
      %v414 = vunpack.c.h.b16 %v286
      %v415 = vunpack.c.l.b16 %v287
      %v416 = vunpack.c.h.b16 %v287
      %v417 = vunpack.c.l.b16 %v288
      %v418 = vunpack.c.h.b16 %v288
      %v419 = vunpack.c.l.b16 %v289
      %v420 = vunpack.c.h.b16 %v289
      %v421 = vunpack.c.l.b16 %v290
      %v422 = vunpack.c.h.b16 %v290
      %v423 = vunpack.c.l.b16 %v291
      %v424 = vunpack.c.h.b16 %v291
      %v425 = vunpack.c.l.b16 %v292
      %v426 = vunpack.c.h.b16 %v292
      %v427 = vunpack.c.l.b16 %v293
      %v428 = vunpack.c.h.b16 %v293
      %v429 = vunpack.c.l.b16 %v294
      %v430 = vunpack.c.h.b16 %v294
      %v431 = vunpack.c.l.b16 %v295
      %v432 = vunpack.c.h.b16 %v295
      %v433 = vunpack.c.l.b16 %v296
      %v434 = vunpack.c.h.b16 %v296
      %v435 = vunpack.c.l.b16 %v297
      %v436 = vunpack.c.h.b16 %v297
      %v437 = vunpack.c.l.b16 %v298
      %v438 = vunpack.c.h.b16 %v298
      %v439 = vunpack.c.l.b16 %v299
      %v440 = vunpack.c.h.b16 %v299
      %v441 = vunpack.c.l.b16 %v300
      %v442 = vunpack.c.h.b16 %v300
      %v443 = vpack.c.b16 %v411, %v403
      %v444 = vpack.c.b16 %v412, %v404
      %v445 = vpack.c.b16 %v413, %v405
      %v446 = vpack.c.b16 %v414, %v406
      %v447 = vpack.c.b16 %v415, %v407
      %v448 = vpack.c.b16 %v416, %v408
      %v449 = vpack.c.b16 %v417, %v409
      %v450 = vpack.c.b16 %v418, %v410
      %v451 = vpack.c.b16 %v427, %v419
      %v452 = vpack.c.b16 %v428, %v420
      %v453 = vpack.c.b16 %v429, %v421
      %v454 = vpack.c.b16 %v430, %v422
      %v455 = vpack.c.b16 %v431, %v423
      %v456 = vpack.c.b16 %v432, %v424
      %v457 = vpack.c.b16 %v433, %v425
      %v458 = vpack.c.b16 %v434, %v426
      %v459 = vpack.c.b16 %v435, %v435
      %v460 = vpack.c.b16 %v436, %v436
      %v461 = vpack.c.b16 %v437, %v437
      %v462 = vpack.c.b16 %v438, %v438
      %v463 = vpack.c.b16 %v439, %v439
      %v464 = vpack.c.b16 %v440, %v440
      %v465 = vpack.c.b16 %v441, %v441
      %v466 = vpack.c.b16 %v442, %v442
      %vm483 = vcmask 293888
      %v485 = vsel %vm483, %v375, 0
      %v488 = vsel %vm483, %v376, 0
      %v491 = vsel %vm483, %v377, 0
      %v494 = vsel %vm483, %v378, 0
      %v497 = vsel %vm483, %v379, 0
      %v500 = vsel %vm483, %v380, 0
      %v503 = vsel %vm483, %v381, 0
      %v506 = vsel %vm483, %v382, 0
      %vm508 = vcmask 1041408
      %v510 = vsel %vm508, %v459, 0
      %v513 = vsel %vm508, %v460, 0
      %v516 = vsel %vm508, %v461, 0
      %v519 = vsel %vm508, %v462, 0
      %v522 = vsel %vm508, %v463, 0
      %v525 = vsel %vm508, %v464, 0
      %v528 = vsel %vm508, %v465, 0
      %v531 = vsel %vm508, %v466, 0
      %533 = vmatprep.subr.bf16.mxu0 %v444
      %534 = vmatpush1.bf16.msra.mxu0 %v443
      %535 = vmatprep.subr.bf16.mxu0 %v452
      %536 = vmatpush1.bf16.msra.mxu0 %v451
      %537 = vmatprep.subr.bf16.mxu0 %v513
      %538 = vmatpush1.bf16.msra.mxu0 %v510
      %539 = vmatprep.subr.bf16.mxu0 0
      %540 = vmatpush1.bf16.msra.mxu0 0
      %541 = vmatprep.subr.bf16.mxu0 0
      %542 = vmatpush1.bf16.msra.mxu0 0
      %543 = vmatprep.subr.bf16.mxu0 0
      %544 = vmatpush1.bf16.msra.mxu0 0
      %545 = vmatprep.subr.bf16.mxu0 0
      %546 = vmatpush1.bf16.msra.mxu0 0
      %547 = vmatprep.subr.bf16.mxu0 0
      %548 = vmatpush1.bf16.msra.mxu0 0
      %549 = vmatprep.subr.bf16.mxu0 0
      %550 = vmatpush1.bf16.msra.mxu0 0
      %551 = vmatprep.subr.bf16.mxu0 0
      %552 = vmatpush1.bf16.msra.mxu0 0
      %553 = vmatprep.subr.bf16.mxu0 0
      %554 = vmatpush1.bf16.msra.mxu0 0
      %555 = vmatprep.subr.bf16.mxu0 0
      %556 = vmatpush1.bf16.msra.mxu0 0
      %557 = vmatprep.subr.bf16.mxu0 0
      %558 = vmatpush1.bf16.msra.mxu0 0
      %559 = vmatprep.subr.bf16.mxu0 0
      %560 = vmatpush1.bf16.msra.mxu0 0
      %561 = vmatprep.subr.bf16.mxu0 0
      %562 = vmatpush1.bf16.msra.mxu0 0
      %563 = vmatprep.subr.bf16.mxu0 0
      %564 = vmatpush1.bf16.msra.mxu0 0
      %565 = vmatprep.mubr.bf16.mxu0 0
      %566 = vmatmul.mubr.bf16.gmra.mrb[0].mxu0 %v485
      %v567 = vpop.f32.mrb[0].mxu0
      %v568 = vadd.f32 %v306, %v567
      %v569 = vpop.f32.mrb[0].mxu0
      %v570 = vadd.f32 %v310, %v569
      %v571 = vpop.f32.mrb[0].mxu0
      %v572 = vadd.f32 %v306, %v571
      %v573 = vpop.f32.mrb[0].mxu0
      %v574 = vadd.f32 %v310, %v573
      %575 = vmatprep.mubr.bf16.mxu0 0
      %576 = vmatmul.mubr.bf16.gmra.mrb[0].mxu0 %v488
      %v577 = vpop.f32.mrb[0].mxu0
      %v578 = vadd.f32 %v306, %v577
      %v579 = vpop.f32.mrb[0].mxu0
      %v580 = vadd.f32 %v310, %v579
      %v581 = vpop.f32.mrb[0].mxu0
      %v582 = vadd.f32 %v306, %v581
      %v583 = vpop.f32.mrb[0].mxu0
      %v584 = vadd.f32 %v310, %v583
      %585 = vmatprep.mubr.bf16.mxu0 0
      %586 = vmatmul.mubr.bf16.gmra.mrb[0].mxu0 %v491
      %v587 = vpop.f32.mrb[0].mxu0
      %v588 = vadd.f32 %v306, %v587
      %v589 = vpop.f32.mrb[0].mxu0
      %v590 = vadd.f32 %v310, %v589
      %v591 = vpop.f32.mrb[0].mxu0
      %v592 = vadd.f32 %v306, %v591
      %v593 = vpop.f32.mrb[0].mxu0
      %v594 = vadd.f32 %v310, %v593
      %595 = vmatprep.mubr.bf16.mxu0 0
      %596 = vmatmul.mubr.bf16.gmra.mrb[0].mxu0 %v494
      %v597 = vpop.f32.mrb[0].mxu0
      %v598 = vadd.f32 %v306, %v597
      %v599 = vpop.f32.mrb[0].mxu0
      %v600 = vadd.f32 %v310, %v599
      %v601 = vpop.f32.mrb[0].mxu0
      %v602 = vadd.f32 %v306, %v601
      %v603 = vpop.f32.mrb[0].mxu0
      %v604 = vadd.f32 %v310, %v603
      %605 = vmatprep.mubr.bf16.mxu0 0
      %606 = vmatmul.mubr.bf16.gmra.mrb[0].mxu0 %v497
      %v607 = vpop.f32.mrb[0].mxu0
      %v608 = vadd.f32 %v306, %v607
      %v609 = vpop.f32.mrb[0].mxu0
      %v610 = vadd.f32 %v310, %v609
      %v611 = vpop.f32.mrb[0].mxu0
      %v612 = vadd.f32 %v306, %v611
      %v613 = vpop.f32.mrb[0].mxu0
      %v614 = vadd.f32 %v310, %v613
      %615 = vmatprep.mubr.bf16.mxu0 0
      %616 = vmatmul.mubr.bf16.gmra.mrb[0].mxu0 %v500
      %v617 = vpop.f32.mrb[0].mxu0
      %v618 = vadd.f32 %v306, %v617
      %v619 = vpop.f32.mrb[0].mxu0
      %v620 = vadd.f32 %v310, %v619
      %v621 = vpop.f32.mrb[0].mxu0
      %v622 = vadd.f32 %v306, %v621
      %v623 = vpop.f32.mrb[0].mxu0
      %v624 = vadd.f32 %v310, %v623
      %625 = vmatprep.mubr.bf16.mxu0 0
      %626 = vmatmul.mubr.bf16.gmra.mrb[0].mxu0 %v503
      %v627 = vpop.f32.mrb[0].mxu0
      %v628 = vadd.f32 %v306, %v627
      %v629 = vpop.f32.mrb[0].mxu0
      %v630 = vadd.f32 %v310, %v629
      %v631 = vpop.f32.mrb[0].mxu0
      %v632 = vadd.f32 %v306, %v631
      %v633 = vpop.f32.mrb[0].mxu0
      %v634 = vadd.f32 %v310, %v633
      %635 = vmatprep.mubr.bf16.mxu0 0
      %636 = vmatmul.mubr.bf16.gmra.mrb[0].mxu0 %v506
      %v637 = vpop.f32.mrb[0].mxu0
      %v638 = vadd.f32 %v306, %v637
      %v639 = vpop.f32.mrb[0].mxu0
      %v640 = vadd.f32 %v310, %v639
      %v641 = vpop.f32.mrb[0].mxu0
      %v642 = vadd.f32 %v306, %v641
      %v643 = vpop.f32.mrb[0].mxu0
      %v644 = vadd.f32 %v310, %v643
      %645 = vdwg.mxu0
      %646 = vmatprep.subr.bf16.mxu0 %v446
      %647 = vmatpush1.bf16.msra.mxu0 %v445
      %648 = vmatprep.subr.bf16.mxu0 %v454
      %649 = vmatpush1.bf16.msra.mxu0 %v453
      %650 = vmatprep.subr.bf16.mxu0 %v519
      %651 = vmatpush1.bf16.msra.mxu0 %v516
      %652 = vmatprep.subr.bf16.mxu0 0
      %653 = vmatpush1.bf16.msra.mxu0 0
      %654 = vmatprep.subr.bf16.mxu0 0
      %655 = vmatpush1.bf16.msra.mxu0 0
      %656 = vmatprep.subr.bf16.mxu0 0
      %657 = vmatpush1.bf16.msra.mxu0 0
      %658 = vmatprep.subr.bf16.mxu0 0
      %659 = vmatpush1.bf16.msra.mxu0 0
      %660 = vmatprep.subr.bf16.mxu0 0
      %661 = vmatpush1.bf16.msra.mxu0 0
      %662 = vmatprep.subr.bf16.mxu0 0
      %663 = vmatpush1.bf16.msra.mxu0 0
      %664 = vmatprep.subr.bf16.mxu0 0
      %665 = vmatpush1.bf16.msra.mxu0 0
      %666 = vmatprep.subr.bf16.mxu0 0
      %667 = vmatpush1.bf16.msra.mxu0 0
      %668 = vmatprep.subr.bf16.mxu0 0
      %669 = vmatpush1.bf16.msra.mxu0 0
      %670 = vmatprep.subr.bf16.mxu0 0
      %671 = vmatpush1.bf16.msra.mxu0 0
      %672 = vmatprep.subr.bf16.mxu0 0
      %673 = vmatpush1.bf16.msra.mxu0 0
      %674 = vmatprep.subr.bf16.mxu0 0
      %675 = vmatpush1.bf16.msra.mxu0 0
      %676 = vmatprep.subr.bf16.mxu0 0
      %677 = vmatpush1.bf16.msra.mxu0 0
      %678 = vmatprep.mubr.bf16.mxu0 0
      %679 = vmatmul.mubr.bf16.gmra.mrb[0].mxu0 %v485
      %v680 = vpop.f32.mrb[0].mxu0
      %v681 = vadd.f32 %v314, %v680
      %v682 = vpop.f32.mrb[0].mxu0
      %v683 = vadd.f32 %v318, %v682
      %v684 = vpop.f32.mrb[0].mxu0
      %v685 = vadd.f32 %v314, %v684
      %v686 = vpop.f32.mrb[0].mxu0
      %v687 = vadd.f32 %v318, %v686
      %688 = vmatprep.mubr.bf16.mxu0 0
      %689 = vmatmul.mubr.bf16.gmra.mrb[0].mxu0 %v488
      %v690 = vpop.f32.mrb[0].mxu0
      %v691 = vadd.f32 %v314, %v690
      %v692 = vpop.f32.mrb[0].mxu0
      %v693 = vadd.f32 %v318, %v692
      %v694 = vpop.f32.mrb[0].mxu0
      %v695 = vadd.f32 %v314, %v694
      %v696 = vpop.f32.mrb[0].mxu0
      %v697 = vadd.f32 %v318, %v696
      %698 = vmatprep.mubr.bf16.mxu0 0
      %699 = vmatmul.mubr.bf16.gmra.mrb[0].mxu0 %v491
      %v700 = vpop.f32.mrb[0].mxu0
      %v701 = vadd.f32 %v314, %v700
      %v702 = vpop.f32.mrb[0].mxu0
      %v703 = vadd.f32 %v318, %v702
      %v704 = vpop.f32.mrb[0].mxu0
      %v705 = vadd.f32 %v314, %v704
      %v706 = vpop.f32.mrb[0].mxu0
      %v707 = vadd.f32 %v318, %v706
      %708 = vmatprep.mubr.bf16.mxu0 0
      %709 = vmatmul.mubr.bf16.gmra.mrb[0].mxu0 %v494
      %v710 = vpop.f32.mrb[0].mxu0
      %v711 = vadd.f32 %v314, %v710
      %v712 = vpop.f32.mrb[0].mxu0
      %v713 = vadd.f32 %v318, %v712
      %v714 = vpop.f32.mrb[0].mxu0
      %v715 = vadd.f32 %v314, %v714
      %v716 = vpop.f32.mrb[0].mxu0
      %v717 = vadd.f32 %v318, %v716
      %718 = vmatprep.mubr.bf16.mxu0 0
      %719 = vmatmul.mubr.bf16.gmra.mrb[0].mxu0 %v497
      %v720 = vpop.f32.mrb[0].mxu0
      %v721 = vadd.f32 %v314, %v720
      %v722 = vpop.f32.mrb[0].mxu0
      %v723 = vadd.f32 %v318, %v722
      %v724 = vpop.f32.mrb[0].mxu0
      %v725 = vadd.f32 %v314, %v724
      %v726 = vpop.f32.mrb[0].mxu0
      %v727 = vadd.f32 %v318, %v726
      %728 = vmatprep.mubr.bf16.mxu0 0
      %729 = vmatmul.mubr.bf16.gmra.mrb[0].mxu0 %v500
      %v730 = vpop.f32.mrb[0].mxu0
      %v731 = vadd.f32 %v314, %v730
      %v732 = vpop.f32.mrb[0].mxu0
      %v733 = vadd.f32 %v318, %v732
      %v734 = vpop.f32.mrb[0].mxu0
      %v735 = vadd.f32 %v314, %v734
      %v736 = vpop.f32.mrb[0].mxu0
      %v737 = vadd.f32 %v318, %v736
      %738 = vmatprep.mubr.bf16.mxu0 0
      %739 = vmatmul.mubr.bf16.gmra.mrb[0].mxu0 %v503
      %v740 = vpop.f32.mrb[0].mxu0
      %v741 = vadd.f32 %v314, %v740
      %v742 = vpop.f32.mrb[0].mxu0
      %v743 = vadd.f32 %v318, %v742
      %v744 = vpop.f32.mrb[0].mxu0
      %v745 = vadd.f32 %v314, %v744
      %v746 = vpop.f32.mrb[0].mxu0
      %v747 = vadd.f32 %v318, %v746
      %748 = vmatprep.mubr.bf16.mxu0 0
      %749 = vmatmul.mubr.bf16.gmra.mrb[0].mxu0 %v506
      %v750 = vpop.f32.mrb[0].mxu0
      %v751 = vadd.f32 %v314, %v750
      %v752 = vpop.f32.mrb[0].mxu0
      %v753 = vadd.f32 %v318, %v752
      %v754 = vpop.f32.mrb[0].mxu0
      %v755 = vadd.f32 %v314, %v754
      %v756 = vpop.f32.mrb[0].mxu0
      %v757 = vadd.f32 %v318, %v756
      %758 = vdwg.mxu0
      %759 = vmatprep.subr.bf16.mxu0 %v448
      %760 = vmatpush1.bf16.msra.mxu0 %v447
      %761 = vmatprep.subr.bf16.mxu0 %v456
      %762 = vmatpush1.bf16.msra.mxu0 %v455
      %763 = vmatprep.subr.bf16.mxu0 %v525
      %764 = vmatpush1.bf16.msra.mxu0 %v522
      %765 = vmatprep.subr.bf16.mxu0 0
      %766 = vmatpush1.bf16.msra.mxu0 0
      %767 = vmatprep.subr.bf16.mxu0 0
      %768 = vmatpush1.bf16.msra.mxu0 0
      %769 = vmatprep.subr.bf16.mxu0 0
      %770 = vmatpush1.bf16.msra.mxu0 0
      %771 = vmatprep.subr.bf16.mxu0 0
      %772 = vmatpush1.bf16.msra.mxu0 0
      %773 = vmatprep.subr.bf16.mxu0 0
      %774 = vmatpush1.bf16.msra.mxu0 0
      %775 = vmatprep.subr.bf16.mxu0 0
      %776 = vmatpush1.bf16.msra.mxu0 0
      %777 = vmatprep.subr.bf16.mxu0 0
      %778 = vmatpush1.bf16.msra.mxu0 0
      %779 = vmatprep.subr.bf16.mxu0 0
      %780 = vmatpush1.bf16.msra.mxu0 0
      %781 = vmatprep.subr.bf16.mxu0 0
      %782 = vmatpush1.bf16.msra.mxu0 0
      %783 = vmatprep.subr.bf16.mxu0 0
      %784 = vmatpush1.bf16.msra.mxu0 0
      %785 = vmatprep.subr.bf16.mxu0 0
      %786 = vmatpush1.bf16.msra.mxu0 0
      %787 = vmatprep.subr.bf16.mxu0 0
      %788 = vmatpush1.bf16.msra.mxu0 0
      %789 = vmatprep.subr.bf16.mxu0 0
      %790 = vmatpush1.bf16.msra.mxu0 0
      %791 = vmatprep.mubr.bf16.mxu0 0
      %792 = vmatmul.mubr.bf16.gmra.mrb[0].mxu0 %v485
      %v793 = vpop.f32.mrb[0].mxu0
      %v794 = vadd.f32 %v322, %v793
      %v795 = vpop.f32.mrb[0].mxu0
      %v796 = vadd.f32 %v326, %v795
      %v797 = vpop.f32.mrb[0].mxu0
      %v798 = vadd.f32 %v322, %v797
      %v799 = vpop.f32.mrb[0].mxu0
      %v800 = vadd.f32 %v326, %v799
      %801 = vmatprep.mubr.bf16.mxu0 0
      %802 = vmatmul.mubr.bf16.gmra.mrb[0].mxu0 %v488
      %v803 = vpop.f32.mrb[0].mxu0
      %v804 = vadd.f32 %v322, %v803
      %v805 = vpop.f32.mrb[0].mxu0
      %v806 = vadd.f32 %v326, %v805
      %v807 = vpop.f32.mrb[0].mxu0
      %v808 = vadd.f32 %v322, %v807
      %v809 = vpop.f32.mrb[0].mxu0
      %v810 = vadd.f32 %v326, %v809
      %811 = vmatprep.mubr.bf16.mxu0 0
      %812 = vmatmul.mubr.bf16.gmra.mrb[0].mxu0 %v491
      %v813 = vpop.f32.mrb[0].mxu0
      %v814 = vadd.f32 %v322, %v813
      %v815 = vpop.f32.mrb[0].mxu0
      %v816 = vadd.f32 %v326, %v815
      %v817 = vpop.f32.mrb[0].mxu0
      %v818 = vadd.f32 %v322, %v817
      %v819 = vpop.f32.mrb[0].mxu0
      %v820 = vadd.f32 %v326, %v819
      %821 = vmatprep.mubr.bf16.mxu0 0
      %822 = vmatmul.mubr.bf16.gmra.mrb[0].mxu0 %v494
      %v823 = vpop.f32.mrb[0].mxu0
      %v824 = vadd.f32 %v322, %v823
      %v825 = vpop.f32.mrb[0].mxu0
      %v826 = vadd.f32 %v326, %v825
      %v827 = vpop.f32.mrb[0].mxu0
      %v828 = vadd.f32 %v322, %v827
      %v829 = vpop.f32.mrb[0].mxu0
      %v830 = vadd.f32 %v326, %v829
      %831 = vmatprep.mubr.bf16.mxu0 0
      %832 = vmatmul.mubr.bf16.gmra.mrb[0].mxu0 %v497
      %v833 = vpop.f32.mrb[0].mxu0
      %v834 = vadd.f32 %v322, %v833
      %v835 = vpop.f32.mrb[0].mxu0
      %v836 = vadd.f32 %v326, %v835
      %v837 = vpop.f32.mrb[0].mxu0
      %v838 = vadd.f32 %v322, %v837
      %v839 = vpop.f32.mrb[0].mxu0
      %v840 = vadd.f32 %v326, %v839
      %841 = vmatprep.mubr.bf16.mxu0 0
      %842 = vmatmul.mubr.bf16.gmra.mrb[0].mxu0 %v500
      %v843 = vpop.f32.mrb[0].mxu0
      %v844 = vadd.f32 %v322, %v843
      %v845 = vpop.f32.mrb[0].mxu0
      %v846 = vadd.f32 %v326, %v845
      %v847 = vpop.f32.mrb[0].mxu0
      %v848 = vadd.f32 %v322, %v847
      %v849 = vpop.f32.mrb[0].mxu0
      %v850 = vadd.f32 %v326, %v849
      %851 = vmatprep.mubr.bf16.mxu0 0
      %852 = vmatmul.mubr.bf16.gmra.mrb[0].mxu0 %v503
      %v853 = vpop.f32.mrb[0].mxu0
      %v854 = vadd.f32 %v322, %v853
      %v855 = vpop.f32.mrb[0].mxu0
      %v856 = vadd.f32 %v326, %v855
      %v857 = vpop.f32.mrb[0].mxu0
      %v858 = vadd.f32 %v322, %v857
      %v859 = vpop.f32.mrb[0].mxu0
      %v860 = vadd.f32 %v326, %v859
      %861 = vmatprep.mubr.bf16.mxu0 0
      %862 = vmatmul.mubr.bf16.gmra.mrb[0].mxu0 %v506
      %v863 = vpop.f32.mrb[0].mxu0
      %v864 = vadd.f32 %v322, %v863
      %v865 = vpop.f32.mrb[0].mxu0
      %v866 = vadd.f32 %v326, %v865
      %v867 = vpop.f32.mrb[0].mxu0
      %v868 = vadd.f32 %v322, %v867
      %v869 = vpop.f32.mrb[0].mxu0
      %v870 = vadd.f32 %v326, %v869
      %871 = vdwg.mxu0
      %872 = vmatprep.subr.bf16.mxu0 %v450
      %873 = vmatpush1.bf16.msra.mxu0 %v449
      %874 = vmatprep.subr.bf16.mxu0 %v458
      %875 = vmatpush1.bf16.msra.mxu0 %v457
      %876 = vmatprep.subr.bf16.mxu0 %v531
      %877 = vmatpush1.bf16.msra.mxu0 %v528
      %878 = vmatprep.subr.bf16.mxu0 0
      %879 = vmatpush1.bf16.msra.mxu0 0
      %880 = vmatprep.subr.bf16.mxu0 0
      %881 = vmatpush1.bf16.msra.mxu0 0
      %882 = vmatprep.subr.bf16.mxu0 0
      %883 = vmatpush1.bf16.msra.mxu0 0
      %884 = vmatprep.subr.bf16.mxu0 0
      %885 = vmatpush1.bf16.msra.mxu0 0
      %886 = vmatprep.subr.bf16.mxu0 0
      %887 = vmatpush1.bf16.msra.mxu0 0
      %888 = vmatprep.subr.bf16.mxu0 0
      %889 = vmatpush1.bf16.msra.mxu0 0
      %890 = vmatprep.subr.bf16.mxu0 0
      %891 = vmatpush1.bf16.msra.mxu0 0
      %892 = vmatprep.subr.bf16.mxu0 0
      %893 = vmatpush1.bf16.msra.mxu0 0
      %894 = vmatprep.subr.bf16.mxu0 0
      %895 = vmatpush1.bf16.msra.mxu0 0
      %896 = vmatprep.subr.bf16.mxu0 0
      %897 = vmatpush1.bf16.msra.mxu0 0
      %898 = vmatprep.subr.bf16.mxu0 0
      %899 = vmatpush1.bf16.msra.mxu0 0
      %900 = vmatprep.subr.bf16.mxu0 0
      %901 = vmatpush1.bf16.msra.mxu0 0
      %902 = vmatprep.subr.bf16.mxu0 0
      %903 = vmatpush1.bf16.msra.mxu0 0
      %904 = vmatprep.mubr.bf16.mxu0 0
      %905 = vmatmul.mubr.bf16.gmra.mrb[0].mxu0 %v485
      %v906 = vpop.f32.mrb[0].mxu0
      %v907 = vadd.f32 %v330, %v906
      %v908 = vpop.f32.mrb[0].mxu0
      %v909 = vadd.f32 %v334, %v908
      %v910 = vpop.f32.mrb[0].mxu0
      %v911 = vadd.f32 %v330, %v910
      %v912 = vpop.f32.mrb[0].mxu0
      %v913 = vadd.f32 %v334, %v912
      %914 = vmatprep.mubr.bf16.mxu0 0
      %915 = vmatmul.mubr.bf16.gmra.mrb[0].mxu0 %v488
      %v916 = vpop.f32.mrb[0].mxu0
      %v917 = vadd.f32 %v330, %v916
      %v918 = vpop.f32.mrb[0].mxu0
      %v919 = vadd.f32 %v334, %v918
      %v920 = vpop.f32.mrb[0].mxu0
      %v921 = vadd.f32 %v330, %v920
      %v922 = vpop.f32.mrb[0].mxu0
      %v923 = vadd.f32 %v334, %v922
      %924 = vmatprep.mubr.bf16.mxu0 0
      %925 = vmatmul.mubr.bf16.gmra.mrb[0].mxu0 %v491
      %v926 = vpop.f32.mrb[0].mxu0
      %v927 = vadd.f32 %v330, %v926
      %v928 = vpop.f32.mrb[0].mxu0
      %v929 = vadd.f32 %v334, %v928
      %v930 = vpop.f32.mrb[0].mxu0
      %v931 = vadd.f32 %v330, %v930
      %v932 = vpop.f32.mrb[0].mxu0
      %v933 = vadd.f32 %v334, %v932
      %934 = vmatprep.mubr.bf16.mxu0 0
      %935 = vmatmul.mubr.bf16.gmra.mrb[0].mxu0 %v494
      %v936 = vpop.f32.mrb[0].mxu0
      %v937 = vadd.f32 %v330, %v936
      %v938 = vpop.f32.mrb[0].mxu0
      %v939 = vadd.f32 %v334, %v938
      %v940 = vpop.f32.mrb[0].mxu0
      %v941 = vadd.f32 %v330, %v940
      %v942 = vpop.f32.mrb[0].mxu0
      %v943 = vadd.f32 %v334, %v942
      %944 = vmatprep.mubr.bf16.mxu0 0
      %945 = vmatmul.mubr.bf16.gmra.mrb[0].mxu0 %v497
      %v946 = vpop.f32.mrb[0].mxu0
      %v947 = vadd.f32 %v330, %v946
      %v948 = vpop.f32.mrb[0].mxu0
      %v949 = vadd.f32 %v334, %v948
      %v950 = vpop.f32.mrb[0].mxu0
      %v951 = vadd.f32 %v330, %v950
      %v952 = vpop.f32.mrb[0].mxu0
      %v953 = vadd.f32 %v334, %v952
      %954 = vmatprep.mubr.bf16.mxu0 0
      %955 = vmatmul.mubr.bf16.gmra.mrb[0].mxu0 %v500
      %v956 = vpop.f32.mrb[0].mxu0
      %v957 = vadd.f32 %v330, %v956
      %v958 = vpop.f32.mrb[0].mxu0
      %v959 = vadd.f32 %v334, %v958
      %v960 = vpop.f32.mrb[0].mxu0
      %v961 = vadd.f32 %v330, %v960
      %v962 = vpop.f32.mrb[0].mxu0
      %v963 = vadd.f32 %v334, %v962
      %964 = vmatprep.mubr.bf16.mxu0 0
      %965 = vmatmul.mubr.bf16.gmra.mrb[0].mxu0 %v503
      %v966 = vpop.f32.mrb[0].mxu0
      %v967 = vadd.f32 %v330, %v966
      %v968 = vpop.f32.mrb[0].mxu0
      %v969 = vadd.f32 %v334, %v968
      %v970 = vpop.f32.mrb[0].mxu0
      %v971 = vadd.f32 %v330, %v970
      %v972 = vpop.f32.mrb[0].mxu0
      %v973 = vadd.f32 %v334, %v972
      %974 = vmatprep.mubr.bf16.mxu0 0
      %975 = vmatmul.mubr.bf16.gmra.mrb[0].mxu0 %v506
      %v976 = vpop.f32.mrb[0].mxu0
      %v977 = vadd.f32 %v330, %v976
      %v978 = vpop.f32.mrb[0].mxu0
      %v979 = vadd.f32 %v334, %v978
      %v980 = vpop.f32.mrb[0].mxu0
      %v981 = vadd.f32 %v330, %v980
      %v982 = vpop.f32.mrb[0].mxu0
      %v983 = vadd.f32 %v334, %v982
      %984 = vdwg.mxu0
      %v985 = vmax.f32 %v568, 0.0
      %v986 = vmax.f32 %v570, 0.0
      %v987 = vmax.f32 %v681, 0.0
      %v988 = vmax.f32 %v683, 0.0
      %v989 = vmax.f32 %v794, 0.0
      %v990 = vmax.f32 %v796, 0.0
      %v991 = vmax.f32 %v907, 0.0
      %v992 = vmax.f32 %v909, 0.0
      %v993 = vmax.f32 %v572, 0.0
      %v994 = vmax.f32 %v574, 0.0
      %v995 = vmax.f32 %v685, 0.0
      %v996 = vmax.f32 %v687, 0.0
      %v997 = vmax.f32 %v798, 0.0
      %v998 = vmax.f32 %v800, 0.0
      %v999 = vmax.f32 %v911, 0.0
      %v1000 = vmax.f32 %v913, 0.0
      %v1001 = vmax.f32 %v578, 0.0
      %v1002 = vmax.f32 %v580, 0.0
      %v1003 = vmax.f32 %v691, 0.0
      %v1004 = vmax.f32 %v693, 0.0
      %v1005 = vmax.f32 %v804, 0.0
      %v1006 = vmax.f32 %v806, 0.0
      %v1007 = vmax.f32 %v917, 0.0
      %v1008 = vmax.f32 %v919, 0.0
      %v1009 = vmax.f32 %v582, 0.0
      %v1010 = vmax.f32 %v584, 0.0
      %v1011 = vmax.f32 %v695, 0.0
      %v1012 = vmax.f32 %v697, 0.0
      %v1013 = vmax.f32 %v808, 0.0
      %v1014 = vmax.f32 %v810, 0.0
      %v1015 = vmax.f32 %v921, 0.0
      %v1016 = vmax.f32 %v923, 0.0
      %v1017 = vmax.f32 %v588, 0.0
      %v1018 = vmax.f32 %v590, 0.0
      %v1019 = vmax.f32 %v701, 0.0
      %v1020 = vmax.f32 %v703, 0.0
      %v1021 = vmax.f32 %v814, 0.0
      %v1022 = vmax.f32 %v816, 0.0
      %v1023 = vmax.f32 %v927, 0.0
      %v1024 = vmax.f32 %v929, 0.0
      %v1025 = vmax.f32 %v592, 0.0
      %v1026 = vmax.f32 %v594, 0.0
      %v1027 = vmax.f32 %v705, 0.0
      %v1028 = vmax.f32 %v707, 0.0
      %v1029 = vmax.f32 %v818, 0.0
      %v1030 = vmax.f32 %v820, 0.0
      %v1031 = vmax.f32 %v931, 0.0
      %v1032 = vmax.f32 %v933, 0.0
      %v1033 = vmax.f32 %v598, 0.0
      %v1034 = vmax.f32 %v600, 0.0
      %v1035 = vmax.f32 %v711, 0.0
      %v1036 = vmax.f32 %v713, 0.0
      %v1037 = vmax.f32 %v824, 0.0
      %v1038 = vmax.f32 %v826, 0.0
      %v1039 = vmax.f32 %v937, 0.0
      %v1040 = vmax.f32 %v939, 0.0
      %v1041 = vmax.f32 %v602, 0.0
      %v1042 = vmax.f32 %v604, 0.0
      %v1043 = vmax.f32 %v715, 0.0
      %v1044 = vmax.f32 %v717, 0.0
      %v1045 = vmax.f32 %v828, 0.0
      %v1046 = vmax.f32 %v830, 0.0
      %v1047 = vmax.f32 %v941, 0.0
      %v1048 = vmax.f32 %v943, 0.0
      %v1049 = vmax.f32 %v608, 0.0
      %v1050 = vmax.f32 %v610, 0.0
      %v1051 = vmax.f32 %v721, 0.0
      %v1052 = vmax.f32 %v723, 0.0
      %v1053 = vmax.f32 %v834, 0.0
      %v1054 = vmax.f32 %v836, 0.0
      %v1055 = vmax.f32 %v947, 0.0
      %v1056 = vmax.f32 %v949, 0.0
      %v1057 = vmax.f32 %v612, 0.0
      %v1058 = vmax.f32 %v614, 0.0
      %v1059 = vmax.f32 %v725, 0.0
      %v1060 = vmax.f32 %v727, 0.0
      %v1061 = vmax.f32 %v838, 0.0
      %v1062 = vmax.f32 %v840, 0.0
      %v1063 = vmax.f32 %v951, 0.0
      %v1064 = vmax.f32 %v953, 0.0
      %v1065 = vmax.f32 %v618, 0.0
      %v1066 = vmax.f32 %v620, 0.0
      %v1067 = vmax.f32 %v731, 0.0
      %v1068 = vmax.f32 %v733, 0.0
      %v1069 = vmax.f32 %v844, 0.0
      %v1070 = vmax.f32 %v846, 0.0
      %v1071 = vmax.f32 %v957, 0.0
      %v1072 = vmax.f32 %v959, 0.0
      %v1073 = vmax.f32 %v622, 0.0
      %v1074 = vmax.f32 %v624, 0.0
      %v1075 = vmax.f32 %v735, 0.0
      %v1076 = vmax.f32 %v737, 0.0
      %v1077 = vmax.f32 %v848, 0.0
      %v1078 = vmax.f32 %v850, 0.0
      %v1079 = vmax.f32 %v961, 0.0
      %v1080 = vmax.f32 %v963, 0.0
      %v1081 = vmax.f32 %v628, 0.0
      %v1082 = vmax.f32 %v630, 0.0
      %v1083 = vmax.f32 %v741, 0.0
      %v1084 = vmax.f32 %v743, 0.0
      %v1085 = vmax.f32 %v854, 0.0
      %v1086 = vmax.f32 %v856, 0.0
      %v1087 = vmax.f32 %v967, 0.0
      %v1088 = vmax.f32 %v969, 0.0
      %v1089 = vmax.f32 %v632, 0.0
      %v1090 = vmax.f32 %v634, 0.0
      %v1091 = vmax.f32 %v745, 0.0
      %v1092 = vmax.f32 %v747, 0.0
      %v1093 = vmax.f32 %v858, 0.0
      %v1094 = vmax.f32 %v860, 0.0
      %v1095 = vmax.f32 %v971, 0.0
      %v1096 = vmax.f32 %v973, 0.0
      %v1097 = vmax.f32 %v638, 0.0
      %v1098 = vmax.f32 %v640, 0.0
      %v1099 = vmax.f32 %v751, 0.0
      %v1100 = vmax.f32 %v753, 0.0
      %v1101 = vmax.f32 %v864, 0.0
      %v1102 = vmax.f32 %v866, 0.0
      %v1103 = vmax.f32 %v977, 0.0
      %v1104 = vmax.f32 %v979, 0.0
      %v1105 = vmax.f32 %v642, 0.0
      %v1106 = vmax.f32 %v644, 0.0
      %v1107 = vmax.f32 %v755, 0.0
      %v1108 = vmax.f32 %v757, 0.0
      %v1109 = vmax.f32 %v868, 0.0
      %v1110 = vmax.f32 %v870, 0.0
      %v1111 = vmax.f32 %v981, 0.0
      %v1112 = vmax.f32 %v983, 0.0
      %v1113 = vpack.c.bf16 %v993, %v985
      %v1114 = vpack.c.bf16 %v994, %v986
      %v1115 = vpack.c.bf16 %v995, %v987
      %v1116 = vpack.c.bf16 %v996, %v988
      %v1117 = vpack.c.bf16 %v997, %v989
      %v1118 = vpack.c.bf16 %v998, %v990
      %v1119 = vpack.c.bf16 %v999, %v991
      %v1120 = vpack.c.bf16 %v1000, %v992
      %v1121 = vpack.c.bf16 %v1009, %v1001
      %v1122 = vpack.c.bf16 %v1010, %v1002
      %v1123 = vpack.c.bf16 %v1011, %v1003
      %v1124 = vpack.c.bf16 %v1012, %v1004
      %v1125 = vpack.c.bf16 %v1013, %v1005
      %v1126 = vpack.c.bf16 %v1014, %v1006
      %v1127 = vpack.c.bf16 %v1015, %v1007
      %v1128 = vpack.c.bf16 %v1016, %v1008
      %v1129 = vpack.c.bf16 %v1025, %v1017
      %v1130 = vpack.c.bf16 %v1026, %v1018
      %v1131 = vpack.c.bf16 %v1027, %v1019
      %v1132 = vpack.c.bf16 %v1028, %v1020
      %v1133 = vpack.c.bf16 %v1029, %v1021
      %v1134 = vpack.c.bf16 %v1030, %v1022
      %v1135 = vpack.c.bf16 %v1031, %v1023
      %v1136 = vpack.c.bf16 %v1032, %v1024
      %v1137 = vpack.c.bf16 %v1041, %v1033
      %v1138 = vpack.c.bf16 %v1042, %v1034
      %v1139 = vpack.c.bf16 %v1043, %v1035
      %v1140 = vpack.c.bf16 %v1044, %v1036
      %v1141 = vpack.c.bf16 %v1045, %v1037
      %v1142 = vpack.c.bf16 %v1046, %v1038
      %v1143 = vpack.c.bf16 %v1047, %v1039
      %v1144 = vpack.c.bf16 %v1048, %v1040
      %v1145 = vpack.c.bf16 %v1057, %v1049
      %v1146 = vpack.c.bf16 %v1058, %v1050
      %v1147 = vpack.c.bf16 %v1059, %v1051
      %v1148 = vpack.c.bf16 %v1060, %v1052
      %v1149 = vpack.c.bf16 %v1061, %v1053
      %v1150 = vpack.c.bf16 %v1062, %v1054
      %v1151 = vpack.c.bf16 %v1063, %v1055
      %v1152 = vpack.c.bf16 %v1064, %v1056
      %v1153 = vpack.c.bf16 %v1073, %v1065
      %v1154 = vpack.c.bf16 %v1074, %v1066
      %v1155 = vpack.c.bf16 %v1075, %v1067
      %v1156 = vpack.c.bf16 %v1076, %v1068
      %v1157 = vpack.c.bf16 %v1077, %v1069
      %v1158 = vpack.c.bf16 %v1078, %v1070
      %v1159 = vpack.c.bf16 %v1079, %v1071
      %v1160 = vpack.c.bf16 %v1080, %v1072
      %v1161 = vpack.c.bf16 %v1089, %v1081
      %v1162 = vpack.c.bf16 %v1090, %v1082
      %v1163 = vpack.c.bf16 %v1091, %v1083
      %v1164 = vpack.c.bf16 %v1092, %v1084
      %v1165 = vpack.c.bf16 %v1093, %v1085
      %v1166 = vpack.c.bf16 %v1094, %v1086
      %v1167 = vpack.c.bf16 %v1095, %v1087
      %v1168 = vpack.c.bf16 %v1096, %v1088
      %v1169 = vpack.c.bf16 %v1105, %v1097
      %v1170 = vpack.c.bf16 %v1106, %v1098
      %v1171 = vpack.c.bf16 %v1107, %v1099
      %v1172 = vpack.c.bf16 %v1108, %v1100
      %v1173 = vpack.c.bf16 %v1109, %v1101
      %v1174 = vpack.c.bf16 %v1110, %v1102
      %v1175 = vpack.c.bf16 %v1111, %v1103
      %v1176 = vpack.c.bf16 %v1112, %v1104
      %v1177 = vld [vmem:[%s3] sm:$0xf]
      %v1178 = vld [vmem:[%s3 + $0x4] sm:$0xf]
      %v1179 = vld [vmem:[%s3 + $0x8] sm:$0xf]
      %v1180 = vld [vmem:[%s3 + $0xc] sm:$0xf]
      %v1181 = vld [vmem:[%s3 + $0x10] sm:$0xf]
      %v1182 = vld [vmem:[%s3 + $0x14] sm:$0xf]
      %v1183 = vld [vmem:[%s3 + $0x18] sm:$0xf]
      %v1184 = vld [vmem:[%s3 + $0x1c] sm:$0xf]
      %v1185 = vld [vmem:[%s3 + $0x20] sm:$0xf]
      %v1186 = vld [vmem:[%s3 + $0x24] sm:$0xf]
      %v1187 = vld [vmem:[%s3 + $0x28] sm:$0xf]
      %v1188 = vld [vmem:[%s3 + $0x2c] sm:$0xf]
      %v1189 = vld [vmem:[%s3 + $0x30] sm:$0xf]
      %v1190 = vld [vmem:[%s3 + $0x34] sm:$0xf]
      %v1191 = vld [vmem:[%s3 + $0x38] sm:$0xf]
      %v1192 = vld [vmem:[%s3 + $0x3c] sm:$0xf]
      %v1193 = vld [vmem:[%s3 + $0x40] sm:$0xf]
      %v1194 = vld [vmem:[%s3 + $0x44] sm:$0xf]
      %v1195 = vld [vmem:[%s3 + $0x48] sm:$0xf]
      %v1196 = vld [vmem:[%s3 + $0x4c] sm:$0xf]
      %v1197 = vld [vmem:[%s3 + $0x50] sm:$0xf]
      %v1198 = vld [vmem:[%s3 + $0x54] sm:$0xf]
      %v1199 = vld [vmem:[%s3 + $0x58] sm:$0xf]
      %v1200 = vld [vmem:[%s3 + $0x5c] sm:$0xf]
      %v1201 = vld [vmem:[%s3 + $0x60] sm:$0xf]
      %v1202 = vld [vmem:[%s3 + $0x64] sm:$0xf]
      %v1203 = vld [vmem:[%s3 + $0x68] sm:$0xf]
      %v1204 = vld [vmem:[%s3 + $0x6c] sm:$0xf]
      %v1205 = vld [vmem:[%s3 + $0x70] sm:$0xf]
      %v1206 = vld [vmem:[%s3 + $0x74] sm:$0xf]
      %v1207 = vld [vmem:[%s3 + $0x78] sm:$0xf]
      %v1208 = vld [vmem:[%s3 + $0x7c] sm:$0xf]
      %v1209 = vld [vmem:[%s3 + $0x80] sm:$0xf]
      %v1210 = vld [vmem:[%s3 + $0x84] sm:$0xf]
      %v1211 = vld [vmem:[%s3 + $0x88] sm:$0xf]
      %v1212 = vld [vmem:[%s3 + $0x8c] sm:$0xf]
      %v1213 = vld [vmem:[%s3 + $0x90] sm:$0xf]
      %v1214 = vld [vmem:[%s3 + $0x94] sm:$0xf]
      %v1215 = vld [vmem:[%s3 + $0x98] sm:$0xf]
      %v1216 = vld [vmem:[%s3 + $0x9c] sm:$0xf]
      %v1217 = vld [vmem:[%s3 + $0xa0] sm:$0xf]
      %v1218 = vld [vmem:[%s3 + $0xa4] sm:$0xf]
      %v1219 = vld [vmem:[%s3 + $0xa8] sm:$0xf]
      %v1220 = vld [vmem:[%s3 + $0xac] sm:$0xf]
      %v1221 = vld [vmem:[%s3 + $0xb0] sm:$0xf]
      %v1222 = vld [vmem:[%s3 + $0xb4] sm:$0xf]
      %v1223 = vld [vmem:[%s3 + $0xb8] sm:$0xf]
      %v1224 = vld [vmem:[%s3 + $0xbc] sm:$0xf]
      %v1225 = vld [vmem:[%s3 + $0xc0] sm:$0xf]
      %v1226 = vld [vmem:[%s3 + $0xc4] sm:$0xf]
      %v1227 = vld [vmem:[%s3 + $0xc8] sm:$0xf]
      %v1228 = vld [vmem:[%s3 + $0xcc] sm:$0xf]
      %v1229 = vld [vmem:[%s3 + $0xd0] sm:$0xf]
      %v1230 = vld [vmem:[%s3 + $0xd4] sm:$0xf]
      %v1231 = vld [vmem:[%s3 + $0xd8] sm:$0xf]
      %v1232 = vld [vmem:[%s3 + $0xdc] sm:$0xf]
      %v1233 = vld [vmem:[%s3 + $0xe0] sm:$0xf]
      %v1234 = vld [vmem:[%s3 + $0xe4] sm:$0xf]
      %v1235 = vld [vmem:[%s3 + $0xe8] sm:$0xf]
      %v1236 = vld [vmem:[%s3 + $0xec] sm:$0xf]
      %v1237 = vld [vmem:[%s3 + $0xf0] sm:$0xf]
      %v1238 = vld [vmem:[%s3 + $0xf4] sm:$0xf]
      %v1239 = vld [vmem:[%s3 + $0xf8] sm:$0xf]
      %v1240 = vld [vmem:[%s3 + $0xfc] sm:$0xf]
      %v1241 = vld [vmem:[%s3 + $0x100] sm:$0xf]
      %v1242 = vld [vmem:[%s3 + $0x104] sm:$0xf]
      %v1243 = vld [vmem:[%s3 + $0x108] sm:$0xf]
      %v1244 = vld [vmem:[%s3 + $0x10c] sm:$0xf]
      %v1245 = vld [vmem:[%s3 + $0x110] sm:$0xf]
      %v1246 = vld [vmem:[%s3 + $0x114] sm:$0xf]
      %v1247 = vld [vmem:[%s3 + $0x118] sm:$0xf]
      %v1248 = vld [vmem:[%s3 + $0x11c] sm:$0xf]
      %v1249 = vld [vmem:[%s3 + $0x120] sm:$0xf]
      %v1250 = vld [vmem:[%s3 + $0x124] sm:$0xf]
      %v1251 = vld [vmem:[%s3 + $0x128] sm:$0xf]
      %v1252 = vld [vmem:[%s3 + $0x12c] sm:$0xf]
      %v1253 = vld [vmem:[%s3 + $0x130] sm:$0xf]
      %v1254 = vld [vmem:[%s3 + $0x134] sm:$0xf]
      %v1255 = vld [vmem:[%s3 + $0x138] sm:$0xf]
      %v1256 = vld [vmem:[%s3 + $0x13c] sm:$0xf]
      %v1257 = vld [vmem:[%s3 + $0x140] sm:$0xf]
      %v1258 = vld [vmem:[%s3 + $0x144] sm:$0xf]
      %v1259 = vld [vmem:[%s3 + $0x148] sm:$0xf]
      %v1260 = vld [vmem:[%s3 + $0x14c] sm:$0xf]
      %v1261 = vld [vmem:[%s3 + $0x150] sm:$0xf]
      %v1262 = vld [vmem:[%s3 + $0x154] sm:$0xf]
      %v1263 = vld [vmem:[%s3 + $0x158] sm:$0xf]
      %v1264 = vld [vmem:[%s3 + $0x15c] sm:$0xf]
      %v1265 = vld [vmem:[%s3 + $0x160] sm:$0xf]
      %v1266 = vld [vmem:[%s3 + $0x164] sm:$0xf]
      %v1267 = vld [vmem:[%s3 + $0x168] sm:$0xf]
      %v1268 = vld [vmem:[%s3 + $0x16c] sm:$0xf]
      %v1269 = vld [vmem:[%s3 + $0x170] sm:$0xf]
      %v1270 = vld [vmem:[%s3 + $0x174] sm:$0xf]
      %v1271 = vld [vmem:[%s3 + $0x178] sm:$0xf]
      %v1272 = vld [vmem:[%s3 + $0x17c] sm:$0xf]
      %v1273 = vld [vmem:[%s3 + $0x180] sm:$0xf]
      %v1274 = vld [vmem:[%s3 + $0x184] sm:$0xf]
      %v1275 = vld [vmem:[%s3 + $0x188] sm:$0xf]
      %v1276 = vld [vmem:[%s3 + $0x18c] sm:$0xf]
      %v1277 = vld [vmem:[%s3 + $0x190] sm:$0xf]
      %v1278 = vld [vmem:[%s3 + $0x194] sm:$0xf]
      %v1279 = vld [vmem:[%s3 + $0x198] sm:$0xf]
      %v1280 = vld [vmem:[%s3 + $0x19c] sm:$0xf]
      %v1281 = vld [vmem:[%s3 + $0x1a0] sm:$0xf]
      %v1282 = vld [vmem:[%s3 + $0x1a4] sm:$0xf]
      %v1283 = vld [vmem:[%s3 + $0x1a8] sm:$0xf]
      %v1284 = vld [vmem:[%s3 + $0x1ac] sm:$0xf]
      %v1285 = vld [vmem:[%s3 + $0x1b0] sm:$0xf]
      %v1286 = vld [vmem:[%s3 + $0x1b4] sm:$0xf]
      %v1287 = vld [vmem:[%s3 + $0x1b8] sm:$0xf]
      %v1288 = vld [vmem:[%s3 + $0x1bc] sm:$0xf]
      %v1289 = vld [vmem:[%s3 + $0x1c0] sm:$0xf]
      %v1290 = vld [vmem:[%s3 + $0x1c4] sm:$0xf]
      %v1291 = vld [vmem:[%s3 + $0x1c8] sm:$0xf]
      %v1292 = vld [vmem:[%s3 + $0x1cc] sm:$0xf]
      %v1293 = vld [vmem:[%s3 + $0x1d0] sm:$0xf]
      %v1294 = vld [vmem:[%s3 + $0x1d4] sm:$0xf]
      %v1295 = vld [vmem:[%s3 + $0x1d8] sm:$0xf]
      %v1296 = vld [vmem:[%s3 + $0x1dc] sm:$0xf]
      %v1297 = vld [vmem:[%s3 + $0x1e0] sm:$0xf]
      %v1298 = vld [vmem:[%s3 + $0x1e4] sm:$0xf]
      %v1299 = vld [vmem:[%s3 + $0x1e8] sm:$0xf]
      %v1300 = vld [vmem:[%s3 + $0x1ec] sm:$0xf]
      %v1301 = vld [vmem:[%s3 + $0x1f0] sm:$0xf]
      %v1302 = vld [vmem:[%s3 + $0x1f4] sm:$0xf]
      %v1303 = vld [vmem:[%s3 + $0x1f8] sm:$0xf]
      %v1304 = vld [vmem:[%s3 + $0x1fc] sm:$0xf]
      %v1305 = vld [vmem:[%s4] sm:$0x1]
      %v1307 = vlaneseq
      %v1308 = vshrl.u32 %v1307, 7
      %v1309 = vsub.s32 0, %v1308
      %v1310 = vrot.slane %v1305, %v1309
      %v1440 = vunpack.c.l.b16 %v1177
      %v1441 = vunpack.c.l.b16 %v1178
      %v1442 = vunpack.c.l.b16 %v1179
      %v1443 = vunpack.c.l.b16 %v1180
      %v1444 = vunpack.c.l.b16 %v1181
      %v1445 = vunpack.c.l.b16 %v1182
      %v1446 = vunpack.c.l.b16 %v1183
      %v1447 = vunpack.c.l.b16 %v1184
      %v1448 = vunpack.c.l.b16 %v1185
      %v1449 = vunpack.c.l.b16 %v1186
      %v1450 = vunpack.c.l.b16 %v1187
      %v1451 = vunpack.c.l.b16 %v1188
      %v1452 = vunpack.c.l.b16 %v1189
      %v1453 = vunpack.c.l.b16 %v1190
      %v1454 = vunpack.c.l.b16 %v1191
      %v1455 = vunpack.c.l.b16 %v1192
      %v1456 = vunpack.c.l.b16 %v1193
      %v1457 = vunpack.c.l.b16 %v1194
      %v1458 = vunpack.c.l.b16 %v1195
      %v1459 = vunpack.c.l.b16 %v1196
      %v1460 = vunpack.c.l.b16 %v1197
      %v1461 = vunpack.c.l.b16 %v1198
      %v1462 = vunpack.c.l.b16 %v1199
      %v1463 = vunpack.c.l.b16 %v1200
      %v1464 = vunpack.c.l.b16 %v1201
      %v1465 = vunpack.c.l.b16 %v1202
      %v1466 = vunpack.c.l.b16 %v1203
      %v1467 = vunpack.c.l.b16 %v1204
      %v1468 = vunpack.c.l.b16 %v1205
      %v1469 = vunpack.c.l.b16 %v1206
      %v1470 = vunpack.c.l.b16 %v1207
      %v1471 = vunpack.c.l.b16 %v1208
      %v1472 = vunpack.c.l.b16 %v1209
      %v1473 = vunpack.c.l.b16 %v1210
      %v1474 = vunpack.c.l.b16 %v1211
      %v1475 = vunpack.c.l.b16 %v1212
      %v1476 = vunpack.c.l.b16 %v1213
      %v1477 = vunpack.c.l.b16 %v1214
      %v1478 = vunpack.c.l.b16 %v1215
      %v1479 = vunpack.c.l.b16 %v1216
      %v1480 = vunpack.c.l.b16 %v1217
      %v1481 = vunpack.c.l.b16 %v1218
      %v1482 = vunpack.c.l.b16 %v1219
      %v1483 = vunpack.c.l.b16 %v1220
      %v1484 = vunpack.c.l.b16 %v1221
      %v1485 = vunpack.c.l.b16 %v1222
      %v1486 = vunpack.c.l.b16 %v1223
      %v1487 = vunpack.c.l.b16 %v1224
      %v1488 = vunpack.c.l.b16 %v1225
      %v1489 = vunpack.c.l.b16 %v1226
      %v1490 = vunpack.c.l.b16 %v1227
      %v1491 = vunpack.c.l.b16 %v1228
      %v1492 = vunpack.c.l.b16 %v1229
      %v1493 = vunpack.c.l.b16 %v1230
      %v1494 = vunpack.c.l.b16 %v1231
      %v1495 = vunpack.c.l.b16 %v1232
      %v1496 = vunpack.c.l.b16 %v1233
      %v1497 = vunpack.c.l.b16 %v1234
      %v1498 = vunpack.c.l.b16 %v1235
      %v1499 = vunpack.c.l.b16 %v1236
      %v1500 = vunpack.c.l.b16 %v1237
      %v1501 = vunpack.c.l.b16 %v1238
      %v1502 = vunpack.c.l.b16 %v1239
      %v1503 = vunpack.c.l.b16 %v1240
      %v1504 = vunpack.c.l.b16 %v1241
      %v1505 = vunpack.c.l.b16 %v1242
      %v1506 = vunpack.c.l.b16 %v1243
      %v1507 = vunpack.c.l.b16 %v1244
      %v1508 = vunpack.c.l.b16 %v1245
      %v1509 = vunpack.c.l.b16 %v1246
      %v1510 = vunpack.c.l.b16 %v1247
      %v1511 = vunpack.c.l.b16 %v1248
      %v1512 = vunpack.c.l.b16 %v1249
      %v1513 = vunpack.c.l.b16 %v1250
      %v1514 = vunpack.c.l.b16 %v1251
      %v1515 = vunpack.c.l.b16 %v1252
      %v1516 = vunpack.c.l.b16 %v1253
      %v1517 = vunpack.c.l.b16 %v1254
      %v1518 = vunpack.c.l.b16 %v1255
      %v1519 = vunpack.c.l.b16 %v1256
      %v1520 = vunpack.c.l.b16 %v1257
      %v1521 = vunpack.c.l.b16 %v1258
      %v1522 = vunpack.c.l.b16 %v1259
      %v1523 = vunpack.c.l.b16 %v1260
      %v1524 = vunpack.c.l.b16 %v1261
      %v1525 = vunpack.c.l.b16 %v1262
      %v1526 = vunpack.c.l.b16 %v1263
      %v1527 = vunpack.c.l.b16 %v1264
      %v1528 = vunpack.c.l.b16 %v1265
      %v1529 = vunpack.c.l.b16 %v1266
      %v1530 = vunpack.c.l.b16 %v1267
      %v1531 = vunpack.c.l.b16 %v1268
      %v1532 = vunpack.c.l.b16 %v1269
      %v1533 = vunpack.c.l.b16 %v1270
      %v1534 = vunpack.c.l.b16 %v1271
      %v1535 = vunpack.c.l.b16 %v1272
      %v1536 = vunpack.c.l.b16 %v1273
      %v1537 = vunpack.c.l.b16 %v1274
      %v1538 = vunpack.c.l.b16 %v1275
      %v1539 = vunpack.c.l.b16 %v1276
      %v1540 = vunpack.c.l.b16 %v1277
      %v1541 = vunpack.c.l.b16 %v1278
      %v1542 = vunpack.c.l.b16 %v1279
      %v1543 = vunpack.c.l.b16 %v1280
      %v1544 = vunpack.c.l.b16 %v1281
      %v1545 = vunpack.c.l.b16 %v1282
      %v1546 = vunpack.c.l.b16 %v1283
      %v1547 = vunpack.c.l.b16 %v1284
      %v1548 = vunpack.c.l.b16 %v1285
      %v1549 = vunpack.c.l.b16 %v1286
      %v1550 = vunpack.c.l.b16 %v1287
      %v1551 = vunpack.c.l.b16 %v1288
      %v1552 = vunpack.c.l.b16 %v1289
      %v1553 = vunpack.c.l.b16 %v1290
      %v1554 = vunpack.c.l.b16 %v1291
      %v1555 = vunpack.c.l.b16 %v1292
      %v1556 = vunpack.c.l.b16 %v1293
      %v1557 = vunpack.c.l.b16 %v1294
      %v1558 = vunpack.c.l.b16 %v1295
      %v1559 = vunpack.c.l.b16 %v1296
      %v1560 = vunpack.c.l.b16 %v1297
      %v1561 = vunpack.c.l.b16 %v1298
      %v1562 = vunpack.c.l.b16 %v1299
      %v1563 = vunpack.c.l.b16 %v1300
      %v1564 = vunpack.c.l.b16 %v1301
      %v1565 = vunpack.c.l.b16 %v1302
      %v1566 = vunpack.c.l.b16 %v1303
      %v1567 = vunpack.c.l.b16 %v1304
      %v1568 = vpack.c.b16 %v1441, %v1440
      %v1569 = vpack.c.b16 %v1443, %v1442
      %v1570 = vpack.c.b16 %v1445, %v1444
      %v1571 = vpack.c.b16 %v1447, %v1446
      %v1572 = vpack.c.b16 %v1449, %v1448
      %v1573 = vpack.c.b16 %v1451, %v1450
      %v1574 = vpack.c.b16 %v1453, %v1452
      %v1575 = vpack.c.b16 %v1455, %v1454
      %v1576 = vpack.c.b16 %v1457, %v1456
      %v1577 = vpack.c.b16 %v1459, %v1458
      %v1578 = vpack.c.b16 %v1461, %v1460
      %v1579 = vpack.c.b16 %v1463, %v1462
      %v1580 = vpack.c.b16 %v1465, %v1464
      %v1581 = vpack.c.b16 %v1467, %v1466
      %v1582 = vpack.c.b16 %v1469, %v1468
      %v1583 = vpack.c.b16 %v1471, %v1470
      %v1584 = vpack.c.b16 %v1473, %v1472
      %v1585 = vpack.c.b16 %v1475, %v1474
      %v1586 = vpack.c.b16 %v1477, %v1476
      %v1587 = vpack.c.b16 %v1479, %v1478
      %v1588 = vpack.c.b16 %v1481, %v1480
      %v1589 = vpack.c.b16 %v1483, %v1482
      %v1590 = vpack.c.b16 %v1485, %v1484
      %v1591 = vpack.c.b16 %v1487, %v1486
      %v1592 = vpack.c.b16 %v1489, %v1488
      %v1593 = vpack.c.b16 %v1491, %v1490
      %v1594 = vpack.c.b16 %v1493, %v1492
      %v1595 = vpack.c.b16 %v1495, %v1494
      %v1596 = vpack.c.b16 %v1497, %v1496
      %v1597 = vpack.c.b16 %v1499, %v1498
      %v1598 = vpack.c.b16 %v1501, %v1500
      %v1599 = vpack.c.b16 %v1503, %v1502
      %v1600 = vpack.c.b16 %v1505, %v1504
      %v1601 = vpack.c.b16 %v1507, %v1506
      %v1602 = vpack.c.b16 %v1509, %v1508
      %v1603 = vpack.c.b16 %v1511, %v1510
      %v1604 = vpack.c.b16 %v1513, %v1512
      %v1605 = vpack.c.b16 %v1515, %v1514
      %v1606 = vpack.c.b16 %v1517, %v1516
      %v1607 = vpack.c.b16 %v1519, %v1518
      %v1608 = vpack.c.b16 %v1521, %v1520
      %v1609 = vpack.c.b16 %v1523, %v1522
      %v1610 = vpack.c.b16 %v1525, %v1524
      %v1611 = vpack.c.b16 %v1527, %v1526
      %v1612 = vpack.c.b16 %v1529, %v1528
      %v1613 = vpack.c.b16 %v1531, %v1530
      %v1614 = vpack.c.b16 %v1533, %v1532
      %v1615 = vpack.c.b16 %v1535, %v1534
      %v1616 = vpack.c.b16 %v1537, %v1536
      %v1617 = vpack.c.b16 %v1539, %v1538
      %v1618 = vpack.c.b16 %v1541, %v1540
      %v1619 = vpack.c.b16 %v1543, %v1542
      %v1620 = vpack.c.b16 %v1545, %v1544
      %v1621 = vpack.c.b16 %v1547, %v1546
      %v1622 = vpack.c.b16 %v1549, %v1548
      %v1623 = vpack.c.b16 %v1551, %v1550
      %v1624 = vpack.c.b16 %v1553, %v1552
      %v1625 = vpack.c.b16 %v1555, %v1554
      %v1626 = vpack.c.b16 %v1557, %v1556
      %v1627 = vpack.c.b16 %v1559, %v1558
      %v1628 = vpack.c.b16 %v1561, %v1560
      %v1629 = vpack.c.b16 %v1563, %v1562
      %v1630 = vpack.c.b16 %v1565, %v1564
      %v1631 = vpack.c.b16 %v1567, %v1566
      %1696 = vmatprep.subr.bf16.mxu0 0
      %1697 = vmatpush1.bf16.msra.mxu0 %v1568
      %1698 = vmatprep.subr.bf16.mxu0 0
      %1699 = vmatpush1.bf16.msra.mxu0 %v1569
      %1700 = vmatprep.subr.bf16.mxu0 0
      %1701 = vmatpush1.bf16.msra.mxu0 %v1570
      %1702 = vmatprep.subr.bf16.mxu0 0
      %1703 = vmatpush1.bf16.msra.mxu0 %v1571
      %1704 = vmatprep.subr.bf16.mxu0 0
      %1705 = vmatpush1.bf16.msra.mxu0 %v1572
      %1706 = vmatprep.subr.bf16.mxu0 0
      %1707 = vmatpush1.bf16.msra.mxu0 %v1573
      %1708 = vmatprep.subr.bf16.mxu0 0
      %1709 = vmatpush1.bf16.msra.mxu0 %v1574
      %1710 = vmatprep.subr.bf16.mxu0 0
      %1711 = vmatpush1.bf16.msra.mxu0 %v1575
      %1712 = vmatprep.subr.bf16.mxu0 0
      %1713 = vmatpush1.bf16.msra.mxu0 %v1576
      %1714 = vmatprep.subr.bf16.mxu0 0
      %1715 = vmatpush1.bf16.msra.mxu0 %v1577
      %1716 = vmatprep.subr.bf16.mxu0 0
      %1717 = vmatpush1.bf16.msra.mxu0 %v1578
      %1718 = vmatprep.subr.bf16.mxu0 0
      %1719 = vmatpush1.bf16.msra.mxu0 %v1579
      %1720 = vmatprep.subr.bf16.mxu0 0
      %1721 = vmatpush1.bf16.msra.mxu0 %v1580
      %1722 = vmatprep.subr.bf16.mxu0 0
      %1723 = vmatpush1.bf16.msra.mxu0 %v1581
      %1724 = vmatprep.subr.bf16.mxu0 0
      %1725 = vmatpush1.bf16.msra.mxu0 %v1582
      %1726 = vmatprep.subr.bf16.mxu0 0
      %1727 = vmatpush1.bf16.msra.mxu0 %v1583
      %1728 = vmatprep.mubr.bf16.mxu0 %v1114
      %1729 = vmatmul.mubr.bf16.gmra.mrb[0].mxu0 %v1113
      %v1730 = vpop.f32.mrb[0].mxu0
      %v1731 = vadd.f32 %v1310, %v1730
      %v1732 = vpop.f32.mrb[0].mxu0
      %v1733 = vpop.f32.mrb[0].mxu0
      %v1734 = vadd.f32 %v1310, %v1733
      %v1735 = vpop.f32.mrb[0].mxu0
      %1736 = vmatprep.mubr.bf16.mxu0 %v1122
      %1737 = vmatmul.mubr.bf16.gmra.mrb[0].mxu0 %v1121
      %v1738 = vpop.f32.mrb[0].mxu0
      %v1739 = vadd.f32 %v1310, %v1738
      %v1740 = vpop.f32.mrb[0].mxu0
      %v1741 = vpop.f32.mrb[0].mxu0
      %v1742 = vadd.f32 %v1310, %v1741
      %v1743 = vpop.f32.mrb[0].mxu0
      %1744 = vmatprep.mubr.bf16.mxu0 %v1130
      %1745 = vmatmul.mubr.bf16.gmra.mrb[0].mxu0 %v1129
      %v1746 = vpop.f32.mrb[0].mxu0
      %v1747 = vadd.f32 %v1310, %v1746
      %v1748 = vpop.f32.mrb[0].mxu0
      %v1749 = vpop.f32.mrb[0].mxu0
      %v1750 = vadd.f32 %v1310, %v1749
      %v1751 = vpop.f32.mrb[0].mxu0
      %1752 = vmatprep.mubr.bf16.mxu0 %v1138
      %1753 = vmatmul.mubr.bf16.gmra.mrb[0].mxu0 %v1137
      %v1754 = vpop.f32.mrb[0].mxu0
      %v1755 = vadd.f32 %v1310, %v1754
      %v1756 = vpop.f32.mrb[0].mxu0
      %v1757 = vpop.f32.mrb[0].mxu0
      %v1758 = vadd.f32 %v1310, %v1757
      %v1759 = vpop.f32.mrb[0].mxu0
      %1760 = vmatprep.mubr.bf16.mxu0 %v1146
      %1761 = vmatmul.mubr.bf16.gmra.mrb[0].mxu0 %v1145
      %v1762 = vpop.f32.mrb[0].mxu0
      %v1763 = vadd.f32 %v1310, %v1762
      %v1764 = vpop.f32.mrb[0].mxu0
      %v1765 = vpop.f32.mrb[0].mxu0
      %v1766 = vadd.f32 %v1310, %v1765
      %v1767 = vpop.f32.mrb[0].mxu0
      %1768 = vmatprep.mubr.bf16.mxu0 %v1154
      %1769 = vmatmul.mubr.bf16.gmra.mrb[0].mxu0 %v1153
      %v1770 = vpop.f32.mrb[0].mxu0
      %v1771 = vadd.f32 %v1310, %v1770
      %v1772 = vpop.f32.mrb[0].mxu0
      %v1773 = vpop.f32.mrb[0].mxu0
      %v1774 = vadd.f32 %v1310, %v1773
      %v1775 = vpop.f32.mrb[0].mxu0
      %1776 = vmatprep.mubr.bf16.mxu0 %v1162
      %1777 = vmatmul.mubr.bf16.gmra.mrb[0].mxu0 %v1161
      %v1778 = vpop.f32.mrb[0].mxu0
      %v1779 = vadd.f32 %v1310, %v1778
      %v1780 = vpop.f32.mrb[0].mxu0
      %v1781 = vpop.f32.mrb[0].mxu0
      %v1782 = vadd.f32 %v1310, %v1781
      %v1783 = vpop.f32.mrb[0].mxu0
      %1784 = vmatprep.mubr.bf16.mxu0 %v1170
      %1785 = vmatmul.mubr.bf16.gmra.mrb[0].mxu0 %v1169
      %v1786 = vpop.f32.mrb[0].mxu0
      %v1787 = vadd.f32 %v1310, %v1786
      %v1788 = vpop.f32.mrb[0].mxu0
      %v1789 = vpop.f32.mrb[0].mxu0
      %v1790 = vadd.f32 %v1310, %v1789
      %v1791 = vpop.f32.mrb[0].mxu0
      %1792 = vdwg.mxu0
      %1793 = vmatprep.subr.bf16.mxu0 0
      %1794 = vmatpush1.bf16.msra.mxu0 %v1584
      %1795 = vmatprep.subr.bf16.mxu0 0
      %1796 = vmatpush1.bf16.msra.mxu0 %v1585
      %1797 = vmatprep.subr.bf16.mxu0 0
      %1798 = vmatpush1.bf16.msra.mxu0 %v1586
      %1799 = vmatprep.subr.bf16.mxu0 0
      %1800 = vmatpush1.bf16.msra.mxu0 %v1587
      %1801 = vmatprep.subr.bf16.mxu0 0
      %1802 = vmatpush1.bf16.msra.mxu0 %v1588
      %1803 = vmatprep.subr.bf16.mxu0 0
      %1804 = vmatpush1.bf16.msra.mxu0 %v1589
      %1805 = vmatprep.subr.bf16.mxu0 0
      %1806 = vmatpush1.bf16.msra.mxu0 %v1590
      %1807 = vmatprep.subr.bf16.mxu0 0
      %1808 = vmatpush1.bf16.msra.mxu0 %v1591
      %1809 = vmatprep.subr.bf16.mxu0 0
      %1810 = vmatpush1.bf16.msra.mxu0 %v1592
      %1811 = vmatprep.subr.bf16.mxu0 0
      %1812 = vmatpush1.bf16.msra.mxu0 %v1593
      %1813 = vmatprep.subr.bf16.mxu0 0
      %1814 = vmatpush1.bf16.msra.mxu0 %v1594
      %1815 = vmatprep.subr.bf16.mxu0 0
      %1816 = vmatpush1.bf16.msra.mxu0 %v1595
      %1817 = vmatprep.subr.bf16.mxu0 0
      %1818 = vmatpush1.bf16.msra.mxu0 %v1596
      %1819 = vmatprep.subr.bf16.mxu0 0
      %1820 = vmatpush1.bf16.msra.mxu0 %v1597
      %1821 = vmatprep.subr.bf16.mxu0 0
      %1822 = vmatpush1.bf16.msra.mxu0 %v1598
      %1823 = vmatprep.subr.bf16.mxu0 0
      %1824 = vmatpush1.bf16.msra.mxu0 %v1599
      %1825 = vmatprep.mubr.bf16.mxu0 %v1116
      %1826 = vmatmul.mubr.bf16.gmra.mrb[0].mxu0 %v1115
      %v1827 = vpop.f32.mrb[0].mxu0
      %v1828 = vadd.f32 %v1731, %v1827
      %v1829 = vpop.f32.mrb[0].mxu0
      %v1830 = vpop.f32.mrb[0].mxu0
      %v1831 = vadd.f32 %v1734, %v1830
      %v1832 = vpop.f32.mrb[0].mxu0
      %1833 = vmatprep.mubr.bf16.mxu0 %v1124
      %1834 = vmatmul.mubr.bf16.gmra.mrb[0].mxu0 %v1123
      %v1835 = vpop.f32.mrb[0].mxu0
      %v1836 = vadd.f32 %v1739, %v1835
      %v1837 = vpop.f32.mrb[0].mxu0
      %v1838 = vpop.f32.mrb[0].mxu0
      %v1839 = vadd.f32 %v1742, %v1838
      %v1840 = vpop.f32.mrb[0].mxu0
      %1841 = vmatprep.mubr.bf16.mxu0 %v1132
      %1842 = vmatmul.mubr.bf16.gmra.mrb[0].mxu0 %v1131
      %v1843 = vpop.f32.mrb[0].mxu0
      %v1844 = vadd.f32 %v1747, %v1843
      %v1845 = vpop.f32.mrb[0].mxu0
      %v1846 = vpop.f32.mrb[0].mxu0
      %v1847 = vadd.f32 %v1750, %v1846
      %v1848 = vpop.f32.mrb[0].mxu0
      %1849 = vmatprep.mubr.bf16.mxu0 %v1140
      %1850 = vmatmul.mubr.bf16.gmra.mrb[0].mxu0 %v1139
      %v1851 = vpop.f32.mrb[0].mxu0
      %v1852 = vadd.f32 %v1755, %v1851
      %v1853 = vpop.f32.mrb[0].mxu0
      %v1854 = vpop.f32.mrb[0].mxu0
      %v1855 = vadd.f32 %v1758, %v1854
      %v1856 = vpop.f32.mrb[0].mxu0
      %1857 = vmatprep.mubr.bf16.mxu0 %v1148
      %1858 = vmatmul.mubr.bf16.gmra.mrb[0].mxu0 %v1147
      %v1859 = vpop.f32.mrb[0].mxu0
      %v1860 = vadd.f32 %v1763, %v1859
      %v1861 = vpop.f32.mrb[0].mxu0
      %v1862 = vpop.f32.mrb[0].mxu0
      %v1863 = vadd.f32 %v1766, %v1862
      %v1864 = vpop.f32.mrb[0].mxu0
      %1865 = vmatprep.mubr.bf16.mxu0 %v1156
      %1866 = vmatmul.mubr.bf16.gmra.mrb[0].mxu0 %v1155
      %v1867 = vpop.f32.mrb[0].mxu0
      %v1868 = vadd.f32 %v1771, %v1867
      %v1869 = vpop.f32.mrb[0].mxu0
      %v1870 = vpop.f32.mrb[0].mxu0
      %v1871 = vadd.f32 %v1774, %v1870
      %v1872 = vpop.f32.mrb[0].mxu0
      %1873 = vmatprep.mubr.bf16.mxu0 %v1164
      %1874 = vmatmul.mubr.bf16.gmra.mrb[0].mxu0 %v1163
      %v1875 = vpop.f32.mrb[0].mxu0
      %v1876 = vadd.f32 %v1779, %v1875
      %v1877 = vpop.f32.mrb[0].mxu0
      %v1878 = vpop.f32.mrb[0].mxu0
      %v1879 = vadd.f32 %v1782, %v1878
      %v1880 = vpop.f32.mrb[0].mxu0
      %1881 = vmatprep.mubr.bf16.mxu0 %v1172
      %1882 = vmatmul.mubr.bf16.gmra.mrb[0].mxu0 %v1171
      %v1883 = vpop.f32.mrb[0].mxu0
      %v1884 = vadd.f32 %v1787, %v1883
      %v1885 = vpop.f32.mrb[0].mxu0
      %v1886 = vpop.f32.mrb[0].mxu0
      %v1887 = vadd.f32 %v1790, %v1886
      %v1888 = vpop.f32.mrb[0].mxu0
      %1889 = vdwg.mxu0
      %1890 = vmatprep.subr.bf16.mxu0 0
      %1891 = vmatpush1.bf16.msra.mxu0 %v1600
      %1892 = vmatprep.subr.bf16.mxu0 0
      %1893 = vmatpush1.bf16.msra.mxu0 %v1601
      %1894 = vmatprep.subr.bf16.mxu0 0
      %1895 = vmatpush1.bf16.msra.mxu0 %v1602
      %1896 = vmatprep.subr.bf16.mxu0 0
      %1897 = vmatpush1.bf16.msra.mxu0 %v1603
      %1898 = vmatprep.subr.bf16.mxu0 0
      %1899 = vmatpush1.bf16.msra.mxu0 %v1604
      %1900 = vmatprep.subr.bf16.mxu0 0
      %1901 = vmatpush1.bf16.msra.mxu0 %v1605
      %1902 = vmatprep.subr.bf16.mxu0 0
      %1903 = vmatpush1.bf16.msra.mxu0 %v1606
      %1904 = vmatprep.subr.bf16.mxu0 0
      %1905 = vmatpush1.bf16.msra.mxu0 %v1607
      %1906 = vmatprep.subr.bf16.mxu0 0
      %1907 = vmatpush1.bf16.msra.mxu0 %v1608
      %1908 = vmatprep.subr.bf16.mxu0 0
      %1909 = vmatpush1.bf16.msra.mxu0 %v1609
      %1910 = vmatprep.subr.bf16.mxu0 0
      %1911 = vmatpush1.bf16.msra.mxu0 %v1610
      %1912 = vmatprep.subr.bf16.mxu0 0
      %1913 = vmatpush1.bf16.msra.mxu0 %v1611
      %1914 = vmatprep.subr.bf16.mxu0 0
      %1915 = vmatpush1.bf16.msra.mxu0 %v1612
      %1916 = vmatprep.subr.bf16.mxu0 0
      %1917 = vmatpush1.bf16.msra.mxu0 %v1613
      %1918 = vmatprep.subr.bf16.mxu0 0
      %1919 = vmatpush1.bf16.msra.mxu0 %v1614
      %1920 = vmatprep.subr.bf16.mxu0 0
      %1921 = vmatpush1.bf16.msra.mxu0 %v1615
      %1922 = vmatprep.mubr.bf16.mxu0 %v1118
      %1923 = vmatmul.mubr.bf16.gmra.mrb[0].mxu0 %v1117
      %v1924 = vpop.f32.mrb[0].mxu0
      %v1925 = vadd.f32 %v1828, %v1924
      %v1926 = vpop.f32.mrb[0].mxu0
      %v1927 = vpop.f32.mrb[0].mxu0
      %v1928 = vadd.f32 %v1831, %v1927
      %v1929 = vpop.f32.mrb[0].mxu0
      %1930 = vmatprep.mubr.bf16.mxu0 %v1126
      %1931 = vmatmul.mubr.bf16.gmra.mrb[0].mxu0 %v1125
      %v1932 = vpop.f32.mrb[0].mxu0
      %v1933 = vadd.f32 %v1836, %v1932
      %v1934 = vpop.f32.mrb[0].mxu0
      %v1935 = vpop.f32.mrb[0].mxu0
      %v1936 = vadd.f32 %v1839, %v1935
      %v1937 = vpop.f32.mrb[0].mxu0
      %1938 = vmatprep.mubr.bf16.mxu0 %v1134
      %1939 = vmatmul.mubr.bf16.gmra.mrb[0].mxu0 %v1133
      %v1940 = vpop.f32.mrb[0].mxu0
      %v1941 = vadd.f32 %v1844, %v1940
      %v1942 = vpop.f32.mrb[0].mxu0
      %v1943 = vpop.f32.mrb[0].mxu0
      %v1944 = vadd.f32 %v1847, %v1943
      %v1945 = vpop.f32.mrb[0].mxu0
      %1946 = vmatprep.mubr.bf16.mxu0 %v1142
      %1947 = vmatmul.mubr.bf16.gmra.mrb[0].mxu0 %v1141
      %v1948 = vpop.f32.mrb[0].mxu0
      %v1949 = vadd.f32 %v1852, %v1948
      %v1950 = vpop.f32.mrb[0].mxu0
      %v1951 = vpop.f32.mrb[0].mxu0
      %v1952 = vadd.f32 %v1855, %v1951
      %v1953 = vpop.f32.mrb[0].mxu0
      %1954 = vmatprep.mubr.bf16.mxu0 %v1150
      %1955 = vmatmul.mubr.bf16.gmra.mrb[0].mxu0 %v1149
      %v1956 = vpop.f32.mrb[0].mxu0
      %v1957 = vadd.f32 %v1860, %v1956
      %v1958 = vpop.f32.mrb[0].mxu0
      %v1959 = vpop.f32.mrb[0].mxu0
      %v1960 = vadd.f32 %v1863, %v1959
      %v1961 = vpop.f32.mrb[0].mxu0
      %1962 = vmatprep.mubr.bf16.mxu0 %v1158
      %1963 = vmatmul.mubr.bf16.gmra.mrb[0].mxu0 %v1157
      %v1964 = vpop.f32.mrb[0].mxu0
      %v1965 = vadd.f32 %v1868, %v1964
      %v1966 = vpop.f32.mrb[0].mxu0
      %v1967 = vpop.f32.mrb[0].mxu0
      %v1968 = vadd.f32 %v1871, %v1967
      %v1969 = vpop.f32.mrb[0].mxu0
      %1970 = vmatprep.mubr.bf16.mxu0 %v1166
      %1971 = vmatmul.mubr.bf16.gmra.mrb[0].mxu0 %v1165
      %v1972 = vpop.f32.mrb[0].mxu0
      %v1973 = vadd.f32 %v1876, %v1972
      %v1974 = vpop.f32.mrb[0].mxu0
      %v1975 = vpop.f32.mrb[0].mxu0
      %v1976 = vadd.f32 %v1879, %v1975
      %v1977 = vpop.f32.mrb[0].mxu0
      %1978 = vmatprep.mubr.bf16.mxu0 %v1174
      %1979 = vmatmul.mubr.bf16.gmra.mrb[0].mxu0 %v1173
      %v1980 = vpop.f32.mrb[0].mxu0
      %v1981 = vadd.f32 %v1884, %v1980
      %v1982 = vpop.f32.mrb[0].mxu0
      %v1983 = vpop.f32.mrb[0].mxu0
      %v1984 = vadd.f32 %v1887, %v1983
      %v1985 = vpop.f32.mrb[0].mxu0
      %1986 = vdwg.mxu0
      %1987 = vmatprep.subr.bf16.mxu0 0
      %1988 = vmatpush1.bf16.msra.mxu0 %v1616
      %1989 = vmatprep.subr.bf16.mxu0 0
      %1990 = vmatpush1.bf16.msra.mxu0 %v1617
      %1991 = vmatprep.subr.bf16.mxu0 0
      %1992 = vmatpush1.bf16.msra.mxu0 %v1618
      %1993 = vmatprep.subr.bf16.mxu0 0
      %1994 = vmatpush1.bf16.msra.mxu0 %v1619
      %1995 = vmatprep.subr.bf16.mxu0 0
      %1996 = vmatpush1.bf16.msra.mxu0 %v1620
      %1997 = vmatprep.subr.bf16.mxu0 0
      %1998 = vmatpush1.bf16.msra.mxu0 %v1621
      %1999 = vmatprep.subr.bf16.mxu0 0
      %2000 = vmatpush1.bf16.msra.mxu0 %v1622
      %2001 = vmatprep.subr.bf16.mxu0 0
      %2002 = vmatpush1.bf16.msra.mxu0 %v1623
      %2003 = vmatprep.subr.bf16.mxu0 0
      %2004 = vmatpush1.bf16.msra.mxu0 %v1624
      %2005 = vmatprep.subr.bf16.mxu0 0
      %2006 = vmatpush1.bf16.msra.mxu0 %v1625
      %2007 = vmatprep.subr.bf16.mxu0 0
      %2008 = vmatpush1.bf16.msra.mxu0 %v1626
      %2009 = vmatprep.subr.bf16.mxu0 0
      %2010 = vmatpush1.bf16.msra.mxu0 %v1627
      %2011 = vmatprep.subr.bf16.mxu0 0
      %2012 = vmatpush1.bf16.msra.mxu0 %v1628
      %2013 = vmatprep.subr.bf16.mxu0 0
      %2014 = vmatpush1.bf16.msra.mxu0 %v1629
      %2015 = vmatprep.subr.bf16.mxu0 0
      %2016 = vmatpush1.bf16.msra.mxu0 %v1630
      %2017 = vmatprep.subr.bf16.mxu0 0
      %2018 = vmatpush1.bf16.msra.mxu0 %v1631
      %2019 = vmatprep.mubr.bf16.mxu0 %v1120
      %2020 = vmatmul.mubr.bf16.gmra.mrb[0].mxu0 %v1119
      %v2021 = vpop.f32.mrb[0].mxu0
      %v2022 = vadd.f32 %v1925, %v2021
      %v2023 = vpop.f32.mrb[0].mxu0
      %v2024 = vpop.f32.mrb[0].mxu0
      %v2025 = vadd.f32 %v1928, %v2024
      %v2026 = vpop.f32.mrb[0].mxu0
      %2027 = vmatprep.mubr.bf16.mxu0 %v1128
      %2028 = vmatmul.mubr.bf16.gmra.mrb[0].mxu0 %v1127
      %v2029 = vpop.f32.mrb[0].mxu0
      %v2030 = vadd.f32 %v1933, %v2029
      %v2031 = vpop.f32.mrb[0].mxu0
      %v2032 = vpop.f32.mrb[0].mxu0
      %v2033 = vadd.f32 %v1936, %v2032
      %v2034 = vpop.f32.mrb[0].mxu0
      %2035 = vmatprep.mubr.bf16.mxu0 %v1136
      %2036 = vmatmul.mubr.bf16.gmra.mrb[0].mxu0 %v1135
      %v2037 = vpop.f32.mrb[0].mxu0
      %v2038 = vadd.f32 %v1941, %v2037
      %v2039 = vpop.f32.mrb[0].mxu0
      %v2040 = vpop.f32.mrb[0].mxu0
      %v2041 = vadd.f32 %v1944, %v2040
      %v2042 = vpop.f32.mrb[0].mxu0
      %2043 = vmatprep.mubr.bf16.mxu0 %v1144
      %2044 = vmatmul.mubr.bf16.gmra.mrb[0].mxu0 %v1143
      %v2045 = vpop.f32.mrb[0].mxu0
      %v2046 = vadd.f32 %v1949, %v2045
      %v2047 = vpop.f32.mrb[0].mxu0
      %v2048 = vpop.f32.mrb[0].mxu0
      %v2049 = vadd.f32 %v1952, %v2048
      %v2050 = vpop.f32.mrb[0].mxu0
      %2051 = vmatprep.mubr.bf16.mxu0 %v1152
      %2052 = vmatmul.mubr.bf16.gmra.mrb[0].mxu0 %v1151
      %v2053 = vpop.f32.mrb[0].mxu0
      %v2054 = vadd.f32 %v1957, %v2053
      %v2055 = vpop.f32.mrb[0].mxu0
      %v2056 = vpop.f32.mrb[0].mxu0
      %v2057 = vadd.f32 %v1960, %v2056
      %v2058 = vpop.f32.mrb[0].mxu0
      %2059 = vmatprep.mubr.bf16.mxu0 %v1160
      %2060 = vmatmul.mubr.bf16.gmra.mrb[0].mxu0 %v1159
      %v2061 = vpop.f32.mrb[0].mxu0
      %v2062 = vadd.f32 %v1965, %v2061
      %v2063 = vpop.f32.mrb[0].mxu0
      %v2064 = vpop.f32.mrb[0].mxu0
      %v2065 = vadd.f32 %v1968, %v2064
      %v2066 = vpop.f32.mrb[0].mxu0
      %2067 = vmatprep.mubr.bf16.mxu0 %v1168
      %2068 = vmatmul.mubr.bf16.gmra.mrb[0].mxu0 %v1167
      %v2069 = vpop.f32.mrb[0].mxu0
      %v2070 = vadd.f32 %v1973, %v2069
      %v2071 = vpop.f32.mrb[0].mxu0
      %v2072 = vpop.f32.mrb[0].mxu0
      %v2073 = vadd.f32 %v1976, %v2072
      %v2074 = vpop.f32.mrb[0].mxu0
      %2075 = vmatprep.mubr.bf16.mxu0 %v1176
      %2076 = vmatmul.mubr.bf16.gmra.mrb[0].mxu0 %v1175
      %v2077 = vpop.f32.mrb[0].mxu0
      %v2078 = vadd.f32 %v1981, %v2077
      %v2079 = vpop.f32.mrb[0].mxu0
      %v2080 = vpop.f32.mrb[0].mxu0
      %v2081 = vadd.f32 %v1984, %v2080
      %v2082 = vpop.f32.mrb[0].mxu0
      %2083 = vdwg.mxu0
      %v2084 = vmax.f32 %v2022, 0.0
      %v2085 = vmax.f32 %v2025, 0.0
      %v2086 = vmax.f32 %v2030, 0.0
      %v2087 = vmax.f32 %v2033, 0.0
      %v2088 = vmax.f32 %v2038, 0.0
      %v2089 = vmax.f32 %v2041, 0.0
      %v2090 = vmax.f32 %v2046, 0.0
      %v2091 = vmax.f32 %v2049, 0.0
      %v2092 = vmax.f32 %v2054, 0.0
      %v2093 = vmax.f32 %v2057, 0.0
      %v2094 = vmax.f32 %v2062, 0.0
      %v2095 = vmax.f32 %v2065, 0.0
      %v2096 = vmax.f32 %v2070, 0.0
      %v2097 = vmax.f32 %v2073, 0.0
      %v2098 = vmax.f32 %v2078, 0.0
      %v2099 = vmax.f32 %v2081, 0.0
      %s2100 = scalar_lea.vmem %s1, 160
      %v2101 = vld [vmem:[%s2100] sm:$0xff]
      %v2102 = vld [vmem:[%s2100 + $0x8] sm:$0xff]
      %v2103 = vld [vmem:[%s2100 + $0x10] sm:$0xff]
      %v2104 = vld [vmem:[%s2100 + $0x18] sm:$0xff]
      %v2105 = vld [vmem:[%s2100 + $0x20] sm:$0xff]
      %v2106 = vld [vmem:[%s2100 + $0x28] sm:$0xff]
      %v2107 = vld [vmem:[%s2100 + $0x30] sm:$0xff]
      %v2108 = vld [vmem:[%s2100 + $0x38] sm:$0xff]
      %v2109 = vld [vmem:[%s2100 + $0x40] sm:$0xff]
      %v2110 = vld [vmem:[%s2100 + $0x48] sm:$0xff]
      %v2111 = vld [vmem:[%s2100 + $0x50] sm:$0xff]
      %v2112 = vld [vmem:[%s2100 + $0x58] sm:$0xff]
      %v2113 = vld [vmem:[%s2100 + $0x60] sm:$0xff]
      %v2114 = vld [vmem:[%s2100 + $0x68] sm:$0xff]
      %v2115 = vld [vmem:[%s2100 + $0x70] sm:$0xff]
      %v2116 = vld [vmem:[%s2100 + $0x78] sm:$0xff]
      %v2117 = vld [vmem:[%s2100 + $0x80] sm:$0x33]
      %v2118 = vld [vmem:[%s2100 + $0x88] sm:$0x33]
      %v2119 = vld [vmem:[%s2100 + $0x90] sm:$0x33]
      %v2120 = vld [vmem:[%s2100 + $0x98] sm:$0x33]
      %s2121 = scalar_lea.vmem %s2, 8
      %v2122 = vld [vmem:[%s2121] sm:$0xff]
      %v2124 = vlaneseq
      %v2125 = vshrl.u32 %v2124, 7
      %v2126 = vsub.s32 0, %v2125
      %v2127 = vrot.slane %v2122, %v2126
      %v2128 = vlaneseq
      %v2129 = vshrl.u32 %v2128, 7
      %v2130 = vsub.s32 1, %v2129
      %v2131 = vrot.slane %v2122, %v2130
      %v2132 = vlaneseq
      %v2133 = vshrl.u32 %v2132, 7
      %v2134 = vsub.s32 2, %v2133
      %v2135 = vrot.slane %v2122, %v2134
      %v2136 = vlaneseq
      %v2137 = vshrl.u32 %v2136, 7
      %v2138 = vsub.s32 3, %v2137
      %v2139 = vrot.slane %v2122, %v2138
      %v2140 = vlaneseq
      %v2141 = vshrl.u32 %v2140, 7
      %v2142 = vsub.s32 4, %v2141
      %v2143 = vrot.slane %v2122, %v2142
      %v2144 = vlaneseq
      %v2145 = vshrl.u32 %v2144, 7
      %v2146 = vsub.s32 5, %v2145
      %v2147 = vrot.slane %v2122, %v2146
      %v2148 = vlaneseq
      %v2149 = vshrl.u32 %v2148, 7
      %v2150 = vsub.s32 6, %v2149
      %v2151 = vrot.slane %v2122, %v2150
      %v2152 = vlaneseq
      %v2153 = vshrl.u32 %v2152, 7
      %v2154 = vsub.s32 7, %v2153
      %v2155 = vrot.slane %v2122, %v2154
      %v2184 = vunpack.c.l.b16 %v2101
      %v2185 = vunpack.c.h.b16 %v2101
      %v2186 = vunpack.c.l.b16 %v2102
      %v2187 = vunpack.c.h.b16 %v2102
      %v2188 = vunpack.c.l.b16 %v2103
      %v2189 = vunpack.c.h.b16 %v2103
      %v2190 = vunpack.c.l.b16 %v2104
      %v2191 = vunpack.c.h.b16 %v2104
      %v2192 = vunpack.c.l.b16 %v2105
      %v2193 = vunpack.c.h.b16 %v2105
      %v2194 = vunpack.c.l.b16 %v2106
      %v2195 = vunpack.c.h.b16 %v2106
      %v2196 = vunpack.c.l.b16 %v2107
      %v2197 = vunpack.c.h.b16 %v2107
      %v2198 = vunpack.c.l.b16 %v2108
      %v2199 = vunpack.c.h.b16 %v2108
      %v2200 = vunpack.c.l.b16 %v2109
      %v2201 = vunpack.c.h.b16 %v2109
      %v2202 = vunpack.c.l.b16 %v2110
      %v2203 = vunpack.c.h.b16 %v2110
      %v2204 = vunpack.c.l.b16 %v2111
      %v2205 = vunpack.c.h.b16 %v2111
      %v2206 = vunpack.c.l.b16 %v2112
      %v2207 = vunpack.c.h.b16 %v2112
      %v2208 = vunpack.c.l.b16 %v2113
      %v2209 = vunpack.c.h.b16 %v2113
      %v2210 = vunpack.c.l.b16 %v2114
      %v2211 = vunpack.c.h.b16 %v2114
      %v2212 = vunpack.c.l.b16 %v2115
      %v2213 = vunpack.c.h.b16 %v2115
      %v2214 = vunpack.c.l.b16 %v2116
      %v2215 = vunpack.c.h.b16 %v2116
      %v2216 = vunpack.c.l.b16 %v2117
      %v2217 = vunpack.c.h.b16 %v2117
      %v2218 = vunpack.c.l.b16 %v2118
      %v2219 = vunpack.c.h.b16 %v2118
      %v2220 = vunpack.c.l.b16 %v2119
      %v2221 = vunpack.c.h.b16 %v2119
      %v2222 = vunpack.c.l.b16 %v2120
      %v2223 = vunpack.c.h.b16 %v2120
      %v2224 = vpack.c.b16 %v2192, %v2184
      %v2225 = vpack.c.b16 %v2193, %v2185
      %v2226 = vpack.c.b16 %v2194, %v2186
      %v2227 = vpack.c.b16 %v2195, %v2187
      %v2228 = vpack.c.b16 %v2196, %v2188
      %v2229 = vpack.c.b16 %v2197, %v2189
      %v2230 = vpack.c.b16 %v2198, %v2190
      %v2231 = vpack.c.b16 %v2199, %v2191
      %v2232 = vpack.c.b16 %v2208, %v2200
      %v2233 = vpack.c.b16 %v2209, %v2201
      %v2234 = vpack.c.b16 %v2210, %v2202
      %v2235 = vpack.c.b16 %v2211, %v2203
      %v2236 = vpack.c.b16 %v2212, %v2204
      %v2237 = vpack.c.b16 %v2213, %v2205
      %v2238 = vpack.c.b16 %v2214, %v2206
      %v2239 = vpack.c.b16 %v2215, %v2207
      %v2240 = vpack.c.b16 %v2216, %v2216
      %v2241 = vpack.c.b16 %v2217, %v2217
      %v2242 = vpack.c.b16 %v2218, %v2218
      %v2243 = vpack.c.b16 %v2219, %v2219
      %v2244 = vpack.c.b16 %v2220, %v2220
      %v2245 = vpack.c.b16 %v2221, %v2221
      %v2246 = vpack.c.b16 %v2222, %v2222
      %v2247 = vpack.c.b16 %v2223, %v2223
      %v2265 = vsel %vm508, %v2240, 0
      %v2268 = vsel %vm508, %v2241, 0
      %v2271 = vsel %vm508, %v2242, 0
      %v2274 = vsel %vm508, %v2243, 0
      %v2277 = vsel %vm508, %v2244, 0
      %v2280 = vsel %vm508, %v2245, 0
      %v2283 = vsel %vm508, %v2246, 0
      %v2286 = vsel %vm508, %v2247, 0
      %2288 = vmatprep.subr.bf16.mxu0 %v2225
      %2289 = vmatpush1.bf16.msra.mxu0 %v2224
      %2290 = vmatprep.subr.bf16.mxu0 %v2233
      %2291 = vmatpush1.bf16.msra.mxu0 %v2232
      %2292 = vmatprep.subr.bf16.mxu0 %v2268
      %2293 = vmatpush1.bf16.msra.mxu0 %v2265
      %2294 = vmatprep.subr.bf16.mxu0 0
      %2295 = vmatpush1.bf16.msra.mxu0 0
      %2296 = vmatprep.subr.bf16.mxu0 0
      %2297 = vmatpush1.bf16.msra.mxu0 0
      %2298 = vmatprep.subr.bf16.mxu0 0
      %2299 = vmatpush1.bf16.msra.mxu0 0
      %2300 = vmatprep.subr.bf16.mxu0 0
      %2301 = vmatpush1.bf16.msra.mxu0 0
      %2302 = vmatprep.subr.bf16.mxu0 0
      %2303 = vmatpush1.bf16.msra.mxu0 0
      %2304 = vmatprep.subr.bf16.mxu0 0
      %2305 = vmatpush1.bf16.msra.mxu0 0
      %2306 = vmatprep.subr.bf16.mxu0 0
      %2307 = vmatpush1.bf16.msra.mxu0 0
      %2308 = vmatprep.subr.bf16.mxu0 0
      %2309 = vmatpush1.bf16.msra.mxu0 0
      %2310 = vmatprep.subr.bf16.mxu0 0
      %2311 = vmatpush1.bf16.msra.mxu0 0
      %2312 = vmatprep.subr.bf16.mxu0 0
      %2313 = vmatpush1.bf16.msra.mxu0 0
      %2314 = vmatprep.subr.bf16.mxu0 0
      %2315 = vmatpush1.bf16.msra.mxu0 0
      %2316 = vmatprep.subr.bf16.mxu0 0
      %2317 = vmatpush1.bf16.msra.mxu0 0
      %2318 = vmatprep.subr.bf16.mxu0 0
      %2319 = vmatpush1.bf16.msra.mxu0 0
      %2320 = vmatprep.mubr.bf16.mxu0 0
      %2321 = vmatmul.mubr.bf16.gmra.mrb[0].mxu0 %v485
      %v2322 = vpop.f32.mrb[0].mxu0
      %v2323 = vadd.f32 %v2127, %v2322
      %v2324 = vpop.f32.mrb[0].mxu0
      %v2325 = vadd.f32 %v2131, %v2324
      %v2326 = vpop.f32.mrb[0].mxu0
      %v2327 = vadd.f32 %v2127, %v2326
      %v2328 = vpop.f32.mrb[0].mxu0
      %v2329 = vadd.f32 %v2131, %v2328
      %2330 = vmatprep.mubr.bf16.mxu0 0
      %2331 = vmatmul.mubr.bf16.gmra.mrb[0].mxu0 %v488
      %v2332 = vpop.f32.mrb[0].mxu0
      %v2333 = vadd.f32 %v2127, %v2332
      %v2334 = vpop.f32.mrb[0].mxu0
      %v2335 = vadd.f32 %v2131, %v2334
      %v2336 = vpop.f32.mrb[0].mxu0
      %v2337 = vadd.f32 %v2127, %v2336
      %v2338 = vpop.f32.mrb[0].mxu0
      %v2339 = vadd.f32 %v2131, %v2338
      %2340 = vmatprep.mubr.bf16.mxu0 0
      %2341 = vmatmul.mubr.bf16.gmra.mrb[0].mxu0 %v491
      %v2342 = vpop.f32.mrb[0].mxu0
      %v2343 = vadd.f32 %v2127, %v2342
      %v2344 = vpop.f32.mrb[0].mxu0
      %v2345 = vadd.f32 %v2131, %v2344
      %v2346 = vpop.f32.mrb[0].mxu0
      %v2347 = vadd.f32 %v2127, %v2346
      %v2348 = vpop.f32.mrb[0].mxu0
      %v2349 = vadd.f32 %v2131, %v2348
      %2350 = vmatprep.mubr.bf16.mxu0 0
      %2351 = vmatmul.mubr.bf16.gmra.mrb[0].mxu0 %v494
      %v2352 = vpop.f32.mrb[0].mxu0
      %v2353 = vadd.f32 %v2127, %v2352
      %v2354 = vpop.f32.mrb[0].mxu0
      %v2355 = vadd.f32 %v2131, %v2354
      %v2356 = vpop.f32.mrb[0].mxu0
      %v2357 = vadd.f32 %v2127, %v2356
      %v2358 = vpop.f32.mrb[0].mxu0
      %v2359 = vadd.f32 %v2131, %v2358
      %2360 = vmatprep.mubr.bf16.mxu0 0
      %2361 = vmatmul.mubr.bf16.gmra.mrb[0].mxu0 %v497
      %v2362 = vpop.f32.mrb[0].mxu0
      %v2363 = vadd.f32 %v2127, %v2362
      %v2364 = vpop.f32.mrb[0].mxu0
      %v2365 = vadd.f32 %v2131, %v2364
      %v2366 = vpop.f32.mrb[0].mxu0
      %v2367 = vadd.f32 %v2127, %v2366
      %v2368 = vpop.f32.mrb[0].mxu0
      %v2369 = vadd.f32 %v2131, %v2368
      %2370 = vmatprep.mubr.bf16.mxu0 0
      %2371 = vmatmul.mubr.bf16.gmra.mrb[0].mxu0 %v500
      %v2372 = vpop.f32.mrb[0].mxu0
      %v2373 = vadd.f32 %v2127, %v2372
      %v2374 = vpop.f32.mrb[0].mxu0
      %v2375 = vadd.f32 %v2131, %v2374
      %v2376 = vpop.f32.mrb[0].mxu0
      %v2377 = vadd.f32 %v2127, %v2376
      %v2378 = vpop.f32.mrb[0].mxu0
      %v2379 = vadd.f32 %v2131, %v2378
      %2380 = vmatprep.mubr.bf16.mxu0 0
      %2381 = vmatmul.mubr.bf16.gmra.mrb[0].mxu0 %v503
      %v2382 = vpop.f32.mrb[0].mxu0
      %v2383 = vadd.f32 %v2127, %v2382
      %v2384 = vpop.f32.mrb[0].mxu0
      %v2385 = vadd.f32 %v2131, %v2384
      %v2386 = vpop.f32.mrb[0].mxu0
      %v2387 = vadd.f32 %v2127, %v2386
      %v2388 = vpop.f32.mrb[0].mxu0
      %v2389 = vadd.f32 %v2131, %v2388
      %2390 = vmatprep.mubr.bf16.mxu0 0
      %2391 = vmatmul.mubr.bf16.gmra.mrb[0].mxu0 %v506
      %v2392 = vpop.f32.mrb[0].mxu0
      %v2393 = vadd.f32 %v2127, %v2392
      %v2394 = vpop.f32.mrb[0].mxu0
      %v2395 = vadd.f32 %v2131, %v2394
      %v2396 = vpop.f32.mrb[0].mxu0
      %v2397 = vadd.f32 %v2127, %v2396
      %v2398 = vpop.f32.mrb[0].mxu0
      %v2399 = vadd.f32 %v2131, %v2398
      %2400 = vdwg.mxu0
      %2401 = vmatprep.subr.bf16.mxu0 %v2227
      %2402 = vmatpush1.bf16.msra.mxu0 %v2226
      %2403 = vmatprep.subr.bf16.mxu0 %v2235
      %2404 = vmatpush1.bf16.msra.mxu0 %v2234
      %2405 = vmatprep.subr.bf16.mxu0 %v2274
      %2406 = vmatpush1.bf16.msra.mxu0 %v2271
      %2407 = vmatprep.subr.bf16.mxu0 0
      %2408 = vmatpush1.bf16.msra.mxu0 0
      %2409 = vmatprep.subr.bf16.mxu0 0
      %2410 = vmatpush1.bf16.msra.mxu0 0
      %2411 = vmatprep.subr.bf16.mxu0 0
      %2412 = vmatpush1.bf16.msra.mxu0 0
      %2413 = vmatprep.subr.bf16.mxu0 0
      %2414 = vmatpush1.bf16.msra.mxu0 0
      %2415 = vmatprep.subr.bf16.mxu0 0
      %2416 = vmatpush1.bf16.msra.mxu0 0
      %2417 = vmatprep.subr.bf16.mxu0 0
      %2418 = vmatpush1.bf16.msra.mxu0 0
      %2419 = vmatprep.subr.bf16.mxu0 0
      %2420 = vmatpush1.bf16.msra.mxu0 0
      %2421 = vmatprep.subr.bf16.mxu0 0
      %2422 = vmatpush1.bf16.msra.mxu0 0
      %2423 = vmatprep.subr.bf16.mxu0 0
      %2424 = vmatpush1.bf16.msra.mxu0 0
      %2425 = vmatprep.subr.bf16.mxu0 0
      %2426 = vmatpush1.bf16.msra.mxu0 0
      %2427 = vmatprep.subr.bf16.mxu0 0
      %2428 = vmatpush1.bf16.msra.mxu0 0
      %2429 = vmatprep.subr.bf16.mxu0 0
      %2430 = vmatpush1.bf16.msra.mxu0 0
      %2431 = vmatprep.subr.bf16.mxu0 0
      %2432 = vmatpush1.bf16.msra.mxu0 0
      %2433 = vmatprep.mubr.bf16.mxu0 0
      %2434 = vmatmul.mubr.bf16.gmra.mrb[0].mxu0 %v485
      %v2435 = vpop.f32.mrb[0].mxu0
      %v2436 = vadd.f32 %v2135, %v2435
      %v2437 = vpop.f32.mrb[0].mxu0
      %v2438 = vadd.f32 %v2139, %v2437
      %v2439 = vpop.f32.mrb[0].mxu0
      %v2440 = vadd.f32 %v2135, %v2439
      %v2441 = vpop.f32.mrb[0].mxu0
      %v2442 = vadd.f32 %v2139, %v2441
      %2443 = vmatprep.mubr.bf16.mxu0 0
      %2444 = vmatmul.mubr.bf16.gmra.mrb[0].mxu0 %v488
      %v2445 = vpop.f32.mrb[0].mxu0
      %v2446 = vadd.f32 %v2135, %v2445
      %v2447 = vpop.f32.mrb[0].mxu0
      %v2448 = vadd.f32 %v2139, %v2447
      %v2449 = vpop.f32.mrb[0].mxu0
      %v2450 = vadd.f32 %v2135, %v2449
      %v2451 = vpop.f32.mrb[0].mxu0
      %v2452 = vadd.f32 %v2139, %v2451
      %2453 = vmatprep.mubr.bf16.mxu0 0
      %2454 = vmatmul.mubr.bf16.gmra.mrb[0].mxu0 %v491
      %v2455 = vpop.f32.mrb[0].mxu0
      %v2456 = vadd.f32 %v2135, %v2455
      %v2457 = vpop.f32.mrb[0].mxu0
      %v2458 = vadd.f32 %v2139, %v2457
      %v2459 = vpop.f32.mrb[0].mxu0
      %v2460 = vadd.f32 %v2135, %v2459
      %v2461 = vpop.f32.mrb[0].mxu0
      %v2462 = vadd.f32 %v2139, %v2461
      %2463 = vmatprep.mubr.bf16.mxu0 0
      %2464 = vmatmul.mubr.bf16.gmra.mrb[0].mxu0 %v494
      %v2465 = vpop.f32.mrb[0].mxu0
      %v2466 = vadd.f32 %v2135, %v2465
      %v2467 = vpop.f32.mrb[0].mxu0
      %v2468 = vadd.f32 %v2139, %v2467
      %v2469 = vpop.f32.mrb[0].mxu0
      %v2470 = vadd.f32 %v2135, %v2469
      %v2471 = vpop.f32.mrb[0].mxu0
      %v2472 = vadd.f32 %v2139, %v2471
      %2473 = vmatprep.mubr.bf16.mxu0 0
      %2474 = vmatmul.mubr.bf16.gmra.mrb[0].mxu0 %v497
      %v2475 = vpop.f32.mrb[0].mxu0
      %v2476 = vadd.f32 %v2135, %v2475
      %v2477 = vpop.f32.mrb[0].mxu0
      %v2478 = vadd.f32 %v2139, %v2477
      %v2479 = vpop.f32.mrb[0].mxu0
      %v2480 = vadd.f32 %v2135, %v2479
      %v2481 = vpop.f32.mrb[0].mxu0
      %v2482 = vadd.f32 %v2139, %v2481
      %2483 = vmatprep.mubr.bf16.mxu0 0
      %2484 = vmatmul.mubr.bf16.gmra.mrb[0].mxu0 %v500
      %v2485 = vpop.f32.mrb[0].mxu0
      %v2486 = vadd.f32 %v2135, %v2485
      %v2487 = vpop.f32.mrb[0].mxu0
      %v2488 = vadd.f32 %v2139, %v2487
      %v2489 = vpop.f32.mrb[0].mxu0
      %v2490 = vadd.f32 %v2135, %v2489
      %v2491 = vpop.f32.mrb[0].mxu0
      %v2492 = vadd.f32 %v2139, %v2491
      %2493 = vmatprep.mubr.bf16.mxu0 0
      %2494 = vmatmul.mubr.bf16.gmra.mrb[0].mxu0 %v503
      %v2495 = vpop.f32.mrb[0].mxu0
      %v2496 = vadd.f32 %v2135, %v2495
      %v2497 = vpop.f32.mrb[0].mxu0
      %v2498 = vadd.f32 %v2139, %v2497
      %v2499 = vpop.f32.mrb[0].mxu0
      %v2500 = vadd.f32 %v2135, %v2499
      %v2501 = vpop.f32.mrb[0].mxu0
      %v2502 = vadd.f32 %v2139, %v2501
      %2503 = vmatprep.mubr.bf16.mxu0 0
      %2504 = vmatmul.mubr.bf16.gmra.mrb[0].mxu0 %v506
      %v2505 = vpop.f32.mrb[0].mxu0
      %v2506 = vadd.f32 %v2135, %v2505
      %v2507 = vpop.f32.mrb[0].mxu0
      %v2508 = vadd.f32 %v2139, %v2507
      %v2509 = vpop.f32.mrb[0].mxu0
      %v2510 = vadd.f32 %v2135, %v2509
      %v2511 = vpop.f32.mrb[0].mxu0
      %v2512 = vadd.f32 %v2139, %v2511
      %2513 = vdwg.mxu0
      %2514 = vmatprep.subr.bf16.mxu0 %v2229
      %2515 = vmatpush1.bf16.msra.mxu0 %v2228
      %2516 = vmatprep.subr.bf16.mxu0 %v2237
      %2517 = vmatpush1.bf16.msra.mxu0 %v2236
      %2518 = vmatprep.subr.bf16.mxu0 %v2280
      %2519 = vmatpush1.bf16.msra.mxu0 %v2277
      %2520 = vmatprep.subr.bf16.mxu0 0
      %2521 = vmatpush1.bf16.msra.mxu0 0
      %2522 = vmatprep.subr.bf16.mxu0 0
      %2523 = vmatpush1.bf16.msra.mxu0 0
      %2524 = vmatprep.subr.bf16.mxu0 0
      %2525 = vmatpush1.bf16.msra.mxu0 0
      %2526 = vmatprep.subr.bf16.mxu0 0
      %2527 = vmatpush1.bf16.msra.mxu0 0
      %2528 = vmatprep.subr.bf16.mxu0 0
      %2529 = vmatpush1.bf16.msra.mxu0 0
      %2530 = vmatprep.subr.bf16.mxu0 0
      %2531 = vmatpush1.bf16.msra.mxu0 0
      %2532 = vmatprep.subr.bf16.mxu0 0
      %2533 = vmatpush1.bf16.msra.mxu0 0
      %2534 = vmatprep.subr.bf16.mxu0 0
      %2535 = vmatpush1.bf16.msra.mxu0 0
      %2536 = vmatprep.subr.bf16.mxu0 0
      %2537 = vmatpush1.bf16.msra.mxu0 0
      %2538 = vmatprep.subr.bf16.mxu0 0
      %2539 = vmatpush1.bf16.msra.mxu0 0
      %2540 = vmatprep.subr.bf16.mxu0 0
      %2541 = vmatpush1.bf16.msra.mxu0 0
      %2542 = vmatprep.subr.bf16.mxu0 0
      %2543 = vmatpush1.bf16.msra.mxu0 0
      %2544 = vmatprep.subr.bf16.mxu0 0
      %2545 = vmatpush1.bf16.msra.mxu0 0
      %2546 = vmatprep.mubr.bf16.mxu0 0
      %2547 = vmatmul.mubr.bf16.gmra.mrb[0].mxu0 %v485
      %v2548 = vpop.f32.mrb[0].mxu0
      %v2549 = vadd.f32 %v2143, %v2548
      %v2550 = vpop.f32.mrb[0].mxu0
      %v2551 = vadd.f32 %v2147, %v2550
      %v2552 = vpop.f32.mrb[0].mxu0
      %v2553 = vadd.f32 %v2143, %v2552
      %v2554 = vpop.f32.mrb[0].mxu0
      %v2555 = vadd.f32 %v2147, %v2554
      %2556 = vmatprep.mubr.bf16.mxu0 0
      %2557 = vmatmul.mubr.bf16.gmra.mrb[0].mxu0 %v488
      %v2558 = vpop.f32.mrb[0].mxu0
      %v2559 = vadd.f32 %v2143, %v2558
      %v2560 = vpop.f32.mrb[0].mxu0
      %v2561 = vadd.f32 %v2147, %v2560
      %v2562 = vpop.f32.mrb[0].mxu0
      %v2563 = vadd.f32 %v2143, %v2562
      %v2564 = vpop.f32.mrb[0].mxu0
      %v2565 = vadd.f32 %v2147, %v2564
      %2566 = vmatprep.mubr.bf16.mxu0 0
      %2567 = vmatmul.mubr.bf16.gmra.mrb[0].mxu0 %v491
      %v2568 = vpop.f32.mrb[0].mxu0
      %v2569 = vadd.f32 %v2143, %v2568
      %v2570 = vpop.f32.mrb[0].mxu0
      %v2571 = vadd.f32 %v2147, %v2570
      %v2572 = vpop.f32.mrb[0].mxu0
      %v2573 = vadd.f32 %v2143, %v2572
      %v2574 = vpop.f32.mrb[0].mxu0
      %v2575 = vadd.f32 %v2147, %v2574
      %2576 = vmatprep.mubr.bf16.mxu0 0
      %2577 = vmatmul.mubr.bf16.gmra.mrb[0].mxu0 %v494
      %v2578 = vpop.f32.mrb[0].mxu0
      %v2579 = vadd.f32 %v2143, %v2578
      %v2580 = vpop.f32.mrb[0].mxu0
      %v2581 = vadd.f32 %v2147, %v2580
      %v2582 = vpop.f32.mrb[0].mxu0
      %v2583 = vadd.f32 %v2143, %v2582
      %v2584 = vpop.f32.mrb[0].mxu0
      %v2585 = vadd.f32 %v2147, %v2584
      %2586 = vmatprep.mubr.bf16.mxu0 0
      %2587 = vmatmul.mubr.bf16.gmra.mrb[0].mxu0 %v497
      %v2588 = vpop.f32.mrb[0].mxu0
      %v2589 = vadd.f32 %v2143, %v2588
      %v2590 = vpop.f32.mrb[0].mxu0
      %v2591 = vadd.f32 %v2147, %v2590
      %v2592 = vpop.f32.mrb[0].mxu0
      %v2593 = vadd.f32 %v2143, %v2592
      %v2594 = vpop.f32.mrb[0].mxu0
      %v2595 = vadd.f32 %v2147, %v2594
      %2596 = vmatprep.mubr.bf16.mxu0 0
      %2597 = vmatmul.mubr.bf16.gmra.mrb[0].mxu0 %v500
      %v2598 = vpop.f32.mrb[0].mxu0
      %v2599 = vadd.f32 %v2143, %v2598
      %v2600 = vpop.f32.mrb[0].mxu0
      %v2601 = vadd.f32 %v2147, %v2600
      %v2602 = vpop.f32.mrb[0].mxu0
      %v2603 = vadd.f32 %v2143, %v2602
      %v2604 = vpop.f32.mrb[0].mxu0
      %v2605 = vadd.f32 %v2147, %v2604
      %2606 = vmatprep.mubr.bf16.mxu0 0
      %2607 = vmatmul.mubr.bf16.gmra.mrb[0].mxu0 %v503
      %v2608 = vpop.f32.mrb[0].mxu0
      %v2609 = vadd.f32 %v2143, %v2608
      %v2610 = vpop.f32.mrb[0].mxu0
      %v2611 = vadd.f32 %v2147, %v2610
      %v2612 = vpop.f32.mrb[0].mxu0
      %v2613 = vadd.f32 %v2143, %v2612
      %v2614 = vpop.f32.mrb[0].mxu0
      %v2615 = vadd.f32 %v2147, %v2614
      %2616 = vmatprep.mubr.bf16.mxu0 0
      %2617 = vmatmul.mubr.bf16.gmra.mrb[0].mxu0 %v506
      %v2618 = vpop.f32.mrb[0].mxu0
      %v2619 = vadd.f32 %v2143, %v2618
      %v2620 = vpop.f32.mrb[0].mxu0
      %v2621 = vadd.f32 %v2147, %v2620
      %v2622 = vpop.f32.mrb[0].mxu0
      %v2623 = vadd.f32 %v2143, %v2622
      %v2624 = vpop.f32.mrb[0].mxu0
      %v2625 = vadd.f32 %v2147, %v2624
      %2626 = vdwg.mxu0
      %2627 = vmatprep.subr.bf16.mxu0 %v2231
      %2628 = vmatpush1.bf16.msra.mxu0 %v2230
      %2629 = vmatprep.subr.bf16.mxu0 %v2239
      %2630 = vmatpush1.bf16.msra.mxu0 %v2238
      %2631 = vmatprep.subr.bf16.mxu0 %v2286
      %2632 = vmatpush1.bf16.msra.mxu0 %v2283
      %2633 = vmatprep.subr.bf16.mxu0 0
      %2634 = vmatpush1.bf16.msra.mxu0 0
      %2635 = vmatprep.subr.bf16.mxu0 0
      %2636 = vmatpush1.bf16.msra.mxu0 0
      %2637 = vmatprep.subr.bf16.mxu0 0
      %2638 = vmatpush1.bf16.msra.mxu0 0
      %2639 = vmatprep.subr.bf16.mxu0 0
      %2640 = vmatpush1.bf16.msra.mxu0 0
      %2641 = vmatprep.subr.bf16.mxu0 0
      %2642 = vmatpush1.bf16.msra.mxu0 0
      %2643 = vmatprep.subr.bf16.mxu0 0
      %2644 = vmatpush1.bf16.msra.mxu0 0
      %2645 = vmatprep.subr.bf16.mxu0 0
      %2646 = vmatpush1.bf16.msra.mxu0 0
      %2647 = vmatprep.subr.bf16.mxu0 0
      %2648 = vmatpush1.bf16.msra.mxu0 0
      %2649 = vmatprep.subr.bf16.mxu0 0
      %2650 = vmatpush1.bf16.msra.mxu0 0
      %2651 = vmatprep.subr.bf16.mxu0 0
      %2652 = vmatpush1.bf16.msra.mxu0 0
      %2653 = vmatprep.subr.bf16.mxu0 0
      %2654 = vmatpush1.bf16.msra.mxu0 0
      %2655 = vmatprep.subr.bf16.mxu0 0
      %2656 = vmatpush1.bf16.msra.mxu0 0
      %2657 = vmatprep.subr.bf16.mxu0 0
      %2658 = vmatpush1.bf16.msra.mxu0 0
      %2659 = vmatprep.mubr.bf16.mxu0 0
      %2660 = vmatmul.mubr.bf16.gmra.mrb[0].mxu0 %v485
      %v2661 = vpop.f32.mrb[0].mxu0
      %v2662 = vadd.f32 %v2151, %v2661
      %v2663 = vpop.f32.mrb[0].mxu0
      %v2664 = vadd.f32 %v2155, %v2663
      %v2665 = vpop.f32.mrb[0].mxu0
      %v2666 = vadd.f32 %v2151, %v2665
      %v2667 = vpop.f32.mrb[0].mxu0
      %v2668 = vadd.f32 %v2155, %v2667
      %2669 = vmatprep.mubr.bf16.mxu0 0
      %2670 = vmatmul.mubr.bf16.gmra.mrb[0].mxu0 %v488
      %v2671 = vpop.f32.mrb[0].mxu0
      %v2672 = vadd.f32 %v2151, %v2671
      %v2673 = vpop.f32.mrb[0].mxu0
      %v2674 = vadd.f32 %v2155, %v2673
      %v2675 = vpop.f32.mrb[0].mxu0
      %v2676 = vadd.f32 %v2151, %v2675
      %v2677 = vpop.f32.mrb[0].mxu0
      %v2678 = vadd.f32 %v2155, %v2677
      %2679 = vmatprep.mubr.bf16.mxu0 0
      %2680 = vmatmul.mubr.bf16.gmra.mrb[0].mxu0 %v491
      %v2681 = vpop.f32.mrb[0].mxu0
      %v2682 = vadd.f32 %v2151, %v2681
      %v2683 = vpop.f32.mrb[0].mxu0
      %v2684 = vadd.f32 %v2155, %v2683
      %v2685 = vpop.f32.mrb[0].mxu0
      %v2686 = vadd.f32 %v2151, %v2685
      %v2687 = vpop.f32.mrb[0].mxu0
      %v2688 = vadd.f32 %v2155, %v2687
      %2689 = vmatprep.mubr.bf16.mxu0 0
      %2690 = vmatmul.mubr.bf16.gmra.mrb[0].mxu0 %v494
      %v2691 = vpop.f32.mrb[0].mxu0
      %v2692 = vadd.f32 %v2151, %v2691
      %v2693 = vpop.f32.mrb[0].mxu0
      %v2694 = vadd.f32 %v2155, %v2693
      %v2695 = vpop.f32.mrb[0].mxu0
      %v2696 = vadd.f32 %v2151, %v2695
      %v2697 = vpop.f32.mrb[0].mxu0
      %v2698 = vadd.f32 %v2155, %v2697
      %2699 = vmatprep.mubr.bf16.mxu0 0
      %2700 = vmatmul.mubr.bf16.gmra.mrb[0].mxu0 %v497
      %v2701 = vpop.f32.mrb[0].mxu0
      %v2702 = vadd.f32 %v2151, %v2701
      %v2703 = vpop.f32.mrb[0].mxu0
      %v2704 = vadd.f32 %v2155, %v2703
      %v2705 = vpop.f32.mrb[0].mxu0
      %v2706 = vadd.f32 %v2151, %v2705
      %v2707 = vpop.f32.mrb[0].mxu0
      %v2708 = vadd.f32 %v2155, %v2707
      %2709 = vmatprep.mubr.bf16.mxu0 0
      %2710 = vmatmul.mubr.bf16.gmra.mrb[0].mxu0 %v500
      %v2711 = vpop.f32.mrb[0].mxu0
      %v2712 = vadd.f32 %v2151, %v2711
      %v2713 = vpop.f32.mrb[0].mxu0
      %v2714 = vadd.f32 %v2155, %v2713
      %v2715 = vpop.f32.mrb[0].mxu0
      %v2716 = vadd.f32 %v2151, %v2715
      %v2717 = vpop.f32.mrb[0].mxu0
      %v2718 = vadd.f32 %v2155, %v2717
      %2719 = vmatprep.mubr.bf16.mxu0 0
      %2720 = vmatmul.mubr.bf16.gmra.mrb[0].mxu0 %v503
      %v2721 = vpop.f32.mrb[0].mxu0
      %v2722 = vadd.f32 %v2151, %v2721
      %v2723 = vpop.f32.mrb[0].mxu0
      %v2724 = vadd.f32 %v2155, %v2723
      %v2725 = vpop.f32.mrb[0].mxu0
      %v2726 = vadd.f32 %v2151, %v2725
      %v2727 = vpop.f32.mrb[0].mxu0
      %v2728 = vadd.f32 %v2155, %v2727
      %2729 = vmatprep.mubr.bf16.mxu0 0
      %2730 = vmatmul.mubr.bf16.gmra.mrb[0].mxu0 %v506
      %v2731 = vpop.f32.mrb[0].mxu0
      %v2732 = vadd.f32 %v2151, %v2731
      %v2733 = vpop.f32.mrb[0].mxu0
      %v2734 = vadd.f32 %v2155, %v2733
      %v2735 = vpop.f32.mrb[0].mxu0
      %v2736 = vadd.f32 %v2151, %v2735
      %v2737 = vpop.f32.mrb[0].mxu0
      %v2738 = vadd.f32 %v2155, %v2737
      %2739 = vdwg.mxu0
      %v2740 = vmax.f32 %v2323, 0.0
      %v2741 = vmax.f32 %v2325, 0.0
      %v2742 = vmax.f32 %v2436, 0.0
      %v2743 = vmax.f32 %v2438, 0.0
      %v2744 = vmax.f32 %v2549, 0.0
      %v2745 = vmax.f32 %v2551, 0.0
      %v2746 = vmax.f32 %v2662, 0.0
      %v2747 = vmax.f32 %v2664, 0.0
      %v2748 = vmax.f32 %v2327, 0.0
      %v2749 = vmax.f32 %v2329, 0.0
      %v2750 = vmax.f32 %v2440, 0.0
      %v2751 = vmax.f32 %v2442, 0.0
      %v2752 = vmax.f32 %v2553, 0.0
      %v2753 = vmax.f32 %v2555, 0.0
      %v2754 = vmax.f32 %v2666, 0.0
      %v2755 = vmax.f32 %v2668, 0.0
      %v2756 = vmax.f32 %v2333, 0.0
      %v2757 = vmax.f32 %v2335, 0.0
      %v2758 = vmax.f32 %v2446, 0.0
      %v2759 = vmax.f32 %v2448, 0.0
      %v2760 = vmax.f32 %v2559, 0.0
      %v2761 = vmax.f32 %v2561, 0.0
      %v2762 = vmax.f32 %v2672, 0.0
      %v2763 = vmax.f32 %v2674, 0.0
      %v2764 = vmax.f32 %v2337, 0.0
      %v2765 = vmax.f32 %v2339, 0.0
      %v2766 = vmax.f32 %v2450, 0.0
      %v2767 = vmax.f32 %v2452, 0.0
      %v2768 = vmax.f32 %v2563, 0.0
      %v2769 = vmax.f32 %v2565, 0.0
      %v2770 = vmax.f32 %v2676, 0.0
      %v2771 = vmax.f32 %v2678, 0.0
      %v2772 = vmax.f32 %v2343, 0.0
      %v2773 = vmax.f32 %v2345, 0.0
      %v2774 = vmax.f32 %v2456, 0.0
      %v2775 = vmax.f32 %v2458, 0.0
      %v2776 = vmax.f32 %v2569, 0.0
      %v2777 = vmax.f32 %v2571, 0.0
      %v2778 = vmax.f32 %v2682, 0.0
      %v2779 = vmax.f32 %v2684, 0.0
      %v2780 = vmax.f32 %v2347, 0.0
      %v2781 = vmax.f32 %v2349, 0.0
      %v2782 = vmax.f32 %v2460, 0.0
      %v2783 = vmax.f32 %v2462, 0.0
      %v2784 = vmax.f32 %v2573, 0.0
      %v2785 = vmax.f32 %v2575, 0.0
      %v2786 = vmax.f32 %v2686, 0.0
      %v2787 = vmax.f32 %v2688, 0.0
      %v2788 = vmax.f32 %v2353, 0.0
      %v2789 = vmax.f32 %v2355, 0.0
      %v2790 = vmax.f32 %v2466, 0.0
      %v2791 = vmax.f32 %v2468, 0.0
      %v2792 = vmax.f32 %v2579, 0.0
      %v2793 = vmax.f32 %v2581, 0.0
      %v2794 = vmax.f32 %v2692, 0.0
      %v2795 = vmax.f32 %v2694, 0.0
      %v2796 = vmax.f32 %v2357, 0.0
      %v2797 = vmax.f32 %v2359, 0.0
      %v2798 = vmax.f32 %v2470, 0.0
      %v2799 = vmax.f32 %v2472, 0.0
      %v2800 = vmax.f32 %v2583, 0.0
      %v2801 = vmax.f32 %v2585, 0.0
      %v2802 = vmax.f32 %v2696, 0.0
      %v2803 = vmax.f32 %v2698, 0.0
      %v2804 = vmax.f32 %v2363, 0.0
      %v2805 = vmax.f32 %v2365, 0.0
      %v2806 = vmax.f32 %v2476, 0.0
      %v2807 = vmax.f32 %v2478, 0.0
      %v2808 = vmax.f32 %v2589, 0.0
      %v2809 = vmax.f32 %v2591, 0.0
      %v2810 = vmax.f32 %v2702, 0.0
      %v2811 = vmax.f32 %v2704, 0.0
      %v2812 = vmax.f32 %v2367, 0.0
      %v2813 = vmax.f32 %v2369, 0.0
      %v2814 = vmax.f32 %v2480, 0.0
      %v2815 = vmax.f32 %v2482, 0.0
      %v2816 = vmax.f32 %v2593, 0.0
      %v2817 = vmax.f32 %v2595, 0.0
      %v2818 = vmax.f32 %v2706, 0.0
      %v2819 = vmax.f32 %v2708, 0.0
      %v2820 = vmax.f32 %v2373, 0.0
      %v2821 = vmax.f32 %v2375, 0.0
      %v2822 = vmax.f32 %v2486, 0.0
      %v2823 = vmax.f32 %v2488, 0.0
      %v2824 = vmax.f32 %v2599, 0.0
      %v2825 = vmax.f32 %v2601, 0.0
      %v2826 = vmax.f32 %v2712, 0.0
      %v2827 = vmax.f32 %v2714, 0.0
      %v2828 = vmax.f32 %v2377, 0.0
      %v2829 = vmax.f32 %v2379, 0.0
      %v2830 = vmax.f32 %v2490, 0.0
      %v2831 = vmax.f32 %v2492, 0.0
      %v2832 = vmax.f32 %v2603, 0.0
      %v2833 = vmax.f32 %v2605, 0.0
      %v2834 = vmax.f32 %v2716, 0.0
      %v2835 = vmax.f32 %v2718, 0.0
      %v2836 = vmax.f32 %v2383, 0.0
      %v2837 = vmax.f32 %v2385, 0.0
      %v2838 = vmax.f32 %v2496, 0.0
      %v2839 = vmax.f32 %v2498, 0.0
      %v2840 = vmax.f32 %v2609, 0.0
      %v2841 = vmax.f32 %v2611, 0.0
      %v2842 = vmax.f32 %v2722, 0.0
      %v2843 = vmax.f32 %v2724, 0.0
      %v2844 = vmax.f32 %v2387, 0.0
      %v2845 = vmax.f32 %v2389, 0.0
      %v2846 = vmax.f32 %v2500, 0.0
      %v2847 = vmax.f32 %v2502, 0.0
      %v2848 = vmax.f32 %v2613, 0.0
      %v2849 = vmax.f32 %v2615, 0.0
      %v2850 = vmax.f32 %v2726, 0.0
      %v2851 = vmax.f32 %v2728, 0.0
      %v2852 = vmax.f32 %v2393, 0.0
      %v2853 = vmax.f32 %v2395, 0.0
      %v2854 = vmax.f32 %v2506, 0.0
      %v2855 = vmax.f32 %v2508, 0.0
      %v2856 = vmax.f32 %v2619, 0.0
      %v2857 = vmax.f32 %v2621, 0.0
      %v2858 = vmax.f32 %v2732, 0.0
      %v2859 = vmax.f32 %v2734, 0.0
      %v2860 = vmax.f32 %v2397, 0.0
      %v2861 = vmax.f32 %v2399, 0.0
      %v2862 = vmax.f32 %v2510, 0.0
      %v2863 = vmax.f32 %v2512, 0.0
      %v2864 = vmax.f32 %v2623, 0.0
      %v2865 = vmax.f32 %v2625, 0.0
      %v2866 = vmax.f32 %v2736, 0.0
      %v2867 = vmax.f32 %v2738, 0.0
      %v2868 = vpack.c.bf16 %v2748, %v2740
      %v2869 = vpack.c.bf16 %v2749, %v2741
      %v2870 = vpack.c.bf16 %v2750, %v2742
      %v2871 = vpack.c.bf16 %v2751, %v2743
      %v2872 = vpack.c.bf16 %v2752, %v2744
      %v2873 = vpack.c.bf16 %v2753, %v2745
      %v2874 = vpack.c.bf16 %v2754, %v2746
      %v2875 = vpack.c.bf16 %v2755, %v2747
      %v2876 = vpack.c.bf16 %v2764, %v2756
      %v2877 = vpack.c.bf16 %v2765, %v2757
      %v2878 = vpack.c.bf16 %v2766, %v2758
      %v2879 = vpack.c.bf16 %v2767, %v2759
      %v2880 = vpack.c.bf16 %v2768, %v2760
      %v2881 = vpack.c.bf16 %v2769, %v2761
      %v2882 = vpack.c.bf16 %v2770, %v2762
      %v2883 = vpack.c.bf16 %v2771, %v2763
      %v2884 = vpack.c.bf16 %v2780, %v2772
      %v2885 = vpack.c.bf16 %v2781, %v2773
      %v2886 = vpack.c.bf16 %v2782, %v2774
      %v2887 = vpack.c.bf16 %v2783, %v2775
      %v2888 = vpack.c.bf16 %v2784, %v2776
      %v2889 = vpack.c.bf16 %v2785, %v2777
      %v2890 = vpack.c.bf16 %v2786, %v2778
      %v2891 = vpack.c.bf16 %v2787, %v2779
      %v2892 = vpack.c.bf16 %v2796, %v2788
      %v2893 = vpack.c.bf16 %v2797, %v2789
      %v2894 = vpack.c.bf16 %v2798, %v2790
      %v2895 = vpack.c.bf16 %v2799, %v2791
      %v2896 = vpack.c.bf16 %v2800, %v2792
      %v2897 = vpack.c.bf16 %v2801, %v2793
      %v2898 = vpack.c.bf16 %v2802, %v2794
      %v2899 = vpack.c.bf16 %v2803, %v2795
      %v2900 = vpack.c.bf16 %v2812, %v2804
      %v2901 = vpack.c.bf16 %v2813, %v2805
      %v2902 = vpack.c.bf16 %v2814, %v2806
      %v2903 = vpack.c.bf16 %v2815, %v2807
      %v2904 = vpack.c.bf16 %v2816, %v2808
      %v2905 = vpack.c.bf16 %v2817, %v2809
      %v2906 = vpack.c.bf16 %v2818, %v2810
      %v2907 = vpack.c.bf16 %v2819, %v2811
      %v2908 = vpack.c.bf16 %v2828, %v2820
      %v2909 = vpack.c.bf16 %v2829, %v2821
      %v2910 = vpack.c.bf16 %v2830, %v2822
      %v2911 = vpack.c.bf16 %v2831, %v2823
      %v2912 = vpack.c.bf16 %v2832, %v2824
      %v2913 = vpack.c.bf16 %v2833, %v2825
      %v2914 = vpack.c.bf16 %v2834, %v2826
      %v2915 = vpack.c.bf16 %v2835, %v2827
      %v2916 = vpack.c.bf16 %v2844, %v2836
      %v2917 = vpack.c.bf16 %v2845, %v2837
      %v2918 = vpack.c.bf16 %v2846, %v2838
      %v2919 = vpack.c.bf16 %v2847, %v2839
      %v2920 = vpack.c.bf16 %v2848, %v2840
      %v2921 = vpack.c.bf16 %v2849, %v2841
      %v2922 = vpack.c.bf16 %v2850, %v2842
      %v2923 = vpack.c.bf16 %v2851, %v2843
      %v2924 = vpack.c.bf16 %v2860, %v2852
      %v2925 = vpack.c.bf16 %v2861, %v2853
      %v2926 = vpack.c.bf16 %v2862, %v2854
      %v2927 = vpack.c.bf16 %v2863, %v2855
      %v2928 = vpack.c.bf16 %v2864, %v2856
      %v2929 = vpack.c.bf16 %v2865, %v2857
      %v2930 = vpack.c.bf16 %v2866, %v2858
      %v2931 = vpack.c.bf16 %v2867, %v2859
      %s2932 = scalar_lea.vmem %s3, 512
      %v2933 = vld [vmem:[%s2932] sm:$0xf]
      %v2934 = vld [vmem:[%s2932 + $0x4] sm:$0xf]
      %v2935 = vld [vmem:[%s2932 + $0x8] sm:$0xf]
      %v2936 = vld [vmem:[%s2932 + $0xc] sm:$0xf]
      %v2937 = vld [vmem:[%s2932 + $0x10] sm:$0xf]
      %v2938 = vld [vmem:[%s2932 + $0x14] sm:$0xf]
      %v2939 = vld [vmem:[%s2932 + $0x18] sm:$0xf]
      %v2940 = vld [vmem:[%s2932 + $0x1c] sm:$0xf]
      %v2941 = vld [vmem:[%s2932 + $0x20] sm:$0xf]
      %v2942 = vld [vmem:[%s2932 + $0x24] sm:$0xf]
      %v2943 = vld [vmem:[%s2932 + $0x28] sm:$0xf]
      %v2944 = vld [vmem:[%s2932 + $0x2c] sm:$0xf]
      %v2945 = vld [vmem:[%s2932 + $0x30] sm:$0xf]
      %v2946 = vld [vmem:[%s2932 + $0x34] sm:$0xf]
      %v2947 = vld [vmem:[%s2932 + $0x38] sm:$0xf]
      %v2948 = vld [vmem:[%s2932 + $0x3c] sm:$0xf]
      %v2949 = vld [vmem:[%s2932 + $0x40] sm:$0xf]
      %v2950 = vld [vmem:[%s2932 + $0x44] sm:$0xf]
      %v2951 = vld [vmem:[%s2932 + $0x48] sm:$0xf]
      %v2952 = vld [vmem:[%s2932 + $0x4c] sm:$0xf]
      %v2953 = vld [vmem:[%s2932 + $0x50] sm:$0xf]
      %v2954 = vld [vmem:[%s2932 + $0x54] sm:$0xf]
      %v2955 = vld [vmem:[%s2932 + $0x58] sm:$0xf]
      %v2956 = vld [vmem:[%s2932 + $0x5c] sm:$0xf]
      %v2957 = vld [vmem:[%s2932 + $0x60] sm:$0xf]
      %v2958 = vld [vmem:[%s2932 + $0x64] sm:$0xf]
      %v2959 = vld [vmem:[%s2932 + $0x68] sm:$0xf]
      %v2960 = vld [vmem:[%s2932 + $0x6c] sm:$0xf]
      %v2961 = vld [vmem:[%s2932 + $0x70] sm:$0xf]
      %v2962 = vld [vmem:[%s2932 + $0x74] sm:$0xf]
      %v2963 = vld [vmem:[%s2932 + $0x78] sm:$0xf]
      %v2964 = vld [vmem:[%s2932 + $0x7c] sm:$0xf]
      %v2965 = vld [vmem:[%s2932 + $0x80] sm:$0xf]
      %v2966 = vld [vmem:[%s2932 + $0x84] sm:$0xf]
      %v2967 = vld [vmem:[%s2932 + $0x88] sm:$0xf]
      %v2968 = vld [vmem:[%s2932 + $0x8c] sm:$0xf]
      %v2969 = vld [vmem:[%s2932 + $0x90] sm:$0xf]
      %v2970 = vld [vmem:[%s2932 + $0x94] sm:$0xf]
      %v2971 = vld [vmem:[%s2932 + $0x98] sm:$0xf]
      %v2972 = vld [vmem:[%s2932 + $0x9c] sm:$0xf]
      %v2973 = vld [vmem:[%s2932 + $0xa0] sm:$0xf]
      %v2974 = vld [vmem:[%s2932 + $0xa4] sm:$0xf]
      %v2975 = vld [vmem:[%s2932 + $0xa8] sm:$0xf]
      %v2976 = vld [vmem:[%s2932 + $0xac] sm:$0xf]
      %v2977 = vld [vmem:[%s2932 + $0xb0] sm:$0xf]
      %v2978 = vld [vmem:[%s2932 + $0xb4] sm:$0xf]
      %v2979 = vld [vmem:[%s2932 + $0xb8] sm:$0xf]
      %v2980 = vld [vmem:[%s2932 + $0xbc] sm:$0xf]
      %v2981 = vld [vmem:[%s2932 + $0xc0] sm:$0xf]
      %v2982 = vld [vmem:[%s2932 + $0xc4] sm:$0xf]
      %v2983 = vld [vmem:[%s2932 + $0xc8] sm:$0xf]
      %v2984 = vld [vmem:[%s2932 + $0xcc] sm:$0xf]
      %v2985 = vld [vmem:[%s2932 + $0xd0] sm:$0xf]
      %v2986 = vld [vmem:[%s2932 + $0xd4] sm:$0xf]
      %v2987 = vld [vmem:[%s2932 + $0xd8] sm:$0xf]
      %v2988 = vld [vmem:[%s2932 + $0xdc] sm:$0xf]
      %v2989 = vld [vmem:[%s2932 + $0xe0] sm:$0xf]
      %v2990 = vld [vmem:[%s2932 + $0xe4] sm:$0xf]
      %v2991 = vld [vmem:[%s2932 + $0xe8] sm:$0xf]
      %v2992 = vld [vmem:[%s2932 + $0xec] sm:$0xf]
      %v2993 = vld [vmem:[%s2932 + $0xf0] sm:$0xf]
      %v2994 = vld [vmem:[%s2932 + $0xf4] sm:$0xf]
      %v2995 = vld [vmem:[%s2932 + $0xf8] sm:$0xf]
      %v2996 = vld [vmem:[%s2932 + $0xfc] sm:$0xf]
      %v2997 = vld [vmem:[%s2932 + $0x100] sm:$0xf]
      %v2998 = vld [vmem:[%s2932 + $0x104] sm:$0xf]
      %v2999 = vld [vmem:[%s2932 + $0x108] sm:$0xf]
      %v3000 = vld [vmem:[%s2932 + $0x10c] sm:$0xf]
      %v3001 = vld [vmem:[%s2932 + $0x110] sm:$0xf]
      %v3002 = vld [vmem:[%s2932 + $0x114] sm:$0xf]
      %v3003 = vld [vmem:[%s2932 + $0x118] sm:$0xf]
      %v3004 = vld [vmem:[%s2932 + $0x11c] sm:$0xf]
      %v3005 = vld [vmem:[%s2932 + $0x120] sm:$0xf]
      %v3006 = vld [vmem:[%s2932 + $0x124] sm:$0xf]
      %v3007 = vld [vmem:[%s2932 + $0x128] sm:$0xf]
      %v3008 = vld [vmem:[%s2932 + $0x12c] sm:$0xf]
      %v3009 = vld [vmem:[%s2932 + $0x130] sm:$0xf]
      %v3010 = vld [vmem:[%s2932 + $0x134] sm:$0xf]
      %v3011 = vld [vmem:[%s2932 + $0x138] sm:$0xf]
      %v3012 = vld [vmem:[%s2932 + $0x13c] sm:$0xf]
      %v3013 = vld [vmem:[%s2932 + $0x140] sm:$0xf]
      %v3014 = vld [vmem:[%s2932 + $0x144] sm:$0xf]
      %v3015 = vld [vmem:[%s2932 + $0x148] sm:$0xf]
      %v3016 = vld [vmem:[%s2932 + $0x14c] sm:$0xf]
      %v3017 = vld [vmem:[%s2932 + $0x150] sm:$0xf]
      %v3018 = vld [vmem:[%s2932 + $0x154] sm:$0xf]
      %v3019 = vld [vmem:[%s2932 + $0x158] sm:$0xf]
      %v3020 = vld [vmem:[%s2932 + $0x15c] sm:$0xf]
      %v3021 = vld [vmem:[%s2932 + $0x160] sm:$0xf]
      %v3022 = vld [vmem:[%s2932 + $0x164] sm:$0xf]
      %v3023 = vld [vmem:[%s2932 + $0x168] sm:$0xf]
      %v3024 = vld [vmem:[%s2932 + $0x16c] sm:$0xf]
      %v3025 = vld [vmem:[%s2932 + $0x170] sm:$0xf]
      %v3026 = vld [vmem:[%s2932 + $0x174] sm:$0xf]
      %v3027 = vld [vmem:[%s2932 + $0x178] sm:$0xf]
      %v3028 = vld [vmem:[%s2932 + $0x17c] sm:$0xf]
      %v3029 = vld [vmem:[%s2932 + $0x180] sm:$0xf]
      %v3030 = vld [vmem:[%s2932 + $0x184] sm:$0xf]
      %v3031 = vld [vmem:[%s2932 + $0x188] sm:$0xf]
      %v3032 = vld [vmem:[%s2932 + $0x18c] sm:$0xf]
      %v3033 = vld [vmem:[%s2932 + $0x190] sm:$0xf]
      %v3034 = vld [vmem:[%s2932 + $0x194] sm:$0xf]
      %v3035 = vld [vmem:[%s2932 + $0x198] sm:$0xf]
      %v3036 = vld [vmem:[%s2932 + $0x19c] sm:$0xf]
      %v3037 = vld [vmem:[%s2932 + $0x1a0] sm:$0xf]
      %v3038 = vld [vmem:[%s2932 + $0x1a4] sm:$0xf]
      %v3039 = vld [vmem:[%s2932 + $0x1a8] sm:$0xf]
      %v3040 = vld [vmem:[%s2932 + $0x1ac] sm:$0xf]
      %v3041 = vld [vmem:[%s2932 + $0x1b0] sm:$0xf]
      %v3042 = vld [vmem:[%s2932 + $0x1b4] sm:$0xf]
      %v3043 = vld [vmem:[%s2932 + $0x1b8] sm:$0xf]
      %v3044 = vld [vmem:[%s2932 + $0x1bc] sm:$0xf]
      %v3045 = vld [vmem:[%s2932 + $0x1c0] sm:$0xf]
      %v3046 = vld [vmem:[%s2932 + $0x1c4] sm:$0xf]
      %v3047 = vld [vmem:[%s2932 + $0x1c8] sm:$0xf]
      %v3048 = vld [vmem:[%s2932 + $0x1cc] sm:$0xf]
      %v3049 = vld [vmem:[%s2932 + $0x1d0] sm:$0xf]
      %v3050 = vld [vmem:[%s2932 + $0x1d4] sm:$0xf]
      %v3051 = vld [vmem:[%s2932 + $0x1d8] sm:$0xf]
      %v3052 = vld [vmem:[%s2932 + $0x1dc] sm:$0xf]
      %v3053 = vld [vmem:[%s2932 + $0x1e0] sm:$0xf]
      %v3054 = vld [vmem:[%s2932 + $0x1e4] sm:$0xf]
      %v3055 = vld [vmem:[%s2932 + $0x1e8] sm:$0xf]
      %v3056 = vld [vmem:[%s2932 + $0x1ec] sm:$0xf]
      %v3057 = vld [vmem:[%s2932 + $0x1f0] sm:$0xf]
      %v3058 = vld [vmem:[%s2932 + $0x1f4] sm:$0xf]
      %v3059 = vld [vmem:[%s2932 + $0x1f8] sm:$0xf]
      %v3060 = vld [vmem:[%s2932 + $0x1fc] sm:$0xf]
      %s3061 = scalar_lea.vmem %s4, 1
      %v3062 = vld [vmem:[%s3061] sm:$0x1]
      %v3064 = vlaneseq
      %v3065 = vshrl.u32 %v3064, 7
      %v3066 = vsub.s32 0, %v3065
      %v3067 = vrot.slane %v3062, %v3066
      %v3197 = vunpack.c.l.b16 %v2933
      %v3198 = vunpack.c.l.b16 %v2934
      %v3199 = vunpack.c.l.b16 %v2935
      %v3200 = vunpack.c.l.b16 %v2936
      %v3201 = vunpack.c.l.b16 %v2937
      %v3202 = vunpack.c.l.b16 %v2938
      %v3203 = vunpack.c.l.b16 %v2939
      %v3204 = vunpack.c.l.b16 %v2940
      %v3205 = vunpack.c.l.b16 %v2941
      %v3206 = vunpack.c.l.b16 %v2942
      %v3207 = vunpack.c.l.b16 %v2943
      %v3208 = vunpack.c.l.b16 %v2944
      %v3209 = vunpack.c.l.b16 %v2945
      %v3210 = vunpack.c.l.b16 %v2946
      %v3211 = vunpack.c.l.b16 %v2947
      %v3212 = vunpack.c.l.b16 %v2948
      %v3213 = vunpack.c.l.b16 %v2949
      %v3214 = vunpack.c.l.b16 %v2950
      %v3215 = vunpack.c.l.b16 %v2951
      %v3216 = vunpack.c.l.b16 %v2952
      %v3217 = vunpack.c.l.b16 %v2953
      %v3218 = vunpack.c.l.b16 %v2954
      %v3219 = vunpack.c.l.b16 %v2955
      %v3220 = vunpack.c.l.b16 %v2956
      %v3221 = vunpack.c.l.b16 %v2957
      %v3222 = vunpack.c.l.b16 %v2958
      %v3223 = vunpack.c.l.b16 %v2959
      %v3224 = vunpack.c.l.b16 %v2960
      %v3225 = vunpack.c.l.b16 %v2961
      %v3226 = vunpack.c.l.b16 %v2962
      %v3227 = vunpack.c.l.b16 %v2963
      %v3228 = vunpack.c.l.b16 %v2964
      %v3229 = vunpack.c.l.b16 %v2965
      %v3230 = vunpack.c.l.b16 %v2966
      %v3231 = vunpack.c.l.b16 %v2967
      %v3232 = vunpack.c.l.b16 %v2968
      %v3233 = vunpack.c.l.b16 %v2969
      %v3234 = vunpack.c.l.b16 %v2970
      %v3235 = vunpack.c.l.b16 %v2971
      %v3236 = vunpack.c.l.b16 %v2972
      %v3237 = vunpack.c.l.b16 %v2973
      %v3238 = vunpack.c.l.b16 %v2974
      %v3239 = vunpack.c.l.b16 %v2975
      %v3240 = vunpack.c.l.b16 %v2976
      %v3241 = vunpack.c.l.b16 %v2977
      %v3242 = vunpack.c.l.b16 %v2978
      %v3243 = vunpack.c.l.b16 %v2979
      %v3244 = vunpack.c.l.b16 %v2980
      %v3245 = vunpack.c.l.b16 %v2981
      %v3246 = vunpack.c.l.b16 %v2982
      %v3247 = vunpack.c.l.b16 %v2983
      %v3248 = vunpack.c.l.b16 %v2984
      %v3249 = vunpack.c.l.b16 %v2985
      %v3250 = vunpack.c.l.b16 %v2986
      %v3251 = vunpack.c.l.b16 %v2987
      %v3252 = vunpack.c.l.b16 %v2988
      %v3253 = vunpack.c.l.b16 %v2989
      %v3254 = vunpack.c.l.b16 %v2990
      %v3255 = vunpack.c.l.b16 %v2991
      %v3256 = vunpack.c.l.b16 %v2992
      %v3257 = vunpack.c.l.b16 %v2993
      %v3258 = vunpack.c.l.b16 %v2994
      %v3259 = vunpack.c.l.b16 %v2995
      %v3260 = vunpack.c.l.b16 %v2996
      %v3261 = vunpack.c.l.b16 %v2997
      %v3262 = vunpack.c.l.b16 %v2998
      %v3263 = vunpack.c.l.b16 %v2999
      %v3264 = vunpack.c.l.b16 %v3000
      %v3265 = vunpack.c.l.b16 %v3001
      %v3266 = vunpack.c.l.b16 %v3002
      %v3267 = vunpack.c.l.b16 %v3003
      %v3268 = vunpack.c.l.b16 %v3004
      %v3269 = vunpack.c.l.b16 %v3005
      %v3270 = vunpack.c.l.b16 %v3006
      %v3271 = vunpack.c.l.b16 %v3007
      %v3272 = vunpack.c.l.b16 %v3008
      %v3273 = vunpack.c.l.b16 %v3009
      %v3274 = vunpack.c.l.b16 %v3010
      %v3275 = vunpack.c.l.b16 %v3011
      %v3276 = vunpack.c.l.b16 %v3012
      %v3277 = vunpack.c.l.b16 %v3013
      %v3278 = vunpack.c.l.b16 %v3014
      %v3279 = vunpack.c.l.b16 %v3015
      %v3280 = vunpack.c.l.b16 %v3016
      %v3281 = vunpack.c.l.b16 %v3017
      %v3282 = vunpack.c.l.b16 %v3018
      %v3283 = vunpack.c.l.b16 %v3019
      %v3284 = vunpack.c.l.b16 %v3020
      %v3285 = vunpack.c.l.b16 %v3021
      %v3286 = vunpack.c.l.b16 %v3022
      %v3287 = vunpack.c.l.b16 %v3023
      %v3288 = vunpack.c.l.b16 %v3024
      %v3289 = vunpack.c.l.b16 %v3025
      %v3290 = vunpack.c.l.b16 %v3026
      %v3291 = vunpack.c.l.b16 %v3027
      %v3292 = vunpack.c.l.b16 %v3028
      %v3293 = vunpack.c.l.b16 %v3029
      %v3294 = vunpack.c.l.b16 %v3030
      %v3295 = vunpack.c.l.b16 %v3031
      %v3296 = vunpack.c.l.b16 %v3032
      %v3297 = vunpack.c.l.b16 %v3033
      %v3298 = vunpack.c.l.b16 %v3034
      %v3299 = vunpack.c.l.b16 %v3035
      %v3300 = vunpack.c.l.b16 %v3036
      %v3301 = vunpack.c.l.b16 %v3037
      %v3302 = vunpack.c.l.b16 %v3038
      %v3303 = vunpack.c.l.b16 %v3039
      %v3304 = vunpack.c.l.b16 %v3040
      %v3305 = vunpack.c.l.b16 %v3041
      %v3306 = vunpack.c.l.b16 %v3042
      %v3307 = vunpack.c.l.b16 %v3043
      %v3308 = vunpack.c.l.b16 %v3044
      %v3309 = vunpack.c.l.b16 %v3045
      %v3310 = vunpack.c.l.b16 %v3046
      %v3311 = vunpack.c.l.b16 %v3047
      %v3312 = vunpack.c.l.b16 %v3048
      %v3313 = vunpack.c.l.b16 %v3049
      %v3314 = vunpack.c.l.b16 %v3050
      %v3315 = vunpack.c.l.b16 %v3051
      %v3316 = vunpack.c.l.b16 %v3052
      %v3317 = vunpack.c.l.b16 %v3053
      %v3318 = vunpack.c.l.b16 %v3054
      %v3319 = vunpack.c.l.b16 %v3055
      %v3320 = vunpack.c.l.b16 %v3056
      %v3321 = vunpack.c.l.b16 %v3057
      %v3322 = vunpack.c.l.b16 %v3058
      %v3323 = vunpack.c.l.b16 %v3059
      %v3324 = vunpack.c.l.b16 %v3060
      %v3325 = vpack.c.b16 %v3198, %v3197
      %v3326 = vpack.c.b16 %v3200, %v3199
      %v3327 = vpack.c.b16 %v3202, %v3201
      %v3328 = vpack.c.b16 %v3204, %v3203
      %v3329 = vpack.c.b16 %v3206, %v3205
      %v3330 = vpack.c.b16 %v3208, %v3207
      %v3331 = vpack.c.b16 %v3210, %v3209
      %v3332 = vpack.c.b16 %v3212, %v3211
      %v3333 = vpack.c.b16 %v3214, %v3213
      %v3334 = vpack.c.b16 %v3216, %v3215
      %v3335 = vpack.c.b16 %v3218, %v3217
      %v3336 = vpack.c.b16 %v3220, %v3219
      %v3337 = vpack.c.b16 %v3222, %v3221
      %v3338 = vpack.c.b16 %v3224, %v3223
      %v3339 = vpack.c.b16 %v3226, %v3225
      %v3340 = vpack.c.b16 %v3228, %v3227
      %v3341 = vpack.c.b16 %v3230, %v3229
      %v3342 = vpack.c.b16 %v3232, %v3231
      %v3343 = vpack.c.b16 %v3234, %v3233
      %v3344 = vpack.c.b16 %v3236, %v3235
      %v3345 = vpack.c.b16 %v3238, %v3237
      %v3346 = vpack.c.b16 %v3240, %v3239
      %v3347 = vpack.c.b16 %v3242, %v3241
      %v3348 = vpack.c.b16 %v3244, %v3243
      %v3349 = vpack.c.b16 %v3246, %v3245
      %v3350 = vpack.c.b16 %v3248, %v3247
      %v3351 = vpack.c.b16 %v3250, %v3249
      %v3352 = vpack.c.b16 %v3252, %v3251
      %v3353 = vpack.c.b16 %v3254, %v3253
      %v3354 = vpack.c.b16 %v3256, %v3255
      %v3355 = vpack.c.b16 %v3258, %v3257
      %v3356 = vpack.c.b16 %v3260, %v3259
      %v3357 = vpack.c.b16 %v3262, %v3261
      %v3358 = vpack.c.b16 %v3264, %v3263
      %v3359 = vpack.c.b16 %v3266, %v3265
      %v3360 = vpack.c.b16 %v3268, %v3267
      %v3361 = vpack.c.b16 %v3270, %v3269
      %v3362 = vpack.c.b16 %v3272, %v3271
      %v3363 = vpack.c.b16 %v3274, %v3273
      %v3364 = vpack.c.b16 %v3276, %v3275
      %v3365 = vpack.c.b16 %v3278, %v3277
      %v3366 = vpack.c.b16 %v3280, %v3279
      %v3367 = vpack.c.b16 %v3282, %v3281
      %v3368 = vpack.c.b16 %v3284, %v3283
      %v3369 = vpack.c.b16 %v3286, %v3285
      %v3370 = vpack.c.b16 %v3288, %v3287
      %v3371 = vpack.c.b16 %v3290, %v3289
      %v3372 = vpack.c.b16 %v3292, %v3291
      %v3373 = vpack.c.b16 %v3294, %v3293
      %v3374 = vpack.c.b16 %v3296, %v3295
      %v3375 = vpack.c.b16 %v3298, %v3297
      %v3376 = vpack.c.b16 %v3300, %v3299
      %v3377 = vpack.c.b16 %v3302, %v3301
      %v3378 = vpack.c.b16 %v3304, %v3303
      %v3379 = vpack.c.b16 %v3306, %v3305
      %v3380 = vpack.c.b16 %v3308, %v3307
      %v3381 = vpack.c.b16 %v3310, %v3309
      %v3382 = vpack.c.b16 %v3312, %v3311
      %v3383 = vpack.c.b16 %v3314, %v3313
      %v3384 = vpack.c.b16 %v3316, %v3315
      %v3385 = vpack.c.b16 %v3318, %v3317
      %v3386 = vpack.c.b16 %v3320, %v3319
      %v3387 = vpack.c.b16 %v3322, %v3321
      %v3388 = vpack.c.b16 %v3324, %v3323
      %3453 = vmatprep.subr.bf16.mxu0 0
      %3454 = vmatpush1.bf16.msra.mxu0 %v3325
      %3455 = vmatprep.subr.bf16.mxu0 0
      %3456 = vmatpush1.bf16.msra.mxu0 %v3326
      %3457 = vmatprep.subr.bf16.mxu0 0
      %3458 = vmatpush1.bf16.msra.mxu0 %v3327
      %3459 = vmatprep.subr.bf16.mxu0 0
      %3460 = vmatpush1.bf16.msra.mxu0 %v3328
      %3461 = vmatprep.subr.bf16.mxu0 0
      %3462 = vmatpush1.bf16.msra.mxu0 %v3329
      %3463 = vmatprep.subr.bf16.mxu0 0
      %3464 = vmatpush1.bf16.msra.mxu0 %v3330
      %3465 = vmatprep.subr.bf16.mxu0 0
      %3466 = vmatpush1.bf16.msra.mxu0 %v3331
      %3467 = vmatprep.subr.bf16.mxu0 0
      %3468 = vmatpush1.bf16.msra.mxu0 %v3332
      %3469 = vmatprep.subr.bf16.mxu0 0
      %3470 = vmatpush1.bf16.msra.mxu0 %v3333
      %3471 = vmatprep.subr.bf16.mxu0 0
      %3472 = vmatpush1.bf16.msra.mxu0 %v3334
      %3473 = vmatprep.subr.bf16.mxu0 0
      %3474 = vmatpush1.bf16.msra.mxu0 %v3335
      %3475 = vmatprep.subr.bf16.mxu0 0
      %3476 = vmatpush1.bf16.msra.mxu0 %v3336
      %3477 = vmatprep.subr.bf16.mxu0 0
      %3478 = vmatpush1.bf16.msra.mxu0 %v3337
      %3479 = vmatprep.subr.bf16.mxu0 0
      %3480 = vmatpush1.bf16.msra.mxu0 %v3338
      %3481 = vmatprep.subr.bf16.mxu0 0
      %3482 = vmatpush1.bf16.msra.mxu0 %v3339
      %3483 = vmatprep.subr.bf16.mxu0 0
      %3484 = vmatpush1.bf16.msra.mxu0 %v3340
      %3485 = vmatprep.mubr.bf16.mxu0 %v2869
      %3486 = vmatmul.mubr.bf16.gmra.mrb[0].mxu0 %v2868
      %v3487 = vpop.f32.mrb[0].mxu0
      %v3488 = vadd.f32 %v3067, %v3487
      %v3489 = vpop.f32.mrb[0].mxu0
      %v3490 = vpop.f32.mrb[0].mxu0
      %v3491 = vadd.f32 %v3067, %v3490
      %v3492 = vpop.f32.mrb[0].mxu0
      %3493 = vmatprep.mubr.bf16.mxu0 %v2877
      %3494 = vmatmul.mubr.bf16.gmra.mrb[0].mxu0 %v2876
      %v3495 = vpop.f32.mrb[0].mxu0
      %v3496 = vadd.f32 %v3067, %v3495
      %v3497 = vpop.f32.mrb[0].mxu0
      %v3498 = vpop.f32.mrb[0].mxu0
      %v3499 = vadd.f32 %v3067, %v3498
      %v3500 = vpop.f32.mrb[0].mxu0
      %3501 = vmatprep.mubr.bf16.mxu0 %v2885
      %3502 = vmatmul.mubr.bf16.gmra.mrb[0].mxu0 %v2884
      %v3503 = vpop.f32.mrb[0].mxu0
      %v3504 = vadd.f32 %v3067, %v3503
      %v3505 = vpop.f32.mrb[0].mxu0
      %v3506 = vpop.f32.mrb[0].mxu0
      %v3507 = vadd.f32 %v3067, %v3506
      %v3508 = vpop.f32.mrb[0].mxu0
      %3509 = vmatprep.mubr.bf16.mxu0 %v2893
      %3510 = vmatmul.mubr.bf16.gmra.mrb[0].mxu0 %v2892
      %v3511 = vpop.f32.mrb[0].mxu0
      %v3512 = vadd.f32 %v3067, %v3511
      %v3513 = vpop.f32.mrb[0].mxu0
      %v3514 = vpop.f32.mrb[0].mxu0
      %v3515 = vadd.f32 %v3067, %v3514
      %v3516 = vpop.f32.mrb[0].mxu0
      %3517 = vmatprep.mubr.bf16.mxu0 %v2901
      %3518 = vmatmul.mubr.bf16.gmra.mrb[0].mxu0 %v2900
      %v3519 = vpop.f32.mrb[0].mxu0
      %v3520 = vadd.f32 %v3067, %v3519
      %v3521 = vpop.f32.mrb[0].mxu0
      %v3522 = vpop.f32.mrb[0].mxu0
      %v3523 = vadd.f32 %v3067, %v3522
      %v3524 = vpop.f32.mrb[0].mxu0
      %3525 = vmatprep.mubr.bf16.mxu0 %v2909
      %3526 = vmatmul.mubr.bf16.gmra.mrb[0].mxu0 %v2908
      %v3527 = vpop.f32.mrb[0].mxu0
      %v3528 = vadd.f32 %v3067, %v3527
      %v3529 = vpop.f32.mrb[0].mxu0
      %v3530 = vpop.f32.mrb[0].mxu0
      %v3531 = vadd.f32 %v3067, %v3530
      %v3532 = vpop.f32.mrb[0].mxu0
      %3533 = vmatprep.mubr.bf16.mxu0 %v2917
      %3534 = vmatmul.mubr.bf16.gmra.mrb[0].mxu0 %v2916
      %v3535 = vpop.f32.mrb[0].mxu0
      %v3536 = vadd.f32 %v3067, %v3535
      %v3537 = vpop.f32.mrb[0].mxu0
      %v3538 = vpop.f32.mrb[0].mxu0
      %v3539 = vadd.f32 %v3067, %v3538
      %v3540 = vpop.f32.mrb[0].mxu0
      %3541 = vmatprep.mubr.bf16.mxu0 %v2925
      %3542 = vmatmul.mubr.bf16.gmra.mrb[0].mxu0 %v2924
      %v3543 = vpop.f32.mrb[0].mxu0
      %v3544 = vadd.f32 %v3067, %v3543
      %v3545 = vpop.f32.mrb[0].mxu0
      %v3546 = vpop.f32.mrb[0].mxu0
      %v3547 = vadd.f32 %v3067, %v3546
      %v3548 = vpop.f32.mrb[0].mxu0
      %3549 = vdwg.mxu0
      %3550 = vmatprep.subr.bf16.mxu0 0
      %3551 = vmatpush1.bf16.msra.mxu0 %v3341
      %3552 = vmatprep.subr.bf16.mxu0 0
      %3553 = vmatpush1.bf16.msra.mxu0 %v3342
      %3554 = vmatprep.subr.bf16.mxu0 0
      %3555 = vmatpush1.bf16.msra.mxu0 %v3343
      %3556 = vmatprep.subr.bf16.mxu0 0
      %3557 = vmatpush1.bf16.msra.mxu0 %v3344
      %3558 = vmatprep.subr.bf16.mxu0 0
      %3559 = vmatpush1.bf16.msra.mxu0 %v3345
      %3560 = vmatprep.subr.bf16.mxu0 0
      %3561 = vmatpush1.bf16.msra.mxu0 %v3346
      %3562 = vmatprep.subr.bf16.mxu0 0
      %3563 = vmatpush1.bf16.msra.mxu0 %v3347
      %3564 = vmatprep.subr.bf16.mxu0 0
      %3565 = vmatpush1.bf16.msra.mxu0 %v3348
      %3566 = vmatprep.subr.bf16.mxu0 0
      %3567 = vmatpush1.bf16.msra.mxu0 %v3349
      %3568 = vmatprep.subr.bf16.mxu0 0
      %3569 = vmatpush1.bf16.msra.mxu0 %v3350
      %3570 = vmatprep.subr.bf16.mxu0 0
      %3571 = vmatpush1.bf16.msra.mxu0 %v3351
      %3572 = vmatprep.subr.bf16.mxu0 0
      %3573 = vmatpush1.bf16.msra.mxu0 %v3352
      %3574 = vmatprep.subr.bf16.mxu0 0
      %3575 = vmatpush1.bf16.msra.mxu0 %v3353
      %3576 = vmatprep.subr.bf16.mxu0 0
      %3577 = vmatpush1.bf16.msra.mxu0 %v3354
      %3578 = vmatprep.subr.bf16.mxu0 0
      %3579 = vmatpush1.bf16.msra.mxu0 %v3355
      %3580 = vmatprep.subr.bf16.mxu0 0
      %3581 = vmatpush1.bf16.msra.mxu0 %v3356
      %3582 = vmatprep.mubr.bf16.mxu0 %v2871
      %3583 = vmatmul.mubr.bf16.gmra.mrb[0].mxu0 %v2870
      %v3584 = vpop.f32.mrb[0].mxu0
      %v3585 = vadd.f32 %v3488, %v3584
      %v3586 = vpop.f32.mrb[0].mxu0
      %v3587 = vpop.f32.mrb[0].mxu0
      %v3588 = vadd.f32 %v3491, %v3587
      %v3589 = vpop.f32.mrb[0].mxu0
      %3590 = vmatprep.mubr.bf16.mxu0 %v2879
      %3591 = vmatmul.mubr.bf16.gmra.mrb[0].mxu0 %v2878
      %v3592 = vpop.f32.mrb[0].mxu0
      %v3593 = vadd.f32 %v3496, %v3592
      %v3594 = vpop.f32.mrb[0].mxu0
      %v3595 = vpop.f32.mrb[0].mxu0
      %v3596 = vadd.f32 %v3499, %v3595
      %v3597 = vpop.f32.mrb[0].mxu0
      %3598 = vmatprep.mubr.bf16.mxu0 %v2887
      %3599 = vmatmul.mubr.bf16.gmra.mrb[0].mxu0 %v2886
      %v3600 = vpop.f32.mrb[0].mxu0
      %v3601 = vadd.f32 %v3504, %v3600
      %v3602 = vpop.f32.mrb[0].mxu0
      %v3603 = vpop.f32.mrb[0].mxu0
      %v3604 = vadd.f32 %v3507, %v3603
      %v3605 = vpop.f32.mrb[0].mxu0
      %3606 = vmatprep.mubr.bf16.mxu0 %v2895
      %3607 = vmatmul.mubr.bf16.gmra.mrb[0].mxu0 %v2894
      %v3608 = vpop.f32.mrb[0].mxu0
      %v3609 = vadd.f32 %v3512, %v3608
      %v3610 = vpop.f32.mrb[0].mxu0
      %v3611 = vpop.f32.mrb[0].mxu0
      %v3612 = vadd.f32 %v3515, %v3611
      %v3613 = vpop.f32.mrb[0].mxu0
      %3614 = vmatprep.mubr.bf16.mxu0 %v2903
      %3615 = vmatmul.mubr.bf16.gmra.mrb[0].mxu0 %v2902
      %v3616 = vpop.f32.mrb[0].mxu0
      %v3617 = vadd.f32 %v3520, %v3616
      %v3618 = vpop.f32.mrb[0].mxu0
      %v3619 = vpop.f32.mrb[0].mxu0
      %v3620 = vadd.f32 %v3523, %v3619
      %v3621 = vpop.f32.mrb[0].mxu0
      %3622 = vmatprep.mubr.bf16.mxu0 %v2911
      %3623 = vmatmul.mubr.bf16.gmra.mrb[0].mxu0 %v2910
      %v3624 = vpop.f32.mrb[0].mxu0
      %v3625 = vadd.f32 %v3528, %v3624
      %v3626 = vpop.f32.mrb[0].mxu0
      %v3627 = vpop.f32.mrb[0].mxu0
      %v3628 = vadd.f32 %v3531, %v3627
      %v3629 = vpop.f32.mrb[0].mxu0
      %3630 = vmatprep.mubr.bf16.mxu0 %v2919
      %3631 = vmatmul.mubr.bf16.gmra.mrb[0].mxu0 %v2918
      %v3632 = vpop.f32.mrb[0].mxu0
      %v3633 = vadd.f32 %v3536, %v3632
      %v3634 = vpop.f32.mrb[0].mxu0
      %v3635 = vpop.f32.mrb[0].mxu0
      %v3636 = vadd.f32 %v3539, %v3635
      %v3637 = vpop.f32.mrb[0].mxu0
      %3638 = vmatprep.mubr.bf16.mxu0 %v2927
      %3639 = vmatmul.mubr.bf16.gmra.mrb[0].mxu0 %v2926
      %v3640 = vpop.f32.mrb[0].mxu0
      %v3641 = vadd.f32 %v3544, %v3640
      %v3642 = vpop.f32.mrb[0].mxu0
      %v3643 = vpop.f32.mrb[0].mxu0
      %v3644 = vadd.f32 %v3547, %v3643
      %v3645 = vpop.f32.mrb[0].mxu0
      %3646 = vdwg.mxu0
      %3647 = vmatprep.subr.bf16.mxu0 0
      %3648 = vmatpush1.bf16.msra.mxu0 %v3357
      %3649 = vmatprep.subr.bf16.mxu0 0
      %3650 = vmatpush1.bf16.msra.mxu0 %v3358
      %3651 = vmatprep.subr.bf16.mxu0 0
      %3652 = vmatpush1.bf16.msra.mxu0 %v3359
      %3653 = vmatprep.subr.bf16.mxu0 0
      %3654 = vmatpush1.bf16.msra.mxu0 %v3360
      %3655 = vmatprep.subr.bf16.mxu0 0
      %3656 = vmatpush1.bf16.msra.mxu0 %v3361
      %3657 = vmatprep.subr.bf16.mxu0 0
      %3658 = vmatpush1.bf16.msra.mxu0 %v3362
      %3659 = vmatprep.subr.bf16.mxu0 0
      %3660 = vmatpush1.bf16.msra.mxu0 %v3363
      %3661 = vmatprep.subr.bf16.mxu0 0
      %3662 = vmatpush1.bf16.msra.mxu0 %v3364
      %3663 = vmatprep.subr.bf16.mxu0 0
      %3664 = vmatpush1.bf16.msra.mxu0 %v3365
      %3665 = vmatprep.subr.bf16.mxu0 0
      %3666 = vmatpush1.bf16.msra.mxu0 %v3366
      %3667 = vmatprep.subr.bf16.mxu0 0
      %3668 = vmatpush1.bf16.msra.mxu0 %v3367
      %3669 = vmatprep.subr.bf16.mxu0 0
      %3670 = vmatpush1.bf16.msra.mxu0 %v3368
      %3671 = vmatprep.subr.bf16.mxu0 0
      %3672 = vmatpush1.bf16.msra.mxu0 %v3369
      %3673 = vmatprep.subr.bf16.mxu0 0
      %3674 = vmatpush1.bf16.msra.mxu0 %v3370
      %3675 = vmatprep.subr.bf16.mxu0 0
      %3676 = vmatpush1.bf16.msra.mxu0 %v3371
      %3677 = vmatprep.subr.bf16.mxu0 0
      %3678 = vmatpush1.bf16.msra.mxu0 %v3372
      %3679 = vmatprep.mubr.bf16.mxu0 %v2873
      %3680 = vmatmul.mubr.bf16.gmra.mrb[0].mxu0 %v2872
      %v3681 = vpop.f32.mrb[0].mxu0
      %v3682 = vadd.f32 %v3585, %v3681
      %v3683 = vpop.f32.mrb[0].mxu0
      %v3684 = vpop.f32.mrb[0].mxu0
      %v3685 = vadd.f32 %v3588, %v3684
      %v3686 = vpop.f32.mrb[0].mxu0
      %3687 = vmatprep.mubr.bf16.mxu0 %v2881
      %3688 = vmatmul.mubr.bf16.gmra.mrb[0].mxu0 %v2880
      %v3689 = vpop.f32.mrb[0].mxu0
      %v3690 = vadd.f32 %v3593, %v3689
      %v3691 = vpop.f32.mrb[0].mxu0
      %v3692 = vpop.f32.mrb[0].mxu0
      %v3693 = vadd.f32 %v3596, %v3692
      %v3694 = vpop.f32.mrb[0].mxu0
      %3695 = vmatprep.mubr.bf16.mxu0 %v2889
      %3696 = vmatmul.mubr.bf16.gmra.mrb[0].mxu0 %v2888
      %v3697 = vpop.f32.mrb[0].mxu0
      %v3698 = vadd.f32 %v3601, %v3697
      %v3699 = vpop.f32.mrb[0].mxu0
      %v3700 = vpop.f32.mrb[0].mxu0
      %v3701 = vadd.f32 %v3604, %v3700
      %v3702 = vpop.f32.mrb[0].mxu0
      %3703 = vmatprep.mubr.bf16.mxu0 %v2897
      %3704 = vmatmul.mubr.bf16.gmra.mrb[0].mxu0 %v2896
      %v3705 = vpop.f32.mrb[0].mxu0
      %v3706 = vadd.f32 %v3609, %v3705
      %v3707 = vpop.f32.mrb[0].mxu0
      %v3708 = vpop.f32.mrb[0].mxu0
      %v3709 = vadd.f32 %v3612, %v3708
      %v3710 = vpop.f32.mrb[0].mxu0
      %3711 = vmatprep.mubr.bf16.mxu0 %v2905
      %3712 = vmatmul.mubr.bf16.gmra.mrb[0].mxu0 %v2904
      %v3713 = vpop.f32.mrb[0].mxu0
      %v3714 = vadd.f32 %v3617, %v3713
      %v3715 = vpop.f32.mrb[0].mxu0
      %v3716 = vpop.f32.mrb[0].mxu0
      %v3717 = vadd.f32 %v3620, %v3716
      %v3718 = vpop.f32.mrb[0].mxu0
      %3719 = vmatprep.mubr.bf16.mxu0 %v2913
      %3720 = vmatmul.mubr.bf16.gmra.mrb[0].mxu0 %v2912
      %v3721 = vpop.f32.mrb[0].mxu0
      %v3722 = vadd.f32 %v3625, %v3721
      %v3723 = vpop.f32.mrb[0].mxu0
      %v3724 = vpop.f32.mrb[0].mxu0
      %v3725 = vadd.f32 %v3628, %v3724
      %v3726 = vpop.f32.mrb[0].mxu0
      %3727 = vmatprep.mubr.bf16.mxu0 %v2921
      %3728 = vmatmul.mubr.bf16.gmra.mrb[0].mxu0 %v2920
      %v3729 = vpop.f32.mrb[0].mxu0
      %v3730 = vadd.f32 %v3633, %v3729
      %v3731 = vpop.f32.mrb[0].mxu0
      %v3732 = vpop.f32.mrb[0].mxu0
      %v3733 = vadd.f32 %v3636, %v3732
      %v3734 = vpop.f32.mrb[0].mxu0
      %3735 = vmatprep.mubr.bf16.mxu0 %v2929
      %3736 = vmatmul.mubr.bf16.gmra.mrb[0].mxu0 %v2928
      %v3737 = vpop.f32.mrb[0].mxu0
      %v3738 = vadd.f32 %v3641, %v3737
      %v3739 = vpop.f32.mrb[0].mxu0
      %v3740 = vpop.f32.mrb[0].mxu0
      %v3741 = vadd.f32 %v3644, %v3740
      %v3742 = vpop.f32.mrb[0].mxu0
      %3743 = vdwg.mxu0
      %3744 = vmatprep.subr.bf16.mxu0 0
      %3745 = vmatpush1.bf16.msra.mxu0 %v3373
      %3746 = vmatprep.subr.bf16.mxu0 0
      %3747 = vmatpush1.bf16.msra.mxu0 %v3374
      %3748 = vmatprep.subr.bf16.mxu0 0
      %3749 = vmatpush1.bf16.msra.mxu0 %v3375
      %3750 = vmatprep.subr.bf16.mxu0 0
      %3751 = vmatpush1.bf16.msra.mxu0 %v3376
      %3752 = vmatprep.subr.bf16.mxu0 0
      %3753 = vmatpush1.bf16.msra.mxu0 %v3377
      %3754 = vmatprep.subr.bf16.mxu0 0
      %3755 = vmatpush1.bf16.msra.mxu0 %v3378
      %3756 = vmatprep.subr.bf16.mxu0 0
      %3757 = vmatpush1.bf16.msra.mxu0 %v3379
      %3758 = vmatprep.subr.bf16.mxu0 0
      %3759 = vmatpush1.bf16.msra.mxu0 %v3380
      %3760 = vmatprep.subr.bf16.mxu0 0
      %3761 = vmatpush1.bf16.msra.mxu0 %v3381
      %3762 = vmatprep.subr.bf16.mxu0 0
      %3763 = vmatpush1.bf16.msra.mxu0 %v3382
      %3764 = vmatprep.subr.bf16.mxu0 0
      %3765 = vmatpush1.bf16.msra.mxu0 %v3383
      %3766 = vmatprep.subr.bf16.mxu0 0
      %3767 = vmatpush1.bf16.msra.mxu0 %v3384
      %3768 = vmatprep.subr.bf16.mxu0 0
      %3769 = vmatpush1.bf16.msra.mxu0 %v3385
      %3770 = vmatprep.subr.bf16.mxu0 0
      %3771 = vmatpush1.bf16.msra.mxu0 %v3386
      %3772 = vmatprep.subr.bf16.mxu0 0
      %3773 = vmatpush1.bf16.msra.mxu0 %v3387
      %3774 = vmatprep.subr.bf16.mxu0 0
      %3775 = vmatpush1.bf16.msra.mxu0 %v3388
      %3776 = vmatprep.mubr.bf16.mxu0 %v2875
      %3777 = vmatmul.mubr.bf16.gmra.mrb[0].mxu0 %v2874
      %v3778 = vpop.f32.mrb[0].mxu0
      %v3779 = vadd.f32 %v3682, %v3778
      %v3780 = vpop.f32.mrb[0].mxu0
      %v3781 = vpop.f32.mrb[0].mxu0
      %v3782 = vadd.f32 %v3685, %v3781
      %v3783 = vpop.f32.mrb[0].mxu0
      %3784 = vmatprep.mubr.bf16.mxu0 %v2883
      %3785 = vmatmul.mubr.bf16.gmra.mrb[0].mxu0 %v2882
      %v3786 = vpop.f32.mrb[0].mxu0
      %v3787 = vadd.f32 %v3690, %v3786
      %v3788 = vpop.f32.mrb[0].mxu0
      %v3789 = vpop.f32.mrb[0].mxu0
      %v3790 = vadd.f32 %v3693, %v3789
      %v3791 = vpop.f32.mrb[0].mxu0
      %3792 = vmatprep.mubr.bf16.mxu0 %v2891
      %3793 = vmatmul.mubr.bf16.gmra.mrb[0].mxu0 %v2890
      %v3794 = vpop.f32.mrb[0].mxu0
      %v3795 = vadd.f32 %v3698, %v3794
      %v3796 = vpop.f32.mrb[0].mxu0
      %v3797 = vpop.f32.mrb[0].mxu0
      %v3798 = vadd.f32 %v3701, %v3797
      %v3799 = vpop.f32.mrb[0].mxu0
      %3800 = vmatprep.mubr.bf16.mxu0 %v2899
      %3801 = vmatmul.mubr.bf16.gmra.mrb[0].mxu0 %v2898
      %v3802 = vpop.f32.mrb[0].mxu0
      %v3803 = vadd.f32 %v3706, %v3802
      %v3804 = vpop.f32.mrb[0].mxu0
      %v3805 = vpop.f32.mrb[0].mxu0
      %v3806 = vadd.f32 %v3709, %v3805
      %v3807 = vpop.f32.mrb[0].mxu0
      %3808 = vmatprep.mubr.bf16.mxu0 %v2907
      %3809 = vmatmul.mubr.bf16.gmra.mrb[0].mxu0 %v2906
      %v3810 = vpop.f32.mrb[0].mxu0
      %v3811 = vadd.f32 %v3714, %v3810
      %v3812 = vpop.f32.mrb[0].mxu0
      %v3813 = vpop.f32.mrb[0].mxu0
      %v3814 = vadd.f32 %v3717, %v3813
      %v3815 = vpop.f32.mrb[0].mxu0
      %3816 = vmatprep.mubr.bf16.mxu0 %v2915
      %3817 = vmatmul.mubr.bf16.gmra.mrb[0].mxu0 %v2914
      %v3818 = vpop.f32.mrb[0].mxu0
      %v3819 = vadd.f32 %v3722, %v3818
      %v3820 = vpop.f32.mrb[0].mxu0
      %v3821 = vpop.f32.mrb[0].mxu0
      %v3822 = vadd.f32 %v3725, %v3821
      %v3823 = vpop.f32.mrb[0].mxu0
      %3824 = vmatprep.mubr.bf16.mxu0 %v2923
      %3825 = vmatmul.mubr.bf16.gmra.mrb[0].mxu0 %v2922
      %v3826 = vpop.f32.mrb[0].mxu0
      %v3827 = vadd.f32 %v3730, %v3826
      %v3828 = vpop.f32.mrb[0].mxu0
      %v3829 = vpop.f32.mrb[0].mxu0
      %v3830 = vadd.f32 %v3733, %v3829
      %v3831 = vpop.f32.mrb[0].mxu0
      %3832 = vmatprep.mubr.bf16.mxu0 %v2931
      %3833 = vmatmul.mubr.bf16.gmra.mrb[0].mxu0 %v2930
      %v3834 = vpop.f32.mrb[0].mxu0
      %v3835 = vadd.f32 %v3738, %v3834
      %v3836 = vpop.f32.mrb[0].mxu0
      %v3837 = vpop.f32.mrb[0].mxu0
      %v3838 = vadd.f32 %v3741, %v3837
      %v3839 = vpop.f32.mrb[0].mxu0
      %3840 = vdwg.mxu0
      %v3841 = vmax.f32 %v3779, 0.0
      %v3842 = vmax.f32 %v3782, 0.0
      %v3843 = vmax.f32 %v3787, 0.0
      %v3844 = vmax.f32 %v3790, 0.0
      %v3845 = vmax.f32 %v3795, 0.0
      %v3846 = vmax.f32 %v3798, 0.0
      %v3847 = vmax.f32 %v3803, 0.0
      %v3848 = vmax.f32 %v3806, 0.0
      %v3849 = vmax.f32 %v3811, 0.0
      %v3850 = vmax.f32 %v3814, 0.0
      %v3851 = vmax.f32 %v3819, 0.0
      %v3852 = vmax.f32 %v3822, 0.0
      %v3853 = vmax.f32 %v3827, 0.0
      %v3854 = vmax.f32 %v3830, 0.0
      %v3855 = vmax.f32 %v3835, 0.0
      %v3856 = vmax.f32 %v3838, 0.0
      %v3857 = vmax.f32 %v2084, %v3841
      %v3858 = vmax.f32 %v2085, %v3842
      %v3859 = vmax.f32 %v2086, %v3843
      %v3860 = vmax.f32 %v2087, %v3844
      %v3861 = vmax.f32 %v2088, %v3845
      %v3862 = vmax.f32 %v2089, %v3846
      %v3863 = vmax.f32 %v2090, %v3847
      %v3864 = vmax.f32 %v2091, %v3848
      %v3865 = vmax.f32 %v2092, %v3849
      %v3866 = vmax.f32 %v2093, %v3850
      %v3867 = vmax.f32 %v2094, %v3851
      %v3868 = vmax.f32 %v2095, %v3852
      %v3869 = vmax.f32 %v2096, %v3853
      %v3870 = vmax.f32 %v2097, %v3854
      %v3871 = vmax.f32 %v2098, %v3855
      %v3872 = vmax.f32 %v2099, %v3856
      %s3873 = scalar_lea.vmem %s1, 320
      %v3874 = vld [vmem:[%s3873] sm:$0xff]
      %v3875 = vld [vmem:[%s3873 + $0x8] sm:$0xff]
      %v3876 = vld [vmem:[%s3873 + $0x10] sm:$0xff]
      %v3877 = vld [vmem:[%s3873 + $0x18] sm:$0xff]
      %v3878 = vld [vmem:[%s3873 + $0x20] sm:$0xff]
      %v3879 = vld [vmem:[%s3873 + $0x28] sm:$0xff]
      %v3880 = vld [vmem:[%s3873 + $0x30] sm:$0xff]
      %v3881 = vld [vmem:[%s3873 + $0x38] sm:$0xff]
      %v3882 = vld [vmem:[%s3873 + $0x40] sm:$0xff]
      %v3883 = vld [vmem:[%s3873 + $0x48] sm:$0xff]
      %v3884 = vld [vmem:[%s3873 + $0x50] sm:$0xff]
      %v3885 = vld [vmem:[%s3873 + $0x58] sm:$0xff]
      %v3886 = vld [vmem:[%s3873 + $0x60] sm:$0xff]
      %v3887 = vld [vmem:[%s3873 + $0x68] sm:$0xff]
      %v3888 = vld [vmem:[%s3873 + $0x70] sm:$0xff]
      %v3889 = vld [vmem:[%s3873 + $0x78] sm:$0xff]
      %v3890 = vld [vmem:[%s3873 + $0x80] sm:$0x33]
      %v3891 = vld [vmem:[%s3873 + $0x88] sm:$0x33]
      %v3892 = vld [vmem:[%s3873 + $0x90] sm:$0x33]
      %v3893 = vld [vmem:[%s3873 + $0x98] sm:$0x33]
      %s3894 = scalar_lea.vmem %s2, 16
      %v3895 = vld [vmem:[%s3894] sm:$0xff]
      %v3897 = vlaneseq
      %v3898 = vshrl.u32 %v3897, 7
      %v3899 = vsub.s32 0, %v3898
      %v3900 = vrot.slane %v3895, %v3899
      %v3901 = vlaneseq
      %v3902 = vshrl.u32 %v3901, 7
      %v3903 = vsub.s32 1, %v3902
      %v3904 = vrot.slane %v3895, %v3903
      %v3905 = vlaneseq
      %v3906 = vshrl.u32 %v3905, 7
      %v3907 = vsub.s32 2, %v3906
      %v3908 = vrot.slane %v3895, %v3907
      %v3909 = vlaneseq
      %v3910 = vshrl.u32 %v3909, 7
      %v3911 = vsub.s32 3, %v3910
      %v3912 = vrot.slane %v3895, %v3911
      %v3913 = vlaneseq
      %v3914 = vshrl.u32 %v3913, 7
      %v3915 = vsub.s32 4, %v3914
      %v3916 = vrot.slane %v3895, %v3915
      %v3917 = vlaneseq
      %v3918 = vshrl.u32 %v3917, 7
      %v3919 = vsub.s32 5, %v3918
      %v3920 = vrot.slane %v3895, %v3919
      %v3921 = vlaneseq
      %v3922 = vshrl.u32 %v3921, 7
      %v3923 = vsub.s32 6, %v3922
      %v3924 = vrot.slane %v3895, %v3923
      %v3925 = vlaneseq
      %v3926 = vshrl.u32 %v3925, 7
      %v3927 = vsub.s32 7, %v3926
      %v3928 = vrot.slane %v3895, %v3927
      %v3957 = vunpack.c.l.b16 %v3874
      %v3958 = vunpack.c.h.b16 %v3874
      %v3959 = vunpack.c.l.b16 %v3875
      %v3960 = vunpack.c.h.b16 %v3875
      %v3961 = vunpack.c.l.b16 %v3876
      %v3962 = vunpack.c.h.b16 %v3876
      %v3963 = vunpack.c.l.b16 %v3877
      %v3964 = vunpack.c.h.b16 %v3877
      %v3965 = vunpack.c.l.b16 %v3878
      %v3966 = vunpack.c.h.b16 %v3878
      %v3967 = vunpack.c.l.b16 %v3879
      %v3968 = vunpack.c.h.b16 %v3879
      %v3969 = vunpack.c.l.b16 %v3880
      %v3970 = vunpack.c.h.b16 %v3880
      %v3971 = vunpack.c.l.b16 %v3881
      %v3972 = vunpack.c.h.b16 %v3881
      %v3973 = vunpack.c.l.b16 %v3882
      %v3974 = vunpack.c.h.b16 %v3882
      %v3975 = vunpack.c.l.b16 %v3883
      %v3976 = vunpack.c.h.b16 %v3883
      %v3977 = vunpack.c.l.b16 %v3884
      %v3978 = vunpack.c.h.b16 %v3884
      %v3979 = vunpack.c.l.b16 %v3885
      %v3980 = vunpack.c.h.b16 %v3885
      %v3981 = vunpack.c.l.b16 %v3886
      %v3982 = vunpack.c.h.b16 %v3886
      %v3983 = vunpack.c.l.b16 %v3887
      %v3984 = vunpack.c.h.b16 %v3887
      %v3985 = vunpack.c.l.b16 %v3888
      %v3986 = vunpack.c.h.b16 %v3888
      %v3987 = vunpack.c.l.b16 %v3889
      %v3988 = vunpack.c.h.b16 %v3889
      %v3989 = vunpack.c.l.b16 %v3890
      %v3990 = vunpack.c.h.b16 %v3890
      %v3991 = vunpack.c.l.b16 %v3891
      %v3992 = vunpack.c.h.b16 %v3891
      %v3993 = vunpack.c.l.b16 %v3892
      %v3994 = vunpack.c.h.b16 %v3892
      %v3995 = vunpack.c.l.b16 %v3893
      %v3996 = vunpack.c.h.b16 %v3893
      %v3997 = vpack.c.b16 %v3965, %v3957
      %v3998 = vpack.c.b16 %v3966, %v3958
      %v3999 = vpack.c.b16 %v3967, %v3959
      %v4000 = vpack.c.b16 %v3968, %v3960
      %v4001 = vpack.c.b16 %v3969, %v3961
      %v4002 = vpack.c.b16 %v3970, %v3962
      %v4003 = vpack.c.b16 %v3971, %v3963
      %v4004 = vpack.c.b16 %v3972, %v3964
      %v4005 = vpack.c.b16 %v3981, %v3973
      %v4006 = vpack.c.b16 %v3982, %v3974
      %v4007 = vpack.c.b16 %v3983, %v3975
      %v4008 = vpack.c.b16 %v3984, %v3976
      %v4009 = vpack.c.b16 %v3985, %v3977
      %v4010 = vpack.c.b16 %v3986, %v3978
      %v4011 = vpack.c.b16 %v3987, %v3979
      %v4012 = vpack.c.b16 %v3988, %v3980
      %v4013 = vpack.c.b16 %v3989, %v3989
      %v4014 = vpack.c.b16 %v3990, %v3990
      %v4015 = vpack.c.b16 %v3991, %v3991
      %v4016 = vpack.c.b16 %v3992, %v3992
      %v4017 = vpack.c.b16 %v3993, %v3993
      %v4018 = vpack.c.b16 %v3994, %v3994
      %v4019 = vpack.c.b16 %v3995, %v3995
      %v4020 = vpack.c.b16 %v3996, %v3996
      %v4038 = vsel %vm508, %v4013, 0
      %v4041 = vsel %vm508, %v4014, 0
      %v4044 = vsel %vm508, %v4015, 0
      %v4047 = vsel %vm508, %v4016, 0
      %v4050 = vsel %vm508, %v4017, 0
      %v4053 = vsel %vm508, %v4018, 0
      %v4056 = vsel %vm508, %v4019, 0
      %v4059 = vsel %vm508, %v4020, 0
      %4061 = vmatprep.subr.bf16.mxu0 %v3998
      %4062 = vmatpush1.bf16.msra.mxu0 %v3997
      %4063 = vmatprep.subr.bf16.mxu0 %v4006
      %4064 = vmatpush1.bf16.msra.mxu0 %v4005
      %4065 = vmatprep.subr.bf16.mxu0 %v4041
      %4066 = vmatpush1.bf16.msra.mxu0 %v4038
      %4067 = vmatprep.subr.bf16.mxu0 0
      %4068 = vmatpush1.bf16.msra.mxu0 0
      %4069 = vmatprep.subr.bf16.mxu0 0
      %4070 = vmatpush1.bf16.msra.mxu0 0
      %4071 = vmatprep.subr.bf16.mxu0 0
      %4072 = vmatpush1.bf16.msra.mxu0 0
      %4073 = vmatprep.subr.bf16.mxu0 0
      %4074 = vmatpush1.bf16.msra.mxu0 0
      %4075 = vmatprep.subr.bf16.mxu0 0
      %4076 = vmatpush1.bf16.msra.mxu0 0
      %4077 = vmatprep.subr.bf16.mxu0 0
      %4078 = vmatpush1.bf16.msra.mxu0 0
      %4079 = vmatprep.subr.bf16.mxu0 0
      %4080 = vmatpush1.bf16.msra.mxu0 0
      %4081 = vmatprep.subr.bf16.mxu0 0
      %4082 = vmatpush1.bf16.msra.mxu0 0
      %4083 = vmatprep.subr.bf16.mxu0 0
      %4084 = vmatpush1.bf16.msra.mxu0 0
      %4085 = vmatprep.subr.bf16.mxu0 0
      %4086 = vmatpush1.bf16.msra.mxu0 0
      %4087 = vmatprep.subr.bf16.mxu0 0
      %4088 = vmatpush1.bf16.msra.mxu0 0
      %4089 = vmatprep.subr.bf16.mxu0 0
      %4090 = vmatpush1.bf16.msra.mxu0 0
      %4091 = vmatprep.subr.bf16.mxu0 0
      %4092 = vmatpush1.bf16.msra.mxu0 0
      %4093 = vmatprep.mubr.bf16.mxu0 0
      %4094 = vmatmul.mubr.bf16.gmra.mrb[0].mxu0 %v485
      %v4095 = vpop.f32.mrb[0].mxu0
      %v4096 = vadd.f32 %v3900, %v4095
      %v4097 = vpop.f32.mrb[0].mxu0
      %v4098 = vadd.f32 %v3904, %v4097
      %v4099 = vpop.f32.mrb[0].mxu0
      %v4100 = vadd.f32 %v3900, %v4099
      %v4101 = vpop.f32.mrb[0].mxu0
      %v4102 = vadd.f32 %v3904, %v4101
      %4103 = vmatprep.mubr.bf16.mxu0 0
      %4104 = vmatmul.mubr.bf16.gmra.mrb[0].mxu0 %v488
      %v4105 = vpop.f32.mrb[0].mxu0
      %v4106 = vadd.f32 %v3900, %v4105
      %v4107 = vpop.f32.mrb[0].mxu0
      %v4108 = vadd.f32 %v3904, %v4107
      %v4109 = vpop.f32.mrb[0].mxu0
      %v4110 = vadd.f32 %v3900, %v4109
      %v4111 = vpop.f32.mrb[0].mxu0
      %v4112 = vadd.f32 %v3904, %v4111
      %4113 = vmatprep.mubr.bf16.mxu0 0
      %4114 = vmatmul.mubr.bf16.gmra.mrb[0].mxu0 %v491
      %v4115 = vpop.f32.mrb[0].mxu0
      %v4116 = vadd.f32 %v3900, %v4115
      %v4117 = vpop.f32.mrb[0].mxu0
      %v4118 = vadd.f32 %v3904, %v4117
      %v4119 = vpop.f32.mrb[0].mxu0
      %v4120 = vadd.f32 %v3900, %v4119
      %v4121 = vpop.f32.mrb[0].mxu0
      %v4122 = vadd.f32 %v3904, %v4121
      %4123 = vmatprep.mubr.bf16.mxu0 0
      %4124 = vmatmul.mubr.bf16.gmra.mrb[0].mxu0 %v494
      %v4125 = vpop.f32.mrb[0].mxu0
      %v4126 = vadd.f32 %v3900, %v4125
      %v4127 = vpop.f32.mrb[0].mxu0
      %v4128 = vadd.f32 %v3904, %v4127
      %v4129 = vpop.f32.mrb[0].mxu0
      %v4130 = vadd.f32 %v3900, %v4129
      %v4131 = vpop.f32.mrb[0].mxu0
      %v4132 = vadd.f32 %v3904, %v4131
      %4133 = vmatprep.mubr.bf16.mxu0 0
      %4134 = vmatmul.mubr.bf16.gmra.mrb[0].mxu0 %v497
      %v4135 = vpop.f32.mrb[0].mxu0
      %v4136 = vadd.f32 %v3900, %v4135
      %v4137 = vpop.f32.mrb[0].mxu0
      %v4138 = vadd.f32 %v3904, %v4137
      %v4139 = vpop.f32.mrb[0].mxu0
      %v4140 = vadd.f32 %v3900, %v4139
      %v4141 = vpop.f32.mrb[0].mxu0
      %v4142 = vadd.f32 %v3904, %v4141
      %4143 = vmatprep.mubr.bf16.mxu0 0
      %4144 = vmatmul.mubr.bf16.gmra.mrb[0].mxu0 %v500
      %v4145 = vpop.f32.mrb[0].mxu0
      %v4146 = vadd.f32 %v3900, %v4145
      %v4147 = vpop.f32.mrb[0].mxu0
      %v4148 = vadd.f32 %v3904, %v4147
      %v4149 = vpop.f32.mrb[0].mxu0
      %v4150 = vadd.f32 %v3900, %v4149
      %v4151 = vpop.f32.mrb[0].mxu0
      %v4152 = vadd.f32 %v3904, %v4151
      %4153 = vmatprep.mubr.bf16.mxu0 0
      %4154 = vmatmul.mubr.bf16.gmra.mrb[0].mxu0 %v503
      %v4155 = vpop.f32.mrb[0].mxu0
      %v4156 = vadd.f32 %v3900, %v4155
      %v4157 = vpop.f32.mrb[0].mxu0
      %v4158 = vadd.f32 %v3904, %v4157
      %v4159 = vpop.f32.mrb[0].mxu0
      %v4160 = vadd.f32 %v3900, %v4159
      %v4161 = vpop.f32.mrb[0].mxu0
      %v4162 = vadd.f32 %v3904, %v4161
      %4163 = vmatprep.mubr.bf16.mxu0 0
      %4164 = vmatmul.mubr.bf16.gmra.mrb[0].mxu0 %v506
      %v4165 = vpop.f32.mrb[0].mxu0
      %v4166 = vadd.f32 %v3900, %v4165
      %v4167 = vpop.f32.mrb[0].mxu0
      %v4168 = vadd.f32 %v3904, %v4167
      %v4169 = vpop.f32.mrb[0].mxu0
      %v4170 = vadd.f32 %v3900, %v4169
      %v4171 = vpop.f32.mrb[0].mxu0
      %v4172 = vadd.f32 %v3904, %v4171
      %4173 = vdwg.mxu0
      %4174 = vmatprep.subr.bf16.mxu0 %v4000
      %4175 = vmatpush1.bf16.msra.mxu0 %v3999
      %4176 = vmatprep.subr.bf16.mxu0 %v4008
      %4177 = vmatpush1.bf16.msra.mxu0 %v4007
      %4178 = vmatprep.subr.bf16.mxu0 %v4047
      %4179 = vmatpush1.bf16.msra.mxu0 %v4044
      %4180 = vmatprep.subr.bf16.mxu0 0
      %4181 = vmatpush1.bf16.msra.mxu0 0
      %4182 = vmatprep.subr.bf16.mxu0 0
      %4183 = vmatpush1.bf16.msra.mxu0 0
      %4184 = vmatprep.subr.bf16.mxu0 0
      %4185 = vmatpush1.bf16.msra.mxu0 0
      %4186 = vmatprep.subr.bf16.mxu0 0
      %4187 = vmatpush1.bf16.msra.mxu0 0
      %4188 = vmatprep.subr.bf16.mxu0 0
      %4189 = vmatpush1.bf16.msra.mxu0 0
      %4190 = vmatprep.subr.bf16.mxu0 0
      %4191 = vmatpush1.bf16.msra.mxu0 0
      %4192 = vmatprep.subr.bf16.mxu0 0
      %4193 = vmatpush1.bf16.msra.mxu0 0
      %4194 = vmatprep.subr.bf16.mxu0 0
      %4195 = vmatpush1.bf16.msra.mxu0 0
      %4196 = vmatprep.subr.bf16.mxu0 0
      %4197 = vmatpush1.bf16.msra.mxu0 0
      %4198 = vmatprep.subr.bf16.mxu0 0
      %4199 = vmatpush1.bf16.msra.mxu0 0
      %4200 = vmatprep.subr.bf16.mxu0 0
      %4201 = vmatpush1.bf16.msra.mxu0 0
      %4202 = vmatprep.subr.bf16.mxu0 0
      %4203 = vmatpush1.bf16.msra.mxu0 0
      %4204 = vmatprep.subr.bf16.mxu0 0
      %4205 = vmatpush1.bf16.msra.mxu0 0
      %4206 = vmatprep.mubr.bf16.mxu0 0
      %4207 = vmatmul.mubr.bf16.gmra.mrb[0].mxu0 %v485
      %v4208 = vpop.f32.mrb[0].mxu0
      %v4209 = vadd.f32 %v3908, %v4208
      %v4210 = vpop.f32.mrb[0].mxu0
      %v4211 = vadd.f32 %v3912, %v4210
      %v4212 = vpop.f32.mrb[0].mxu0
      %v4213 = vadd.f32 %v3908, %v4212
      %v4214 = vpop.f32.mrb[0].mxu0
      %v4215 = vadd.f32 %v3912, %v4214
      %4216 = vmatprep.mubr.bf16.mxu0 0
      %4217 = vmatmul.mubr.bf16.gmra.mrb[0].mxu0 %v488
      %v4218 = vpop.f32.mrb[0].mxu0
      %v4219 = vadd.f32 %v3908, %v4218
      %v4220 = vpop.f32.mrb[0].mxu0
      %v4221 = vadd.f32 %v3912, %v4220
      %v4222 = vpop.f32.mrb[0].mxu0
      %v4223 = vadd.f32 %v3908, %v4222
      %v4224 = vpop.f32.mrb[0].mxu0
      %v4225 = vadd.f32 %v3912, %v4224
      %4226 = vmatprep.mubr.bf16.mxu0 0
      %4227 = vmatmul.mubr.bf16.gmra.mrb[0].mxu0 %v491
      %v4228 = vpop.f32.mrb[0].mxu0
      %v4229 = vadd.f32 %v3908, %v4228
      %v4230 = vpop.f32.mrb[0].mxu0
      %v4231 = vadd.f32 %v3912, %v4230
      %v4232 = vpop.f32.mrb[0].mxu0
      %v4233 = vadd.f32 %v3908, %v4232
      %v4234 = vpop.f32.mrb[0].mxu0
      %v4235 = vadd.f32 %v3912, %v4234
      %4236 = vmatprep.mubr.bf16.mxu0 0
      %4237 = vmatmul.mubr.bf16.gmra.mrb[0].mxu0 %v494
      %v4238 = vpop.f32.mrb[0].mxu0
      %v4239 = vadd.f32 %v3908, %v4238
      %v4240 = vpop.f32.mrb[0].mxu0
      %v4241 = vadd.f32 %v3912, %v4240
      %v4242 = vpop.f32.mrb[0].mxu0
      %v4243 = vadd.f32 %v3908, %v4242
      %v4244 = vpop.f32.mrb[0].mxu0
      %v4245 = vadd.f32 %v3912, %v4244
      %4246 = vmatprep.mubr.bf16.mxu0 0
      %4247 = vmatmul.mubr.bf16.gmra.mrb[0].mxu0 %v497
      %v4248 = vpop.f32.mrb[0].mxu0
      %v4249 = vadd.f32 %v3908, %v4248
      %v4250 = vpop.f32.mrb[0].mxu0
      %v4251 = vadd.f32 %v3912, %v4250
      %v4252 = vpop.f32.mrb[0].mxu0
      %v4253 = vadd.f32 %v3908, %v4252
      %v4254 = vpop.f32.mrb[0].mxu0
      %v4255 = vadd.f32 %v3912, %v4254
      %4256 = vmatprep.mubr.bf16.mxu0 0
      %4257 = vmatmul.mubr.bf16.gmra.mrb[0].mxu0 %v500
      %v4258 = vpop.f32.mrb[0].mxu0
      %v4259 = vadd.f32 %v3908, %v4258
      %v4260 = vpop.f32.mrb[0].mxu0
      %v4261 = vadd.f32 %v3912, %v4260
      %v4262 = vpop.f32.mrb[0].mxu0
      %v4263 = vadd.f32 %v3908, %v4262
      %v4264 = vpop.f32.mrb[0].mxu0
      %v4265 = vadd.f32 %v3912, %v4264
      %4266 = vmatprep.mubr.bf16.mxu0 0
      %4267 = vmatmul.mubr.bf16.gmra.mrb[0].mxu0 %v503
      %v4268 = vpop.f32.mrb[0].mxu0
      %v4269 = vadd.f32 %v3908, %v4268
      %v4270 = vpop.f32.mrb[0].mxu0
      %v4271 = vadd.f32 %v3912, %v4270
      %v4272 = vpop.f32.mrb[0].mxu0
      %v4273 = vadd.f32 %v3908, %v4272
      %v4274 = vpop.f32.mrb[0].mxu0
      %v4275 = vadd.f32 %v3912, %v4274
      %4276 = vmatprep.mubr.bf16.mxu0 0
      %4277 = vmatmul.mubr.bf16.gmra.mrb[0].mxu0 %v506
      %v4278 = vpop.f32.mrb[0].mxu0
      %v4279 = vadd.f32 %v3908, %v4278
      %v4280 = vpop.f32.mrb[0].mxu0
      %v4281 = vadd.f32 %v3912, %v4280
      %v4282 = vpop.f32.mrb[0].mxu0
      %v4283 = vadd.f32 %v3908, %v4282
      %v4284 = vpop.f32.mrb[0].mxu0
      %v4285 = vadd.f32 %v3912, %v4284
      %4286 = vdwg.mxu0
      %4287 = vmatprep.subr.bf16.mxu0 %v4002
      %4288 = vmatpush1.bf16.msra.mxu0 %v4001
      %4289 = vmatprep.subr.bf16.mxu0 %v4010
      %4290 = vmatpush1.bf16.msra.mxu0 %v4009
      %4291 = vmatprep.subr.bf16.mxu0 %v4053
      %4292 = vmatpush1.bf16.msra.mxu0 %v4050
      %4293 = vmatprep.subr.bf16.mxu0 0
      %4294 = vmatpush1.bf16.msra.mxu0 0
      %4295 = vmatprep.subr.bf16.mxu0 0
      %4296 = vmatpush1.bf16.msra.mxu0 0
      %4297 = vmatprep.subr.bf16.mxu0 0
      %4298 = vmatpush1.bf16.msra.mxu0 0
      %4299 = vmatprep.subr.bf16.mxu0 0
      %4300 = vmatpush1.bf16.msra.mxu0 0
      %4301 = vmatprep.subr.bf16.mxu0 0
      %4302 = vmatpush1.bf16.msra.mxu0 0
      %4303 = vmatprep.subr.bf16.mxu0 0
      %4304 = vmatpush1.bf16.msra.mxu0 0
      %4305 = vmatprep.subr.bf16.mxu0 0
      %4306 = vmatpush1.bf16.msra.mxu0 0
      %4307 = vmatprep.subr.bf16.mxu0 0
      %4308 = vmatpush1.bf16.msra.mxu0 0
      %4309 = vmatprep.subr.bf16.mxu0 0
      %4310 = vmatpush1.bf16.msra.mxu0 0
      %4311 = vmatprep.subr.bf16.mxu0 0
      %4312 = vmatpush1.bf16.msra.mxu0 0
      %4313 = vmatprep.subr.bf16.mxu0 0
      %4314 = vmatpush1.bf16.msra.mxu0 0
      %4315 = vmatprep.subr.bf16.mxu0 0
      %4316 = vmatpush1.bf16.msra.mxu0 0
      %4317 = vmatprep.subr.bf16.mxu0 0
      %4318 = vmatpush1.bf16.msra.mxu0 0
      %4319 = vmatprep.mubr.bf16.mxu0 0
      %4320 = vmatmul.mubr.bf16.gmra.mrb[0].mxu0 %v485
      %v4321 = vpop.f32.mrb[0].mxu0
      %v4322 = vadd.f32 %v3916, %v4321
      %v4323 = vpop.f32.mrb[0].mxu0
      %v4324 = vadd.f32 %v3920, %v4323
      %v4325 = vpop.f32.mrb[0].mxu0
      %v4326 = vadd.f32 %v3916, %v4325
      %v4327 = vpop.f32.mrb[0].mxu0
      %v4328 = vadd.f32 %v3920, %v4327
      %4329 = vmatprep.mubr.bf16.mxu0 0
      %4330 = vmatmul.mubr.bf16.gmra.mrb[0].mxu0 %v488
      %v4331 = vpop.f32.mrb[0].mxu0
      %v4332 = vadd.f32 %v3916, %v4331
      %v4333 = vpop.f32.mrb[0].mxu0
      %v4334 = vadd.f32 %v3920, %v4333
      %v4335 = vpop.f32.mrb[0].mxu0
      %v4336 = vadd.f32 %v3916, %v4335
      %v4337 = vpop.f32.mrb[0].mxu0
      %v4338 = vadd.f32 %v3920, %v4337
      %4339 = vmatprep.mubr.bf16.mxu0 0
      %4340 = vmatmul.mubr.bf16.gmra.mrb[0].mxu0 %v491
      %v4341 = vpop.f32.mrb[0].mxu0
      %v4342 = vadd.f32 %v3916, %v4341
      %v4343 = vpop.f32.mrb[0].mxu0
      %v4344 = vadd.f32 %v3920, %v4343
      %v4345 = vpop.f32.mrb[0].mxu0
      %v4346 = vadd.f32 %v3916, %v4345
      %v4347 = vpop.f32.mrb[0].mxu0
      %v4348 = vadd.f32 %v3920, %v4347
      %4349 = vmatprep.mubr.bf16.mxu0 0
      %4350 = vmatmul.mubr.bf16.gmra.mrb[0].mxu0 %v494
      %v4351 = vpop.f32.mrb[0].mxu0
      %v4352 = vadd.f32 %v3916, %v4351
      %v4353 = vpop.f32.mrb[0].mxu0
      %v4354 = vadd.f32 %v3920, %v4353
      %v4355 = vpop.f32.mrb[0].mxu0
      %v4356 = vadd.f32 %v3916, %v4355
      %v4357 = vpop.f32.mrb[0].mxu0
      %v4358 = vadd.f32 %v3920, %v4357
      %4359 = vmatprep.mubr.bf16.mxu0 0
      %4360 = vmatmul.mubr.bf16.gmra.mrb[0].mxu0 %v497
      %v4361 = vpop.f32.mrb[0].mxu0
      %v4362 = vadd.f32 %v3916, %v4361
      %v4363 = vpop.f32.mrb[0].mxu0
      %v4364 = vadd.f32 %v3920, %v4363
      %v4365 = vpop.f32.mrb[0].mxu0
      %v4366 = vadd.f32 %v3916, %v4365
      %v4367 = vpop.f32.mrb[0].mxu0
      %v4368 = vadd.f32 %v3920, %v4367
      %4369 = vmatprep.mubr.bf16.mxu0 0
      %4370 = vmatmul.mubr.bf16.gmra.mrb[0].mxu0 %v500
      %v4371 = vpop.f32.mrb[0].mxu0
      %v4372 = vadd.f32 %v3916, %v4371
      %v4373 = vpop.f32.mrb[0].mxu0
      %v4374 = vadd.f32 %v3920, %v4373
      %v4375 = vpop.f32.mrb[0].mxu0
      %v4376 = vadd.f32 %v3916, %v4375
      %v4377 = vpop.f32.mrb[0].mxu0
      %v4378 = vadd.f32 %v3920, %v4377
      %4379 = vmatprep.mubr.bf16.mxu0 0
      %4380 = vmatmul.mubr.bf16.gmra.mrb[0].mxu0 %v503
      %v4381 = vpop.f32.mrb[0].mxu0
      %v4382 = vadd.f32 %v3916, %v4381
      %v4383 = vpop.f32.mrb[0].mxu0
      %v4384 = vadd.f32 %v3920, %v4383
      %v4385 = vpop.f32.mrb[0].mxu0
      %v4386 = vadd.f32 %v3916, %v4385
      %v4387 = vpop.f32.mrb[0].mxu0
      %v4388 = vadd.f32 %v3920, %v4387
      %4389 = vmatprep.mubr.bf16.mxu0 0
      %4390 = vmatmul.mubr.bf16.gmra.mrb[0].mxu0 %v506
      %v4391 = vpop.f32.mrb[0].mxu0
      %v4392 = vadd.f32 %v3916, %v4391
      %v4393 = vpop.f32.mrb[0].mxu0
      %v4394 = vadd.f32 %v3920, %v4393
      %v4395 = vpop.f32.mrb[0].mxu0
      %v4396 = vadd.f32 %v3916, %v4395
      %v4397 = vpop.f32.mrb[0].mxu0
      %v4398 = vadd.f32 %v3920, %v4397
      %4399 = vdwg.mxu0
      %4400 = vmatprep.subr.bf16.mxu0 %v4004
      %4401 = vmatpush1.bf16.msra.mxu0 %v4003
      %4402 = vmatprep.subr.bf16.mxu0 %v4012
      %4403 = vmatpush1.bf16.msra.mxu0 %v4011
      %4404 = vmatprep.subr.bf16.mxu0 %v4059
      %4405 = vmatpush1.bf16.msra.mxu0 %v4056
      %4406 = vmatprep.subr.bf16.mxu0 0
      %4407 = vmatpush1.bf16.msra.mxu0 0
      %4408 = vmatprep.subr.bf16.mxu0 0
      %4409 = vmatpush1.bf16.msra.mxu0 0
      %4410 = vmatprep.subr.bf16.mxu0 0
      %4411 = vmatpush1.bf16.msra.mxu0 0
      %4412 = vmatprep.subr.bf16.mxu0 0
      %4413 = vmatpush1.bf16.msra.mxu0 0
      %4414 = vmatprep.subr.bf16.mxu0 0
      %4415 = vmatpush1.bf16.msra.mxu0 0
      %4416 = vmatprep.subr.bf16.mxu0 0
      %4417 = vmatpush1.bf16.msra.mxu0 0
      %4418 = vmatprep.subr.bf16.mxu0 0
      %4419 = vmatpush1.bf16.msra.mxu0 0
      %4420 = vmatprep.subr.bf16.mxu0 0
      %4421 = vmatpush1.bf16.msra.mxu0 0
      %4422 = vmatprep.subr.bf16.mxu0 0
      %4423 = vmatpush1.bf16.msra.mxu0 0
      %4424 = vmatprep.subr.bf16.mxu0 0
      %4425 = vmatpush1.bf16.msra.mxu0 0
      %4426 = vmatprep.subr.bf16.mxu0 0
      %4427 = vmatpush1.bf16.msra.mxu0 0
      %4428 = vmatprep.subr.bf16.mxu0 0
      %4429 = vmatpush1.bf16.msra.mxu0 0
      %4430 = vmatprep.subr.bf16.mxu0 0
      %4431 = vmatpush1.bf16.msra.mxu0 0
      %4432 = vmatprep.mubr.bf16.mxu0 0
      %4433 = vmatmul.mubr.bf16.gmra.mrb[0].mxu0 %v485
      %v4434 = vpop.f32.mrb[0].mxu0
      %v4435 = vadd.f32 %v3924, %v4434
      %v4436 = vpop.f32.mrb[0].mxu0
      %v4437 = vadd.f32 %v3928, %v4436
      %v4438 = vpop.f32.mrb[0].mxu0
      %v4439 = vadd.f32 %v3924, %v4438
      %v4440 = vpop.f32.mrb[0].mxu0
      %v4441 = vadd.f32 %v3928, %v4440
      %4442 = vmatprep.mubr.bf16.mxu0 0
      %4443 = vmatmul.mubr.bf16.gmra.mrb[0].mxu0 %v488
      %v4444 = vpop.f32.mrb[0].mxu0
      %v4445 = vadd.f32 %v3924, %v4444
      %v4446 = vpop.f32.mrb[0].mxu0
      %v4447 = vadd.f32 %v3928, %v4446
      %v4448 = vpop.f32.mrb[0].mxu0
      %v4449 = vadd.f32 %v3924, %v4448
      %v4450 = vpop.f32.mrb[0].mxu0
      %v4451 = vadd.f32 %v3928, %v4450
      %4452 = vmatprep.mubr.bf16.mxu0 0
      %4453 = vmatmul.mubr.bf16.gmra.mrb[0].mxu0 %v491
      %v4454 = vpop.f32.mrb[0].mxu0
      %v4455 = vadd.f32 %v3924, %v4454
      %v4456 = vpop.f32.mrb[0].mxu0
      %v4457 = vadd.f32 %v3928, %v4456
      %v4458 = vpop.f32.mrb[0].mxu0
      %v4459 = vadd.f32 %v3924, %v4458
      %v4460 = vpop.f32.mrb[0].mxu0
      %v4461 = vadd.f32 %v3928, %v4460
      %4462 = vmatprep.mubr.bf16.mxu0 0
      %4463 = vmatmul.mubr.bf16.gmra.mrb[0].mxu0 %v494
      %v4464 = vpop.f32.mrb[0].mxu0
      %v4465 = vadd.f32 %v3924, %v4464
      %v4466 = vpop.f32.mrb[0].mxu0
      %v4467 = vadd.f32 %v3928, %v4466
      %v4468 = vpop.f32.mrb[0].mxu0
      %v4469 = vadd.f32 %v3924, %v4468
      %v4470 = vpop.f32.mrb[0].mxu0
      %v4471 = vadd.f32 %v3928, %v4470
      %4472 = vmatprep.mubr.bf16.mxu0 0
      %4473 = vmatmul.mubr.bf16.gmra.mrb[0].mxu0 %v497
      %v4474 = vpop.f32.mrb[0].mxu0
      %v4475 = vadd.f32 %v3924, %v4474
      %v4476 = vpop.f32.mrb[0].mxu0
      %v4477 = vadd.f32 %v3928, %v4476
      %v4478 = vpop.f32.mrb[0].mxu0
      %v4479 = vadd.f32 %v3924, %v4478
      %v4480 = vpop.f32.mrb[0].mxu0
      %v4481 = vadd.f32 %v3928, %v4480
      %4482 = vmatprep.mubr.bf16.mxu0 0
      %4483 = vmatmul.mubr.bf16.gmra.mrb[0].mxu0 %v500
      %v4484 = vpop.f32.mrb[0].mxu0
      %v4485 = vadd.f32 %v3924, %v4484
      %v4486 = vpop.f32.mrb[0].mxu0
      %v4487 = vadd.f32 %v3928, %v4486
      %v4488 = vpop.f32.mrb[0].mxu0
      %v4489 = vadd.f32 %v3924, %v4488
      %v4490 = vpop.f32.mrb[0].mxu0
      %v4491 = vadd.f32 %v3928, %v4490
      %4492 = vmatprep.mubr.bf16.mxu0 0
      %4493 = vmatmul.mubr.bf16.gmra.mrb[0].mxu0 %v503
      %v4494 = vpop.f32.mrb[0].mxu0
      %v4495 = vadd.f32 %v3924, %v4494
      %v4496 = vpop.f32.mrb[0].mxu0
      %v4497 = vadd.f32 %v3928, %v4496
      %v4498 = vpop.f32.mrb[0].mxu0
      %v4499 = vadd.f32 %v3924, %v4498
      %v4500 = vpop.f32.mrb[0].mxu0
      %v4501 = vadd.f32 %v3928, %v4500
      %4502 = vmatprep.mubr.bf16.mxu0 0
      %4503 = vmatmul.mubr.bf16.gmra.mrb[0].mxu0 %v506
      %v4504 = vpop.f32.mrb[0].mxu0
      %v4505 = vadd.f32 %v3924, %v4504
      %v4506 = vpop.f32.mrb[0].mxu0
      %v4507 = vadd.f32 %v3928, %v4506
      %v4508 = vpop.f32.mrb[0].mxu0
      %v4509 = vadd.f32 %v3924, %v4508
      %v4510 = vpop.f32.mrb[0].mxu0
      %v4511 = vadd.f32 %v3928, %v4510
      %4512 = vdwg.mxu0
      %v4513 = vmax.f32 %v4096, 0.0
      %v4514 = vmax.f32 %v4098, 0.0
      %v4515 = vmax.f32 %v4209, 0.0
      %v4516 = vmax.f32 %v4211, 0.0
      %v4517 = vmax.f32 %v4322, 0.0
      %v4518 = vmax.f32 %v4324, 0.0
      %v4519 = vmax.f32 %v4435, 0.0
      %v4520 = vmax.f32 %v4437, 0.0
      %v4521 = vmax.f32 %v4100, 0.0
      %v4522 = vmax.f32 %v4102, 0.0
      %v4523 = vmax.f32 %v4213, 0.0
      %v4524 = vmax.f32 %v4215, 0.0
      %v4525 = vmax.f32 %v4326, 0.0
      %v4526 = vmax.f32 %v4328, 0.0
      %v4527 = vmax.f32 %v4439, 0.0
      %v4528 = vmax.f32 %v4441, 0.0
      %v4529 = vmax.f32 %v4106, 0.0
      %v4530 = vmax.f32 %v4108, 0.0
      %v4531 = vmax.f32 %v4219, 0.0
      %v4532 = vmax.f32 %v4221, 0.0
      %v4533 = vmax.f32 %v4332, 0.0
      %v4534 = vmax.f32 %v4334, 0.0
      %v4535 = vmax.f32 %v4445, 0.0
      %v4536 = vmax.f32 %v4447, 0.0
      %v4537 = vmax.f32 %v4110, 0.0
      %v4538 = vmax.f32 %v4112, 0.0
      %v4539 = vmax.f32 %v4223, 0.0
      %v4540 = vmax.f32 %v4225, 0.0
      %v4541 = vmax.f32 %v4336, 0.0
      %v4542 = vmax.f32 %v4338, 0.0
      %v4543 = vmax.f32 %v4449, 0.0
      %v4544 = vmax.f32 %v4451, 0.0
      %v4545 = vmax.f32 %v4116, 0.0
      %v4546 = vmax.f32 %v4118, 0.0
      %v4547 = vmax.f32 %v4229, 0.0
      %v4548 = vmax.f32 %v4231, 0.0
      %v4549 = vmax.f32 %v4342, 0.0
      %v4550 = vmax.f32 %v4344, 0.0
      %v4551 = vmax.f32 %v4455, 0.0
      %v4552 = vmax.f32 %v4457, 0.0
      %v4553 = vmax.f32 %v4120, 0.0
      %v4554 = vmax.f32 %v4122, 0.0
      %v4555 = vmax.f32 %v4233, 0.0
      %v4556 = vmax.f32 %v4235, 0.0
      %v4557 = vmax.f32 %v4346, 0.0
      %v4558 = vmax.f32 %v4348, 0.0
      %v4559 = vmax.f32 %v4459, 0.0
      %v4560 = vmax.f32 %v4461, 0.0
      %v4561 = vmax.f32 %v4126, 0.0
      %v4562 = vmax.f32 %v4128, 0.0
      %v4563 = vmax.f32 %v4239, 0.0
      %v4564 = vmax.f32 %v4241, 0.0
      %v4565 = vmax.f32 %v4352, 0.0
      %v4566 = vmax.f32 %v4354, 0.0
      %v4567 = vmax.f32 %v4465, 0.0
      %v4568 = vmax.f32 %v4467, 0.0
      %v4569 = vmax.f32 %v4130, 0.0
      %v4570 = vmax.f32 %v4132, 0.0
      %v4571 = vmax.f32 %v4243, 0.0
      %v4572 = vmax.f32 %v4245, 0.0
      %v4573 = vmax.f32 %v4356, 0.0
      %v4574 = vmax.f32 %v4358, 0.0
      %v4575 = vmax.f32 %v4469, 0.0
      %v4576 = vmax.f32 %v4471, 0.0
      %v4577 = vmax.f32 %v4136, 0.0
      %v4578 = vmax.f32 %v4138, 0.0
      %v4579 = vmax.f32 %v4249, 0.0
      %v4580 = vmax.f32 %v4251, 0.0
      %v4581 = vmax.f32 %v4362, 0.0
      %v4582 = vmax.f32 %v4364, 0.0
      %v4583 = vmax.f32 %v4475, 0.0
      %v4584 = vmax.f32 %v4477, 0.0
      %v4585 = vmax.f32 %v4140, 0.0
      %v4586 = vmax.f32 %v4142, 0.0
      %v4587 = vmax.f32 %v4253, 0.0
      %v4588 = vmax.f32 %v4255, 0.0
      %v4589 = vmax.f32 %v4366, 0.0
      %v4590 = vmax.f32 %v4368, 0.0
      %v4591 = vmax.f32 %v4479, 0.0
      %v4592 = vmax.f32 %v4481, 0.0
      %v4593 = vmax.f32 %v4146, 0.0
      %v4594 = vmax.f32 %v4148, 0.0
      %v4595 = vmax.f32 %v4259, 0.0
      %v4596 = vmax.f32 %v4261, 0.0
      %v4597 = vmax.f32 %v4372, 0.0
      %v4598 = vmax.f32 %v4374, 0.0
      %v4599 = vmax.f32 %v4485, 0.0
      %v4600 = vmax.f32 %v4487, 0.0
      %v4601 = vmax.f32 %v4150, 0.0
      %v4602 = vmax.f32 %v4152, 0.0
      %v4603 = vmax.f32 %v4263, 0.0
      %v4604 = vmax.f32 %v4265, 0.0
      %v4605 = vmax.f32 %v4376, 0.0
      %v4606 = vmax.f32 %v4378, 0.0
      %v4607 = vmax.f32 %v4489, 0.0
      %v4608 = vmax.f32 %v4491, 0.0
      %v4609 = vmax.f32 %v4156, 0.0
      %v4610 = vmax.f32 %v4158, 0.0
      %v4611 = vmax.f32 %v4269, 0.0
      %v4612 = vmax.f32 %v4271, 0.0
      %v4613 = vmax.f32 %v4382, 0.0
      %v4614 = vmax.f32 %v4384, 0.0
      %v4615 = vmax.f32 %v4495, 0.0
      %v4616 = vmax.f32 %v4497, 0.0
      %v4617 = vmax.f32 %v4160, 0.0
      %v4618 = vmax.f32 %v4162, 0.0
      %v4619 = vmax.f32 %v4273, 0.0
      %v4620 = vmax.f32 %v4275, 0.0
      %v4621 = vmax.f32 %v4386, 0.0
      %v4622 = vmax.f32 %v4388, 0.0
      %v4623 = vmax.f32 %v4499, 0.0
      %v4624 = vmax.f32 %v4501, 0.0
      %v4625 = vmax.f32 %v4166, 0.0
      %v4626 = vmax.f32 %v4168, 0.0
      %v4627 = vmax.f32 %v4279, 0.0
      %v4628 = vmax.f32 %v4281, 0.0
      %v4629 = vmax.f32 %v4392, 0.0
      %v4630 = vmax.f32 %v4394, 0.0
      %v4631 = vmax.f32 %v4505, 0.0
      %v4632 = vmax.f32 %v4507, 0.0
      %v4633 = vmax.f32 %v4170, 0.0
      %v4634 = vmax.f32 %v4172, 0.0
      %v4635 = vmax.f32 %v4283, 0.0
      %v4636 = vmax.f32 %v4285, 0.0
      %v4637 = vmax.f32 %v4396, 0.0
      %v4638 = vmax.f32 %v4398, 0.0
      %v4639 = vmax.f32 %v4509, 0.0
      %v4640 = vmax.f32 %v4511, 0.0
      %v4641 = vpack.c.bf16 %v4521, %v4513
      %v4642 = vpack.c.bf16 %v4522, %v4514
      %v4643 = vpack.c.bf16 %v4523, %v4515
      %v4644 = vpack.c.bf16 %v4524, %v4516
      %v4645 = vpack.c.bf16 %v4525, %v4517
      %v4646 = vpack.c.bf16 %v4526, %v4518
      %v4647 = vpack.c.bf16 %v4527, %v4519
      %v4648 = vpack.c.bf16 %v4528, %v4520
      %v4649 = vpack.c.bf16 %v4537, %v4529
      %v4650 = vpack.c.bf16 %v4538, %v4530
      %v4651 = vpack.c.bf16 %v4539, %v4531
      %v4652 = vpack.c.bf16 %v4540, %v4532
      %v4653 = vpack.c.bf16 %v4541, %v4533
      %v4654 = vpack.c.bf16 %v4542, %v4534
      %v4655 = vpack.c.bf16 %v4543, %v4535
      %v4656 = vpack.c.bf16 %v4544, %v4536
      %v4657 = vpack.c.bf16 %v4553, %v4545
      %v4658 = vpack.c.bf16 %v4554, %v4546
      %v4659 = vpack.c.bf16 %v4555, %v4547
      %v4660 = vpack.c.bf16 %v4556, %v4548
      %v4661 = vpack.c.bf16 %v4557, %v4549
      %v4662 = vpack.c.bf16 %v4558, %v4550
      %v4663 = vpack.c.bf16 %v4559, %v4551
      %v4664 = vpack.c.bf16 %v4560, %v4552
      %v4665 = vpack.c.bf16 %v4569, %v4561
      %v4666 = vpack.c.bf16 %v4570, %v4562
      %v4667 = vpack.c.bf16 %v4571, %v4563
      %v4668 = vpack.c.bf16 %v4572, %v4564
      %v4669 = vpack.c.bf16 %v4573, %v4565
      %v4670 = vpack.c.bf16 %v4574, %v4566
      %v4671 = vpack.c.bf16 %v4575, %v4567
      %v4672 = vpack.c.bf16 %v4576, %v4568
      %v4673 = vpack.c.bf16 %v4585, %v4577
      %v4674 = vpack.c.bf16 %v4586, %v4578
      %v4675 = vpack.c.bf16 %v4587, %v4579
      %v4676 = vpack.c.bf16 %v4588, %v4580
      %v4677 = vpack.c.bf16 %v4589, %v4581
      %v4678 = vpack.c.bf16 %v4590, %v4582
      %v4679 = vpack.c.bf16 %v4591, %v4583
      %v4680 = vpack.c.bf16 %v4592, %v4584
      %v4681 = vpack.c.bf16 %v4601, %v4593
      %v4682 = vpack.c.bf16 %v4602, %v4594
      %v4683 = vpack.c.bf16 %v4603, %v4595
      %v4684 = vpack.c.bf16 %v4604, %v4596
      %v4685 = vpack.c.bf16 %v4605, %v4597
      %v4686 = vpack.c.bf16 %v4606, %v4598
      %v4687 = vpack.c.bf16 %v4607, %v4599
      %v4688 = vpack.c.bf16 %v4608, %v4600
      %v4689 = vpack.c.bf16 %v4617, %v4609
      %v4690 = vpack.c.bf16 %v4618, %v4610
      %v4691 = vpack.c.bf16 %v4619, %v4611
      %v4692 = vpack.c.bf16 %v4620, %v4612
      %v4693 = vpack.c.bf16 %v4621, %v4613
      %v4694 = vpack.c.bf16 %v4622, %v4614
      %v4695 = vpack.c.bf16 %v4623, %v4615
      %v4696 = vpack.c.bf16 %v4624, %v4616
      %v4697 = vpack.c.bf16 %v4633, %v4625
      %v4698 = vpack.c.bf16 %v4634, %v4626
      %v4699 = vpack.c.bf16 %v4635, %v4627
      %v4700 = vpack.c.bf16 %v4636, %v4628
      %v4701 = vpack.c.bf16 %v4637, %v4629
      %v4702 = vpack.c.bf16 %v4638, %v4630
      %v4703 = vpack.c.bf16 %v4639, %v4631
      %v4704 = vpack.c.bf16 %v4640, %v4632
      %s4705 = scalar_lea.vmem %s3, 1024
      %v4706 = vld [vmem:[%s4705] sm:$0xf]
      %v4707 = vld [vmem:[%s4705 + $0x4] sm:$0xf]
      %v4708 = vld [vmem:[%s4705 + $0x8] sm:$0xf]
      %v4709 = vld [vmem:[%s4705 + $0xc] sm:$0xf]
      %v4710 = vld [vmem:[%s4705 + $0x10] sm:$0xf]
      %v4711 = vld [vmem:[%s4705 + $0x14] sm:$0xf]
      %v4712 = vld [vmem:[%s4705 + $0x18] sm:$0xf]
      %v4713 = vld [vmem:[%s4705 + $0x1c] sm:$0xf]
      %v4714 = vld [vmem:[%s4705 + $0x20] sm:$0xf]
      %v4715 = vld [vmem:[%s4705 + $0x24] sm:$0xf]
      %v4716 = vld [vmem:[%s4705 + $0x28] sm:$0xf]
      %v4717 = vld [vmem:[%s4705 + $0x2c] sm:$0xf]
      %v4718 = vld [vmem:[%s4705 + $0x30] sm:$0xf]
      %v4719 = vld [vmem:[%s4705 + $0x34] sm:$0xf]
      %v4720 = vld [vmem:[%s4705 + $0x38] sm:$0xf]
      %v4721 = vld [vmem:[%s4705 + $0x3c] sm:$0xf]
      %v4722 = vld [vmem:[%s4705 + $0x40] sm:$0xf]
      %v4723 = vld [vmem:[%s4705 + $0x44] sm:$0xf]
      %v4724 = vld [vmem:[%s4705 + $0x48] sm:$0xf]
      %v4725 = vld [vmem:[%s4705 + $0x4c] sm:$0xf]
      %v4726 = vld [vmem:[%s4705 + $0x50] sm:$0xf]
      %v4727 = vld [vmem:[%s4705 + $0x54] sm:$0xf]
      %v4728 = vld [vmem:[%s4705 + $0x58] sm:$0xf]
      %v4729 = vld [vmem:[%s4705 + $0x5c] sm:$0xf]
      %v4730 = vld [vmem:[%s4705 + $0x60] sm:$0xf]
      %v4731 = vld [vmem:[%s4705 + $0x64] sm:$0xf]
      %v4732 = vld [vmem:[%s4705 + $0x68] sm:$0xf]
      %v4733 = vld [vmem:[%s4705 + $0x6c] sm:$0xf]
      %v4734 = vld [vmem:[%s4705 + $0x70] sm:$0xf]
      %v4735 = vld [vmem:[%s4705 + $0x74] sm:$0xf]
      %v4736 = vld [vmem:[%s4705 + $0x78] sm:$0xf]
      %v4737 = vld [vmem:[%s4705 + $0x7c] sm:$0xf]
      %v4738 = vld [vmem:[%s4705 + $0x80] sm:$0xf]
      %v4739 = vld [vmem:[%s4705 + $0x84] sm:$0xf]
      %v4740 = vld [vmem:[%s4705 + $0x88] sm:$0xf]
      %v4741 = vld [vmem:[%s4705 + $0x8c] sm:$0xf]
      %v4742 = vld [vmem:[%s4705 + $0x90] sm:$0xf]
      %v4743 = vld [vmem:[%s4705 + $0x94] sm:$0xf]
      %v4744 = vld [vmem:[%s4705 + $0x98] sm:$0xf]
      %v4745 = vld [vmem:[%s4705 + $0x9c] sm:$0xf]
      %v4746 = vld [vmem:[%s4705 + $0xa0] sm:$0xf]
      %v4747 = vld [vmem:[%s4705 + $0xa4] sm:$0xf]
      %v4748 = vld [vmem:[%s4705 + $0xa8] sm:$0xf]
      %v4749 = vld [vmem:[%s4705 + $0xac] sm:$0xf]
      %v4750 = vld [vmem:[%s4705 + $0xb0] sm:$0xf]
      %v4751 = vld [vmem:[%s4705 + $0xb4] sm:$0xf]
      %v4752 = vld [vmem:[%s4705 + $0xb8] sm:$0xf]
      %v4753 = vld [vmem:[%s4705 + $0xbc] sm:$0xf]
      %v4754 = vld [vmem:[%s4705 + $0xc0] sm:$0xf]
      %v4755 = vld [vmem:[%s4705 + $0xc4] sm:$0xf]
      %v4756 = vld [vmem:[%s4705 + $0xc8] sm:$0xf]
      %v4757 = vld [vmem:[%s4705 + $0xcc] sm:$0xf]
      %v4758 = vld [vmem:[%s4705 + $0xd0] sm:$0xf]
      %v4759 = vld [vmem:[%s4705 + $0xd4] sm:$0xf]
      %v4760 = vld [vmem:[%s4705 + $0xd8] sm:$0xf]
      %v4761 = vld [vmem:[%s4705 + $0xdc] sm:$0xf]
      %v4762 = vld [vmem:[%s4705 + $0xe0] sm:$0xf]
      %v4763 = vld [vmem:[%s4705 + $0xe4] sm:$0xf]
      %v4764 = vld [vmem:[%s4705 + $0xe8] sm:$0xf]
      %v4765 = vld [vmem:[%s4705 + $0xec] sm:$0xf]
      %v4766 = vld [vmem:[%s4705 + $0xf0] sm:$0xf]
      %v4767 = vld [vmem:[%s4705 + $0xf4] sm:$0xf]
      %v4768 = vld [vmem:[%s4705 + $0xf8] sm:$0xf]
      %v4769 = vld [vmem:[%s4705 + $0xfc] sm:$0xf]
      %v4770 = vld [vmem:[%s4705 + $0x100] sm:$0xf]
      %v4771 = vld [vmem:[%s4705 + $0x104] sm:$0xf]
      %v4772 = vld [vmem:[%s4705 + $0x108] sm:$0xf]
      %v4773 = vld [vmem:[%s4705 + $0x10c] sm:$0xf]
      %v4774 = vld [vmem:[%s4705 + $0x110] sm:$0xf]
      %v4775 = vld [vmem:[%s4705 + $0x114] sm:$0xf]
      %v4776 = vld [vmem:[%s4705 + $0x118] sm:$0xf]
      %v4777 = vld [vmem:[%s4705 + $0x11c] sm:$0xf]
      %v4778 = vld [vmem:[%s4705 + $0x120] sm:$0xf]
      %v4779 = vld [vmem:[%s4705 + $0x124] sm:$0xf]
      %v4780 = vld [vmem:[%s4705 + $0x128] sm:$0xf]
      %v4781 = vld [vmem:[%s4705 + $0x12c] sm:$0xf]
      %v4782 = vld [vmem:[%s4705 + $0x130] sm:$0xf]
      %v4783 = vld [vmem:[%s4705 + $0x134] sm:$0xf]
      %v4784 = vld [vmem:[%s4705 + $0x138] sm:$0xf]
      %v4785 = vld [vmem:[%s4705 + $0x13c] sm:$0xf]
      %v4786 = vld [vmem:[%s4705 + $0x140] sm:$0xf]
      %v4787 = vld [vmem:[%s4705 + $0x144] sm:$0xf]
      %v4788 = vld [vmem:[%s4705 + $0x148] sm:$0xf]
      %v4789 = vld [vmem:[%s4705 + $0x14c] sm:$0xf]
      %v4790 = vld [vmem:[%s4705 + $0x150] sm:$0xf]
      %v4791 = vld [vmem:[%s4705 + $0x154] sm:$0xf]
      %v4792 = vld [vmem:[%s4705 + $0x158] sm:$0xf]
      %v4793 = vld [vmem:[%s4705 + $0x15c] sm:$0xf]
      %v4794 = vld [vmem:[%s4705 + $0x160] sm:$0xf]
      %v4795 = vld [vmem:[%s4705 + $0x164] sm:$0xf]
      %v4796 = vld [vmem:[%s4705 + $0x168] sm:$0xf]
      %v4797 = vld [vmem:[%s4705 + $0x16c] sm:$0xf]
      %v4798 = vld [vmem:[%s4705 + $0x170] sm:$0xf]
      %v4799 = vld [vmem:[%s4705 + $0x174] sm:$0xf]
      %v4800 = vld [vmem:[%s4705 + $0x178] sm:$0xf]
      %v4801 = vld [vmem:[%s4705 + $0x17c] sm:$0xf]
      %v4802 = vld [vmem:[%s4705 + $0x180] sm:$0xf]
      %v4803 = vld [vmem:[%s4705 + $0x184] sm:$0xf]
      %v4804 = vld [vmem:[%s4705 + $0x188] sm:$0xf]
      %v4805 = vld [vmem:[%s4705 + $0x18c] sm:$0xf]
      %v4806 = vld [vmem:[%s4705 + $0x190] sm:$0xf]
      %v4807 = vld [vmem:[%s4705 + $0x194] sm:$0xf]
      %v4808 = vld [vmem:[%s4705 + $0x198] sm:$0xf]
      %v4809 = vld [vmem:[%s4705 + $0x19c] sm:$0xf]
      %v4810 = vld [vmem:[%s4705 + $0x1a0] sm:$0xf]
      %v4811 = vld [vmem:[%s4705 + $0x1a4] sm:$0xf]
      %v4812 = vld [vmem:[%s4705 + $0x1a8] sm:$0xf]
      %v4813 = vld [vmem:[%s4705 + $0x1ac] sm:$0xf]
      %v4814 = vld [vmem:[%s4705 + $0x1b0] sm:$0xf]
      %v4815 = vld [vmem:[%s4705 + $0x1b4] sm:$0xf]
      %v4816 = vld [vmem:[%s4705 + $0x1b8] sm:$0xf]
      %v4817 = vld [vmem:[%s4705 + $0x1bc] sm:$0xf]
      %v4818 = vld [vmem:[%s4705 + $0x1c0] sm:$0xf]
      %v4819 = vld [vmem:[%s4705 + $0x1c4] sm:$0xf]
      %v4820 = vld [vmem:[%s4705 + $0x1c8] sm:$0xf]
      %v4821 = vld [vmem:[%s4705 + $0x1cc] sm:$0xf]
      %v4822 = vld [vmem:[%s4705 + $0x1d0] sm:$0xf]
      %v4823 = vld [vmem:[%s4705 + $0x1d4] sm:$0xf]
      %v4824 = vld [vmem:[%s4705 + $0x1d8] sm:$0xf]
      %v4825 = vld [vmem:[%s4705 + $0x1dc] sm:$0xf]
      %v4826 = vld [vmem:[%s4705 + $0x1e0] sm:$0xf]
      %v4827 = vld [vmem:[%s4705 + $0x1e4] sm:$0xf]
      %v4828 = vld [vmem:[%s4705 + $0x1e8] sm:$0xf]
      %v4829 = vld [vmem:[%s4705 + $0x1ec] sm:$0xf]
      %v4830 = vld [vmem:[%s4705 + $0x1f0] sm:$0xf]
      %v4831 = vld [vmem:[%s4705 + $0x1f4] sm:$0xf]
      %v4832 = vld [vmem:[%s4705 + $0x1f8] sm:$0xf]
      %v4833 = vld [vmem:[%s4705 + $0x1fc] sm:$0xf]
      %s4834 = scalar_lea.vmem %s4, 2
      %v4835 = vld [vmem:[%s4834] sm:$0x1]
      %v4837 = vlaneseq
      %v4838 = vshrl.u32 %v4837, 7
      %v4839 = vsub.s32 0, %v4838
      %v4840 = vrot.slane %v4835, %v4839
      %v4970 = vunpack.c.l.b16 %v4706
      %v4971 = vunpack.c.l.b16 %v4707
      %v4972 = vunpack.c.l.b16 %v4708
      %v4973 = vunpack.c.l.b16 %v4709
      %v4974 = vunpack.c.l.b16 %v4710
      %v4975 = vunpack.c.l.b16 %v4711
      %v4976 = vunpack.c.l.b16 %v4712
      %v4977 = vunpack.c.l.b16 %v4713
      %v4978 = vunpack.c.l.b16 %v4714
      %v4979 = vunpack.c.l.b16 %v4715
      %v4980 = vunpack.c.l.b16 %v4716
      %v4981 = vunpack.c.l.b16 %v4717
      %v4982 = vunpack.c.l.b16 %v4718
      %v4983 = vunpack.c.l.b16 %v4719
      %v4984 = vunpack.c.l.b16 %v4720
      %v4985 = vunpack.c.l.b16 %v4721
      %v4986 = vunpack.c.l.b16 %v4722
      %v4987 = vunpack.c.l.b16 %v4723
      %v4988 = vunpack.c.l.b16 %v4724
      %v4989 = vunpack.c.l.b16 %v4725
      %v4990 = vunpack.c.l.b16 %v4726
      %v4991 = vunpack.c.l.b16 %v4727
      %v4992 = vunpack.c.l.b16 %v4728
      %v4993 = vunpack.c.l.b16 %v4729
      %v4994 = vunpack.c.l.b16 %v4730
      %v4995 = vunpack.c.l.b16 %v4731
      %v4996 = vunpack.c.l.b16 %v4732
      %v4997 = vunpack.c.l.b16 %v4733
      %v4998 = vunpack.c.l.b16 %v4734
      %v4999 = vunpack.c.l.b16 %v4735
      %v5000 = vunpack.c.l.b16 %v4736
      %v5001 = vunpack.c.l.b16 %v4737
      %v5002 = vunpack.c.l.b16 %v4738
      %v5003 = vunpack.c.l.b16 %v4739
      %v5004 = vunpack.c.l.b16 %v4740
      %v5005 = vunpack.c.l.b16 %v4741
      %v5006 = vunpack.c.l.b16 %v4742
      %v5007 = vunpack.c.l.b16 %v4743
      %v5008 = vunpack.c.l.b16 %v4744
      %v5009 = vunpack.c.l.b16 %v4745
      %v5010 = vunpack.c.l.b16 %v4746
      %v5011 = vunpack.c.l.b16 %v4747
      %v5012 = vunpack.c.l.b16 %v4748
      %v5013 = vunpack.c.l.b16 %v4749
      %v5014 = vunpack.c.l.b16 %v4750
      %v5015 = vunpack.c.l.b16 %v4751
      %v5016 = vunpack.c.l.b16 %v4752
      %v5017 = vunpack.c.l.b16 %v4753
      %v5018 = vunpack.c.l.b16 %v4754
      %v5019 = vunpack.c.l.b16 %v4755
      %v5020 = vunpack.c.l.b16 %v4756
      %v5021 = vunpack.c.l.b16 %v4757
      %v5022 = vunpack.c.l.b16 %v4758
      %v5023 = vunpack.c.l.b16 %v4759
      %v5024 = vunpack.c.l.b16 %v4760
      %v5025 = vunpack.c.l.b16 %v4761
      %v5026 = vunpack.c.l.b16 %v4762
      %v5027 = vunpack.c.l.b16 %v4763
      %v5028 = vunpack.c.l.b16 %v4764
      %v5029 = vunpack.c.l.b16 %v4765
      %v5030 = vunpack.c.l.b16 %v4766
      %v5031 = vunpack.c.l.b16 %v4767
      %v5032 = vunpack.c.l.b16 %v4768
      %v5033 = vunpack.c.l.b16 %v4769
      %v5034 = vunpack.c.l.b16 %v4770
      %v5035 = vunpack.c.l.b16 %v4771
      %v5036 = vunpack.c.l.b16 %v4772
      %v5037 = vunpack.c.l.b16 %v4773
      %v5038 = vunpack.c.l.b16 %v4774
      %v5039 = vunpack.c.l.b16 %v4775
      %v5040 = vunpack.c.l.b16 %v4776
      %v5041 = vunpack.c.l.b16 %v4777
      %v5042 = vunpack.c.l.b16 %v4778
      %v5043 = vunpack.c.l.b16 %v4779
      %v5044 = vunpack.c.l.b16 %v4780
      %v5045 = vunpack.c.l.b16 %v4781
      %v5046 = vunpack.c.l.b16 %v4782
      %v5047 = vunpack.c.l.b16 %v4783
      %v5048 = vunpack.c.l.b16 %v4784
      %v5049 = vunpack.c.l.b16 %v4785
      %v5050 = vunpack.c.l.b16 %v4786
      %v5051 = vunpack.c.l.b16 %v4787
      %v5052 = vunpack.c.l.b16 %v4788
      %v5053 = vunpack.c.l.b16 %v4789
      %v5054 = vunpack.c.l.b16 %v4790
      %v5055 = vunpack.c.l.b16 %v4791
      %v5056 = vunpack.c.l.b16 %v4792
      %v5057 = vunpack.c.l.b16 %v4793
      %v5058 = vunpack.c.l.b16 %v4794
      %v5059 = vunpack.c.l.b16 %v4795
      %v5060 = vunpack.c.l.b16 %v4796
      %v5061 = vunpack.c.l.b16 %v4797
      %v5062 = vunpack.c.l.b16 %v4798
      %v5063 = vunpack.c.l.b16 %v4799
      %v5064 = vunpack.c.l.b16 %v4800
      %v5065 = vunpack.c.l.b16 %v4801
      %v5066 = vunpack.c.l.b16 %v4802
      %v5067 = vunpack.c.l.b16 %v4803
      %v5068 = vunpack.c.l.b16 %v4804
      %v5069 = vunpack.c.l.b16 %v4805
      %v5070 = vunpack.c.l.b16 %v4806
      %v5071 = vunpack.c.l.b16 %v4807
      %v5072 = vunpack.c.l.b16 %v4808
      %v5073 = vunpack.c.l.b16 %v4809
      %v5074 = vunpack.c.l.b16 %v4810
      %v5075 = vunpack.c.l.b16 %v4811
      %v5076 = vunpack.c.l.b16 %v4812
      %v5077 = vunpack.c.l.b16 %v4813
      %v5078 = vunpack.c.l.b16 %v4814
      %v5079 = vunpack.c.l.b16 %v4815
      %v5080 = vunpack.c.l.b16 %v4816
      %v5081 = vunpack.c.l.b16 %v4817
      %v5082 = vunpack.c.l.b16 %v4818
      %v5083 = vunpack.c.l.b16 %v4819
      %v5084 = vunpack.c.l.b16 %v4820
      %v5085 = vunpack.c.l.b16 %v4821
      %v5086 = vunpack.c.l.b16 %v4822
      %v5087 = vunpack.c.l.b16 %v4823
      %v5088 = vunpack.c.l.b16 %v4824
      %v5089 = vunpack.c.l.b16 %v4825
      %v5090 = vunpack.c.l.b16 %v4826
      %v5091 = vunpack.c.l.b16 %v4827
      %v5092 = vunpack.c.l.b16 %v4828
      %v5093 = vunpack.c.l.b16 %v4829
      %v5094 = vunpack.c.l.b16 %v4830
      %v5095 = vunpack.c.l.b16 %v4831
      %v5096 = vunpack.c.l.b16 %v4832
      %v5097 = vunpack.c.l.b16 %v4833
      %v5098 = vpack.c.b16 %v4971, %v4970
      %v5099 = vpack.c.b16 %v4973, %v4972
      %v5100 = vpack.c.b16 %v4975, %v4974
      %v5101 = vpack.c.b16 %v4977, %v4976
      %v5102 = vpack.c.b16 %v4979, %v4978
      %v5103 = vpack.c.b16 %v4981, %v4980
      %v5104 = vpack.c.b16 %v4983, %v4982
      %v5105 = vpack.c.b16 %v4985, %v4984
      %v5106 = vpack.c.b16 %v4987, %v4986
      %v5107 = vpack.c.b16 %v4989, %v4988
      %v5108 = vpack.c.b16 %v4991, %v4990
      %v5109 = vpack.c.b16 %v4993, %v4992
      %v5110 = vpack.c.b16 %v4995, %v4994
      %v5111 = vpack.c.b16 %v4997, %v4996
      %v5112 = vpack.c.b16 %v4999, %v4998
      %v5113 = vpack.c.b16 %v5001, %v5000
      %v5114 = vpack.c.b16 %v5003, %v5002
      %v5115 = vpack.c.b16 %v5005, %v5004
      %v5116 = vpack.c.b16 %v5007, %v5006
      %v5117 = vpack.c.b16 %v5009, %v5008
      %v5118 = vpack.c.b16 %v5011, %v5010
      %v5119 = vpack.c.b16 %v5013, %v5012
      %v5120 = vpack.c.b16 %v5015, %v5014
      %v5121 = vpack.c.b16 %v5017, %v5016
      %v5122 = vpack.c.b16 %v5019, %v5018
      %v5123 = vpack.c.b16 %v5021, %v5020
      %v5124 = vpack.c.b16 %v5023, %v5022
      %v5125 = vpack.c.b16 %v5025, %v5024
      %v5126 = vpack.c.b16 %v5027, %v5026
      %v5127 = vpack.c.b16 %v5029, %v5028
      %v5128 = vpack.c.b16 %v5031, %v5030
      %v5129 = vpack.c.b16 %v5033, %v5032
      %v5130 = vpack.c.b16 %v5035, %v5034
      %v5131 = vpack.c.b16 %v5037, %v5036
      %v5132 = vpack.c.b16 %v5039, %v5038
      %v5133 = vpack.c.b16 %v5041, %v5040
      %v5134 = vpack.c.b16 %v5043, %v5042
      %v5135 = vpack.c.b16 %v5045, %v5044
      %v5136 = vpack.c.b16 %v5047, %v5046
      %v5137 = vpack.c.b16 %v5049, %v5048
      %v5138 = vpack.c.b16 %v5051, %v5050
      %v5139 = vpack.c.b16 %v5053, %v5052
      %v5140 = vpack.c.b16 %v5055, %v5054
      %v5141 = vpack.c.b16 %v5057, %v5056
      %v5142 = vpack.c.b16 %v5059, %v5058
      %v5143 = vpack.c.b16 %v5061, %v5060
      %v5144 = vpack.c.b16 %v5063, %v5062
      %v5145 = vpack.c.b16 %v5065, %v5064
      %v5146 = vpack.c.b16 %v5067, %v5066
      %v5147 = vpack.c.b16 %v5069, %v5068
      %v5148 = vpack.c.b16 %v5071, %v5070
      %v5149 = vpack.c.b16 %v5073, %v5072
      %v5150 = vpack.c.b16 %v5075, %v5074
      %v5151 = vpack.c.b16 %v5077, %v5076
      %v5152 = vpack.c.b16 %v5079, %v5078
      %v5153 = vpack.c.b16 %v5081, %v5080
      %v5154 = vpack.c.b16 %v5083, %v5082
      %v5155 = vpack.c.b16 %v5085, %v5084
      %v5156 = vpack.c.b16 %v5087, %v5086
      %v5157 = vpack.c.b16 %v5089, %v5088
      %v5158 = vpack.c.b16 %v5091, %v5090
      %v5159 = vpack.c.b16 %v5093, %v5092
      %v5160 = vpack.c.b16 %v5095, %v5094
      %v5161 = vpack.c.b16 %v5097, %v5096
      %5226 = vmatprep.subr.bf16.mxu0 0
      %5227 = vmatpush1.bf16.msra.mxu0 %v5098
      %5228 = vmatprep.subr.bf16.mxu0 0
      %5229 = vmatpush1.bf16.msra.mxu0 %v5099
      %5230 = vmatprep.subr.bf16.mxu0 0
      %5231 = vmatpush1.bf16.msra.mxu0 %v5100
      %5232 = vmatprep.subr.bf16.mxu0 0
      %5233 = vmatpush1.bf16.msra.mxu0 %v5101
      %5234 = vmatprep.subr.bf16.mxu0 0
      %5235 = vmatpush1.bf16.msra.mxu0 %v5102
      %5236 = vmatprep.subr.bf16.mxu0 0
      %5237 = vmatpush1.bf16.msra.mxu0 %v5103
      %5238 = vmatprep.subr.bf16.mxu0 0
      %5239 = vmatpush1.bf16.msra.mxu0 %v5104
      %5240 = vmatprep.subr.bf16.mxu0 0
      %5241 = vmatpush1.bf16.msra.mxu0 %v5105
      %5242 = vmatprep.subr.bf16.mxu0 0
      %5243 = vmatpush1.bf16.msra.mxu0 %v5106
      %5244 = vmatprep.subr.bf16.mxu0 0
      %5245 = vmatpush1.bf16.msra.mxu0 %v5107
      %5246 = vmatprep.subr.bf16.mxu0 0
      %5247 = vmatpush1.bf16.msra.mxu0 %v5108
      %5248 = vmatprep.subr.bf16.mxu0 0
      %5249 = vmatpush1.bf16.msra.mxu0 %v5109
      %5250 = vmatprep.subr.bf16.mxu0 0
      %5251 = vmatpush1.bf16.msra.mxu0 %v5110
      %5252 = vmatprep.subr.bf16.mxu0 0
      %5253 = vmatpush1.bf16.msra.mxu0 %v5111
      %5254 = vmatprep.subr.bf16.mxu0 0
      %5255 = vmatpush1.bf16.msra.mxu0 %v5112
      %5256 = vmatprep.subr.bf16.mxu0 0
      %5257 = vmatpush1.bf16.msra.mxu0 %v5113
      %5258 = vmatprep.mubr.bf16.mxu0 %v4642
      %5259 = vmatmul.mubr.bf16.gmra.mrb[0].mxu0 %v4641
      %v5260 = vpop.f32.mrb[0].mxu0
      %v5261 = vadd.f32 %v4840, %v5260
      %v5262 = vpop.f32.mrb[0].mxu0
      %v5263 = vpop.f32.mrb[0].mxu0
      %v5264 = vadd.f32 %v4840, %v5263
      %v5265 = vpop.f32.mrb[0].mxu0
      %5266 = vmatprep.mubr.bf16.mxu0 %v4650
      %5267 = vmatmul.mubr.bf16.gmra.mrb[0].mxu0 %v4649
      %v5268 = vpop.f32.mrb[0].mxu0
      %v5269 = vadd.f32 %v4840, %v5268
      %v5270 = vpop.f32.mrb[0].mxu0
      %v5271 = vpop.f32.mrb[0].mxu0
      %v5272 = vadd.f32 %v4840, %v5271
      %v5273 = vpop.f32.mrb[0].mxu0
      %5274 = vmatprep.mubr.bf16.mxu0 %v4658
      %5275 = vmatmul.mubr.bf16.gmra.mrb[0].mxu0 %v4657
      %v5276 = vpop.f32.mrb[0].mxu0
      %v5277 = vadd.f32 %v4840, %v5276
      %v5278 = vpop.f32.mrb[0].mxu0
      %v5279 = vpop.f32.mrb[0].mxu0
      %v5280 = vadd.f32 %v4840, %v5279
      %v5281 = vpop.f32.mrb[0].mxu0
      %5282 = vmatprep.mubr.bf16.mxu0 %v4666
      %5283 = vmatmul.mubr.bf16.gmra.mrb[0].mxu0 %v4665
      %v5284 = vpop.f32.mrb[0].mxu0
      %v5285 = vadd.f32 %v4840, %v5284
      %v5286 = vpop.f32.mrb[0].mxu0
      %v5287 = vpop.f32.mrb[0].mxu0
      %v5288 = vadd.f32 %v4840, %v5287
      %v5289 = vpop.f32.mrb[0].mxu0
      %5290 = vmatprep.mubr.bf16.mxu0 %v4674
      %5291 = vmatmul.mubr.bf16.gmra.mrb[0].mxu0 %v4673
      %v5292 = vpop.f32.mrb[0].mxu0
      %v5293 = vadd.f32 %v4840, %v5292
      %v5294 = vpop.f32.mrb[0].mxu0
      %v5295 = vpop.f32.mrb[0].mxu0
      %v5296 = vadd.f32 %v4840, %v5295
      %v5297 = vpop.f32.mrb[0].mxu0
      %5298 = vmatprep.mubr.bf16.mxu0 %v4682
      %5299 = vmatmul.mubr.bf16.gmra.mrb[0].mxu0 %v4681
      %v5300 = vpop.f32.mrb[0].mxu0
      %v5301 = vadd.f32 %v4840, %v5300
      %v5302 = vpop.f32.mrb[0].mxu0
      %v5303 = vpop.f32.mrb[0].mxu0
      %v5304 = vadd.f32 %v4840, %v5303
      %v5305 = vpop.f32.mrb[0].mxu0
      %5306 = vmatprep.mubr.bf16.mxu0 %v4690
      %5307 = vmatmul.mubr.bf16.gmra.mrb[0].mxu0 %v4689
      %v5308 = vpop.f32.mrb[0].mxu0
      %v5309 = vadd.f32 %v4840, %v5308
      %v5310 = vpop.f32.mrb[0].mxu0
      %v5311 = vpop.f32.mrb[0].mxu0
      %v5312 = vadd.f32 %v4840, %v5311
      %v5313 = vpop.f32.mrb[0].mxu0
      %5314 = vmatprep.mubr.bf16.mxu0 %v4698
      %5315 = vmatmul.mubr.bf16.gmra.mrb[0].mxu0 %v4697
      %v5316 = vpop.f32.mrb[0].mxu0
      %v5317 = vadd.f32 %v4840, %v5316
      %v5318 = vpop.f32.mrb[0].mxu0
      %v5319 = vpop.f32.mrb[0].mxu0
      %v5320 = vadd.f32 %v4840, %v5319
      %v5321 = vpop.f32.mrb[0].mxu0
      %5322 = vdwg.mxu0
      %5323 = vmatprep.subr.bf16.mxu0 0
      %5324 = vmatpush1.bf16.msra.mxu0 %v5114
      %5325 = vmatprep.subr.bf16.mxu0 0
      %5326 = vmatpush1.bf16.msra.mxu0 %v5115
      %5327 = vmatprep.subr.bf16.mxu0 0
      %5328 = vmatpush1.bf16.msra.mxu0 %v5116
      %5329 = vmatprep.subr.bf16.mxu0 0
      %5330 = vmatpush1.bf16.msra.mxu0 %v5117
      %5331 = vmatprep.subr.bf16.mxu0 0
      %5332 = vmatpush1.bf16.msra.mxu0 %v5118
      %5333 = vmatprep.subr.bf16.mxu0 0
      %5334 = vmatpush1.bf16.msra.mxu0 %v5119
      %5335 = vmatprep.subr.bf16.mxu0 0
      %5336 = vmatpush1.bf16.msra.mxu0 %v5120
      %5337 = vmatprep.subr.bf16.mxu0 0
      %5338 = vmatpush1.bf16.msra.mxu0 %v5121
      %5339 = vmatprep.subr.bf16.mxu0 0
      %5340 = vmatpush1.bf16.msra.mxu0 %v5122
      %5341 = vmatprep.subr.bf16.mxu0 0
      %5342 = vmatpush1.bf16.msra.mxu0 %v5123
      %5343 = vmatprep.subr.bf16.mxu0 0
      %5344 = vmatpush1.bf16.msra.mxu0 %v5124
      %5345 = vmatprep.subr.bf16.mxu0 0
      %5346 = vmatpush1.bf16.msra.mxu0 %v5125
      %5347 = vmatprep.subr.bf16.mxu0 0
      %5348 = vmatpush1.bf16.msra.mxu0 %v5126
      %5349 = vmatprep.subr.bf16.mxu0 0
      %5350 = vmatpush1.bf16.msra.mxu0 %v5127
      %5351 = vmatprep.subr.bf16.mxu0 0
      %5352 = vmatpush1.bf16.msra.mxu0 %v5128
      %5353 = vmatprep.subr.bf16.mxu0 0
      %5354 = vmatpush1.bf16.msra.mxu0 %v5129
      %5355 = vmatprep.mubr.bf16.mxu0 %v4644
      %5356 = vmatmul.mubr.bf16.gmra.mrb[0].mxu0 %v4643
      %v5357 = vpop.f32.mrb[0].mxu0
      %v5358 = vadd.f32 %v5261, %v5357
      %v5359 = vpop.f32.mrb[0].mxu0
      %v5360 = vpop.f32.mrb[0].mxu0
      %v5361 = vadd.f32 %v5264, %v5360
      %v5362 = vpop.f32.mrb[0].mxu0
      %5363 = vmatprep.mubr.bf16.mxu0 %v4652
      %5364 = vmatmul.mubr.bf16.gmra.mrb[0].mxu0 %v4651
      %v5365 = vpop.f32.mrb[0].mxu0
      %v5366 = vadd.f32 %v5269, %v5365
      %v5367 = vpop.f32.mrb[0].mxu0
      %v5368 = vpop.f32.mrb[0].mxu0
      %v5369 = vadd.f32 %v5272, %v5368
      %v5370 = vpop.f32.mrb[0].mxu0
      %5371 = vmatprep.mubr.bf16.mxu0 %v4660
      %5372 = vmatmul.mubr.bf16.gmra.mrb[0].mxu0 %v4659
      %v5373 = vpop.f32.mrb[0].mxu0
      %v5374 = vadd.f32 %v5277, %v5373
      %v5375 = vpop.f32.mrb[0].mxu0
      %v5376 = vpop.f32.mrb[0].mxu0
      %v5377 = vadd.f32 %v5280, %v5376
      %v5378 = vpop.f32.mrb[0].mxu0
      %5379 = vmatprep.mubr.bf16.mxu0 %v4668
      %5380 = vmatmul.mubr.bf16.gmra.mrb[0].mxu0 %v4667
      %v5381 = vpop.f32.mrb[0].mxu0
      %v5382 = vadd.f32 %v5285, %v5381
      %v5383 = vpop.f32.mrb[0].mxu0
      %v5384 = vpop.f32.mrb[0].mxu0
      %v5385 = vadd.f32 %v5288, %v5384
      %v5386 = vpop.f32.mrb[0].mxu0
      %5387 = vmatprep.mubr.bf16.mxu0 %v4676
      %5388 = vmatmul.mubr.bf16.gmra.mrb[0].mxu0 %v4675
      %v5389 = vpop.f32.mrb[0].mxu0
      %v5390 = vadd.f32 %v5293, %v5389
      %v5391 = vpop.f32.mrb[0].mxu0
      %v5392 = vpop.f32.mrb[0].mxu0
      %v5393 = vadd.f32 %v5296, %v5392
      %v5394 = vpop.f32.mrb[0].mxu0
      %5395 = vmatprep.mubr.bf16.mxu0 %v4684
      %5396 = vmatmul.mubr.bf16.gmra.mrb[0].mxu0 %v4683
      %v5397 = vpop.f32.mrb[0].mxu0
      %v5398 = vadd.f32 %v5301, %v5397
      %v5399 = vpop.f32.mrb[0].mxu0
      %v5400 = vpop.f32.mrb[0].mxu0
      %v5401 = vadd.f32 %v5304, %v5400
      %v5402 = vpop.f32.mrb[0].mxu0
      %5403 = vmatprep.mubr.bf16.mxu0 %v4692
      %5404 = vmatmul.mubr.bf16.gmra.mrb[0].mxu0 %v4691
      %v5405 = vpop.f32.mrb[0].mxu0
      %v5406 = vadd.f32 %v5309, %v5405
      %v5407 = vpop.f32.mrb[0].mxu0
      %v5408 = vpop.f32.mrb[0].mxu0
      %v5409 = vadd.f32 %v5312, %v5408
      %v5410 = vpop.f32.mrb[0].mxu0
      %5411 = vmatprep.mubr.bf16.mxu0 %v4700
      %5412 = vmatmul.mubr.bf16.gmra.mrb[0].mxu0 %v4699
      %v5413 = vpop.f32.mrb[0].mxu0
      %v5414 = vadd.f32 %v5317, %v5413
      %v5415 = vpop.f32.mrb[0].mxu0
      %v5416 = vpop.f32.mrb[0].mxu0
      %v5417 = vadd.f32 %v5320, %v5416
      %v5418 = vpop.f32.mrb[0].mxu0
      %5419 = vdwg.mxu0
      %5420 = vmatprep.subr.bf16.mxu0 0
      %5421 = vmatpush1.bf16.msra.mxu0 %v5130
      %5422 = vmatprep.subr.bf16.mxu0 0
      %5423 = vmatpush1.bf16.msra.mxu0 %v5131
      %5424 = vmatprep.subr.bf16.mxu0 0
      %5425 = vmatpush1.bf16.msra.mxu0 %v5132
      %5426 = vmatprep.subr.bf16.mxu0 0
      %5427 = vmatpush1.bf16.msra.mxu0 %v5133
      %5428 = vmatprep.subr.bf16.mxu0 0
      %5429 = vmatpush1.bf16.msra.mxu0 %v5134
      %5430 = vmatprep.subr.bf16.mxu0 0
      %5431 = vmatpush1.bf16.msra.mxu0 %v5135
      %5432 = vmatprep.subr.bf16.mxu0 0
      %5433 = vmatpush1.bf16.msra.mxu0 %v5136
      %5434 = vmatprep.subr.bf16.mxu0 0
      %5435 = vmatpush1.bf16.msra.mxu0 %v5137
      %5436 = vmatprep.subr.bf16.mxu0 0
      %5437 = vmatpush1.bf16.msra.mxu0 %v5138
      %5438 = vmatprep.subr.bf16.mxu0 0
      %5439 = vmatpush1.bf16.msra.mxu0 %v5139
      %5440 = vmatprep.subr.bf16.mxu0 0
      %5441 = vmatpush1.bf16.msra.mxu0 %v5140
      %5442 = vmatprep.subr.bf16.mxu0 0
      %5443 = vmatpush1.bf16.msra.mxu0 %v5141
      %5444 = vmatprep.subr.bf16.mxu0 0
      %5445 = vmatpush1.bf16.msra.mxu0 %v5142
      %5446 = vmatprep.subr.bf16.mxu0 0
      %5447 = vmatpush1.bf16.msra.mxu0 %v5143
      %5448 = vmatprep.subr.bf16.mxu0 0
      %5449 = vmatpush1.bf16.msra.mxu0 %v5144
      %5450 = vmatprep.subr.bf16.mxu0 0
      %5451 = vmatpush1.bf16.msra.mxu0 %v5145
      %5452 = vmatprep.mubr.bf16.mxu0 %v4646
      %5453 = vmatmul.mubr.bf16.gmra.mrb[0].mxu0 %v4645
      %v5454 = vpop.f32.mrb[0].mxu0
      %v5455 = vadd.f32 %v5358, %v5454
      %v5456 = vpop.f32.mrb[0].mxu0
      %v5457 = vpop.f32.mrb[0].mxu0
      %v5458 = vadd.f32 %v5361, %v5457
      %v5459 = vpop.f32.mrb[0].mxu0
      %5460 = vmatprep.mubr.bf16.mxu0 %v4654
      %5461 = vmatmul.mubr.bf16.gmra.mrb[0].mxu0 %v4653
      %v5462 = vpop.f32.mrb[0].mxu0
      %v5463 = vadd.f32 %v5366, %v5462
      %v5464 = vpop.f32.mrb[0].mxu0
      %v5465 = vpop.f32.mrb[0].mxu0
      %v5466 = vadd.f32 %v5369, %v5465
      %v5467 = vpop.f32.mrb[0].mxu0
      %5468 = vmatprep.mubr.bf16.mxu0 %v4662
      %5469 = vmatmul.mubr.bf16.gmra.mrb[0].mxu0 %v4661
      %v5470 = vpop.f32.mrb[0].mxu0
      %v5471 = vadd.f32 %v5374, %v5470
      %v5472 = vpop.f32.mrb[0].mxu0
      %v5473 = vpop.f32.mrb[0].mxu0
      %v5474 = vadd.f32 %v5377, %v5473
      %v5475 = vpop.f32.mrb[0].mxu0
      %5476 = vmatprep.mubr.bf16.mxu0 %v4670
      %5477 = vmatmul.mubr.bf16.gmra.mrb[0].mxu0 %v4669
      %v5478 = vpop.f32.mrb[0].mxu0
      %v5479 = vadd.f32 %v5382, %v5478
      %v5480 = vpop.f32.mrb[0].mxu0
      %v5481 = vpop.f32.mrb[0].mxu0
      %v5482 = vadd.f32 %v5385, %v5481
      %v5483 = vpop.f32.mrb[0].mxu0
      %5484 = vmatprep.mubr.bf16.mxu0 %v4678
      %5485 = vmatmul.mubr.bf16.gmra.mrb[0].mxu0 %v4677
      %v5486 = vpop.f32.mrb[0].mxu0
      %v5487 = vadd.f32 %v5390, %v5486
      %v5488 = vpop.f32.mrb[0].mxu0
      %v5489 = vpop.f32.mrb[0].mxu0
      %v5490 = vadd.f32 %v5393, %v5489
      %v5491 = vpop.f32.mrb[0].mxu0
      %5492 = vmatprep.mubr.bf16.mxu0 %v4686
      %5493 = vmatmul.mubr.bf16.gmra.mrb[0].mxu0 %v4685
      %v5494 = vpop.f32.mrb[0].mxu0
      %v5495 = vadd.f32 %v5398, %v5494
      %v5496 = vpop.f32.mrb[0].mxu0
      %v5497 = vpop.f32.mrb[0].mxu0
      %v5498 = vadd.f32 %v5401, %v5497
      %v5499 = vpop.f32.mrb[0].mxu0
      %5500 = vmatprep.mubr.bf16.mxu0 %v4694
      %5501 = vmatmul.mubr.bf16.gmra.mrb[0].mxu0 %v4693
      %v5502 = vpop.f32.mrb[0].mxu0
      %v5503 = vadd.f32 %v5406, %v5502
      %v5504 = vpop.f32.mrb[0].mxu0
      %v5505 = vpop.f32.mrb[0].mxu0
      %v5506 = vadd.f32 %v5409, %v5505
      %v5507 = vpop.f32.mrb[0].mxu0
      %5508 = vmatprep.mubr.bf16.mxu0 %v4702
      %5509 = vmatmul.mubr.bf16.gmra.mrb[0].mxu0 %v4701
      %v5510 = vpop.f32.mrb[0].mxu0
      %v5511 = vadd.f32 %v5414, %v5510
      %v5512 = vpop.f32.mrb[0].mxu0
      %v5513 = vpop.f32.mrb[0].mxu0
      %v5514 = vadd.f32 %v5417, %v5513
      %v5515 = vpop.f32.mrb[0].mxu0
      %5516 = vdwg.mxu0
      %5517 = vmatprep.subr.bf16.mxu0 0
      %5518 = vmatpush1.bf16.msra.mxu0 %v5146
      %5519 = vmatprep.subr.bf16.mxu0 0
      %5520 = vmatpush1.bf16.msra.mxu0 %v5147
      %5521 = vmatprep.subr.bf16.mxu0 0
      %5522 = vmatpush1.bf16.msra.mxu0 %v5148
      %5523 = vmatprep.subr.bf16.mxu0 0
      %5524 = vmatpush1.bf16.msra.mxu0 %v5149
      %5525 = vmatprep.subr.bf16.mxu0 0
      %5526 = vmatpush1.bf16.msra.mxu0 %v5150
      %5527 = vmatprep.subr.bf16.mxu0 0
      %5528 = vmatpush1.bf16.msra.mxu0 %v5151
      %5529 = vmatprep.subr.bf16.mxu0 0
      %5530 = vmatpush1.bf16.msra.mxu0 %v5152
      %5531 = vmatprep.subr.bf16.mxu0 0
      %5532 = vmatpush1.bf16.msra.mxu0 %v5153
      %5533 = vmatprep.subr.bf16.mxu0 0
      %5534 = vmatpush1.bf16.msra.mxu0 %v5154
      %5535 = vmatprep.subr.bf16.mxu0 0
      %5536 = vmatpush1.bf16.msra.mxu0 %v5155
      %5537 = vmatprep.subr.bf16.mxu0 0
      %5538 = vmatpush1.bf16.msra.mxu0 %v5156
      %5539 = vmatprep.subr.bf16.mxu0 0
      %5540 = vmatpush1.bf16.msra.mxu0 %v5157
      %5541 = vmatprep.subr.bf16.mxu0 0
      %5542 = vmatpush1.bf16.msra.mxu0 %v5158
      %5543 = vmatprep.subr.bf16.mxu0 0
      %5544 = vmatpush1.bf16.msra.mxu0 %v5159
      %5545 = vmatprep.subr.bf16.mxu0 0
      %5546 = vmatpush1.bf16.msra.mxu0 %v5160
      %5547 = vmatprep.subr.bf16.mxu0 0
      %5548 = vmatpush1.bf16.msra.mxu0 %v5161
      %5549 = vmatprep.mubr.bf16.mxu0 %v4648
      %5550 = vmatmul.mubr.bf16.gmra.mrb[0].mxu0 %v4647
      %v5551 = vpop.f32.mrb[0].mxu0
      %v5552 = vadd.f32 %v5455, %v5551
      %v5553 = vpop.f32.mrb[0].mxu0
      %v5554 = vpop.f32.mrb[0].mxu0
      %v5555 = vadd.f32 %v5458, %v5554
      %v5556 = vpop.f32.mrb[0].mxu0
      %5557 = vmatprep.mubr.bf16.mxu0 %v4656
      %5558 = vmatmul.mubr.bf16.gmra.mrb[0].mxu0 %v4655
      %v5559 = vpop.f32.mrb[0].mxu0
      %v5560 = vadd.f32 %v5463, %v5559
      %v5561 = vpop.f32.mrb[0].mxu0
      %v5562 = vpop.f32.mrb[0].mxu0
      %v5563 = vadd.f32 %v5466, %v5562
      %v5564 = vpop.f32.mrb[0].mxu0
      %5565 = vmatprep.mubr.bf16.mxu0 %v4664
      %5566 = vmatmul.mubr.bf16.gmra.mrb[0].mxu0 %v4663
      %v5567 = vpop.f32.mrb[0].mxu0
      %v5568 = vadd.f32 %v5471, %v5567
      %v5569 = vpop.f32.mrb[0].mxu0
      %v5570 = vpop.f32.mrb[0].mxu0
      %v5571 = vadd.f32 %v5474, %v5570
      %v5572 = vpop.f32.mrb[0].mxu0
      %5573 = vmatprep.mubr.bf16.mxu0 %v4672
      %5574 = vmatmul.mubr.bf16.gmra.mrb[0].mxu0 %v4671
      %v5575 = vpop.f32.mrb[0].mxu0
      %v5576 = vadd.f32 %v5479, %v5575
      %v5577 = vpop.f32.mrb[0].mxu0
      %v5578 = vpop.f32.mrb[0].mxu0
      %v5579 = vadd.f32 %v5482, %v5578
      %v5580 = vpop.f32.mrb[0].mxu0
      %5581 = vmatprep.mubr.bf16.mxu0 %v4680
      %5582 = vmatmul.mubr.bf16.gmra.mrb[0].mxu0 %v4679
      %v5583 = vpop.f32.mrb[0].mxu0
      %v5584 = vadd.f32 %v5487, %v5583
      %v5585 = vpop.f32.mrb[0].mxu0
      %v5586 = vpop.f32.mrb[0].mxu0
      %v5587 = vadd.f32 %v5490, %v5586
      %v5588 = vpop.f32.mrb[0].mxu0
      %5589 = vmatprep.mubr.bf16.mxu0 %v4688
      %5590 = vmatmul.mubr.bf16.gmra.mrb[0].mxu0 %v4687
      %v5591 = vpop.f32.mrb[0].mxu0
      %v5592 = vadd.f32 %v5495, %v5591
      %v5593 = vpop.f32.mrb[0].mxu0
      %v5594 = vpop.f32.mrb[0].mxu0
      %v5595 = vadd.f32 %v5498, %v5594
      %v5596 = vpop.f32.mrb[0].mxu0
      %5597 = vmatprep.mubr.bf16.mxu0 %v4696
      %5598 = vmatmul.mubr.bf16.gmra.mrb[0].mxu0 %v4695
      %v5599 = vpop.f32.mrb[0].mxu0
      %v5600 = vadd.f32 %v5503, %v5599
      %v5601 = vpop.f32.mrb[0].mxu0
      %v5602 = vpop.f32.mrb[0].mxu0
      %v5603 = vadd.f32 %v5506, %v5602
      %v5604 = vpop.f32.mrb[0].mxu0
      %5605 = vmatprep.mubr.bf16.mxu0 %v4704
      %5606 = vmatmul.mubr.bf16.gmra.mrb[0].mxu0 %v4703
      %v5607 = vpop.f32.mrb[0].mxu0
      %v5608 = vadd.f32 %v5511, %v5607
      %v5609 = vpop.f32.mrb[0].mxu0
      %v5610 = vpop.f32.mrb[0].mxu0
      %v5611 = vadd.f32 %v5514, %v5610
      %v5612 = vpop.f32.mrb[0].mxu0
      %5613 = vdwg.mxu0
      %v5614 = vmax.f32 %v5552, 0.0
      %v5615 = vmax.f32 %v5555, 0.0
      %v5616 = vmax.f32 %v5560, 0.0
      %v5617 = vmax.f32 %v5563, 0.0
      %v5618 = vmax.f32 %v5568, 0.0
      %v5619 = vmax.f32 %v5571, 0.0
      %v5620 = vmax.f32 %v5576, 0.0
      %v5621 = vmax.f32 %v5579, 0.0
      %v5622 = vmax.f32 %v5584, 0.0
      %v5623 = vmax.f32 %v5587, 0.0
      %v5624 = vmax.f32 %v5592, 0.0
      %v5625 = vmax.f32 %v5595, 0.0
      %v5626 = vmax.f32 %v5600, 0.0
      %v5627 = vmax.f32 %v5603, 0.0
      %v5628 = vmax.f32 %v5608, 0.0
      %v5629 = vmax.f32 %v5611, 0.0
      %v5630 = vmax.f32 %v3857, %v5614
      %v5631 = vmax.f32 %v3858, %v5615
      %v5632 = vmax.f32 %v3859, %v5616
      %v5633 = vmax.f32 %v3860, %v5617
      %v5634 = vmax.f32 %v3861, %v5618
      %v5635 = vmax.f32 %v3862, %v5619
      %v5636 = vmax.f32 %v3863, %v5620
      %v5637 = vmax.f32 %v3864, %v5621
      %v5638 = vmax.f32 %v3865, %v5622
      %v5639 = vmax.f32 %v3866, %v5623
      %v5640 = vmax.f32 %v3867, %v5624
      %v5641 = vmax.f32 %v3868, %v5625
      %v5642 = vmax.f32 %v3869, %v5626
      %v5643 = vmax.f32 %v3870, %v5627
      %v5644 = vmax.f32 %v3871, %v5628
      %v5645 = vmax.f32 %v3872, %v5629
      %v5646 = vpack.c.bf16 %v5631, %v5630
      %v5647 = vpack.c.bf16 %v5633, %v5632
      %v5648 = vpack.c.bf16 %v5635, %v5634
      %v5649 = vpack.c.bf16 %v5637, %v5636
      %v5650 = vpack.c.bf16 %v5639, %v5638
      %v5651 = vpack.c.bf16 %v5641, %v5640
      %v5652 = vpack.c.bf16 %v5643, %v5642
      %v5653 = vpack.c.bf16 %v5645, %v5644
      %v5662 = vunpack.c.l.b16 %v5646
      %v5663 = vunpack.c.h.b16 %v5646
      %v5664 = vunpack.c.l.b16 %v5647
      %v5665 = vunpack.c.h.b16 %v5647
      %v5666 = vunpack.c.l.b16 %v5648
      %v5667 = vunpack.c.h.b16 %v5648
      %v5668 = vunpack.c.l.b16 %v5649
      %v5669 = vunpack.c.h.b16 %v5649
      %v5670 = vunpack.c.l.b16 %v5650
      %v5671 = vunpack.c.h.b16 %v5650
      %v5672 = vunpack.c.l.b16 %v5651
      %v5673 = vunpack.c.h.b16 %v5651
      %v5674 = vunpack.c.l.b16 %v5652
      %v5675 = vunpack.c.h.b16 %v5652
      %v5676 = vunpack.c.l.b16 %v5653
      %v5677 = vunpack.c.h.b16 %v5653
      %v5678 = vpack.c.b16 %v5662, %v5662
      %v5679 = vpack.c.b16 %v5663, %v5663
      %v5680 = vpack.c.b16 %v5664, %v5664
      %v5681 = vpack.c.b16 %v5665, %v5665
      %v5682 = vpack.c.b16 %v5666, %v5666
      %v5683 = vpack.c.b16 %v5667, %v5667
      %v5684 = vpack.c.b16 %v5668, %v5668
      %v5685 = vpack.c.b16 %v5669, %v5669
      %v5686 = vpack.c.b16 %v5670, %v5670
      %v5687 = vpack.c.b16 %v5671, %v5671
      %v5688 = vpack.c.b16 %v5672, %v5672
      %v5689 = vpack.c.b16 %v5673, %v5673
      %v5690 = vpack.c.b16 %v5674, %v5674
      %v5691 = vpack.c.b16 %v5675, %v5675
      %v5692 = vpack.c.b16 %v5676, %v5676
      %v5693 = vpack.c.b16 %v5677, %v5677
      %5710 = vst [vmem:[%s262] sm:$0xf] %v5678
      %5711 = vst [vmem:[%s262 + $0x4] sm:$0xf] %v5679
      %5712 = vst [vmem:[%s262 + $0x8] sm:$0xf] %v5680
      %5713 = vst [vmem:[%s262 + $0xc] sm:$0xf] %v5681
      %5714 = vst [vmem:[%s262 + $0x10] sm:$0xf] %v5682
      %5715 = vst [vmem:[%s262 + $0x14] sm:$0xf] %v5683
      %5716 = vst [vmem:[%s262 + $0x18] sm:$0xf] %v5684
      %5717 = vst [vmem:[%s262 + $0x1c] sm:$0xf] %v5685
      %5718 = vst [vmem:[%s262 + $0x20] sm:$0xf] %v5686
      %5719 = vst [vmem:[%s262 + $0x24] sm:$0xf] %v5687
      %5720 = vst [vmem:[%s262 + $0x28] sm:$0xf] %v5688
      %5721 = vst [vmem:[%s262 + $0x2c] sm:$0xf] %v5689
      %5722 = vst [vmem:[%s262 + $0x30] sm:$0xf] %v5690
      %5723 = vst [vmem:[%s262 + $0x34] sm:$0xf] %v5691
      %5724 = vst [vmem:[%s262 + $0x38] sm:$0xf] %v5692
      %5725 = vst [vmem:[%s262 + $0x3c] sm:$0xf] %v5693
      %s5726 = smul.u32 16, %s21
      %p5727 = scmp.lt.s32.totalorder %s20, 1
      %s5728 = scalar_select %p5727, %s20, 1
      %p5729 = scmp.lt.s32.totalorder %s5726, 31
      %s5730 = scalar_select %p5729, %s5726, 31
      %s5731 = smul.addr %s5728, 32
      %s5732 = sadd.s32 %s5730, %s5731
      %s5733 = smul.addr %s5732, 4
      %s5734 = scalar_lea.vmem %s5, %s5733
      // Predicated region
      $region41: #{_pylon_forward.1} parent=39 // pred_check
        %p5735 = pneg %p160
      $region42: #{_pylon_forward.1} parent=39 // pred_check_branch
        %5737 = sbr.rel (%p5735) target = $region44
      $region43: #{_pylon_forward.1} parent=39 // pred_region
        %s5738 = smul.u32 16, %s21
      $region44: #{_pylon_forward.1} parent=39 // pred_fallthru
        _
    $region40: #{_pylon_forward.1} parent=5 // pred_fallthru
      _
    %p5739 = scmp.le.s32.totalorder 2, %s11
    // Predicated region
    $region45: #{_pylon_forward.1} parent=5 // pred_check
      %p5740 = pneg %p5739
    $region46: #{_pylon_forward.1} parent=5 // pred_check_branch
      %5742 = sbr.rel (%p5740) target = $region48
    $region47: #{_pylon_forward.1} parent=5 // pred_region
      %s5743 = ssub.s32 %s11, 2
      // Predicated region
      $region49: #{_pylon_forward.1} parent=47 // pred_check
        %p5744 = pneg %p166
      $region50: #{_pylon_forward.1} parent=47 // pred_check_branch
        %5746 = sbr.rel (%p5744) target = $region52
      $region51: #{_pylon_forward.1} parent=47 // pred_region
        %s5747 = smul.u32 16, %s23
        %p5748 = scmp.lt.s32.totalorder %s22, 1
        %s5749 = scalar_select %p5748, %s22, 1
        %p5750 = scmp.lt.s32.totalorder %s5747, 31
        %s5751 = scalar_select %p5750, %s5747, 31
        %s5752 = smul.addr %s5749, 32
        %s5753 = sadd.s32 %s5751, %s5752
        %s5754 = smul.addr %s5753, 4
        %s5755 = scalar_lea.vmem %s5, %s5754
      $region52: #{_pylon_forward.1} parent=47 // pred_fallthru
        _
    $region48: #{_pylon_forward.1} parent=5 // pred_fallthru
      _
  $region6: #{_pylon_forward.1} parent=0 // loop_footer
    %s15 = sadd.s32 1, %s11
  $region7: #{_pylon_forward.1} parent=0 // loop_footer_branch
    %10 = sbr.rel target = $region3
  $region8: #{_pylon_forward.1} parent=0 // loop_exit
    _

</llo_original>
